<compile_context>
chip_gen: v5e
topology: v5e:2x2
jax: 0.10.0
libtpu: 0.0.40
codegen_flags: <defaults>
</compile_context>

<pallas_src>
import math
import functools

import jax
import jax.numpy as jnp
import numpy as np
from jax import lax
from jax.experimental import pallas as pl
from jax.experimental.pallas import tpu as pltpu  # noqa: F401  (TPU backend)


def _attend_and_project(q_all, k_all, v_all, wo_ref, bo_ref, o_ref, *,
                        B, Lq, Lk, nhead, q_stride, mxu_dtype, approx_recip):
    """Per-(batch, head) attention with the output projection folded in.

    q_all : (rows, C) f32, already scaled (scale folded into Wq in wrapper);
            rows for batch b are [b*q_stride, b*q_stride + Lq).
    k_all : (B*Lk, C) f32
    v_all : (B*Lk, C) f32
    """
    C = q_all.shape[-1]
    dh = C // nhead
    # Cast MXU operands once (hoisted out of the batch/head loops).
    q_all = q_all.astype(mxu_dtype)
    k_all = k_all.astype(mxu_dtype)
    v_all = v_all.astype(mxu_dtype)
    wo = wo_ref[...]          # (C, C) pre-transposed output-projection weight
    bo = bo_ref[0]            # (C,)
    for b in range(B):
        q_b = q_all[b * q_stride:b * q_stride + Lq]   # (Lq, C)
        k_b = k_all[b * Lk:(b + 1) * Lk]              # (Lk, C)
        v_b = v_all[b * Lk:(b + 1) * Lk]              # (Lk, C)
        acc = jnp.zeros((Lq, C), jnp.float32)
        for h in range(nhead):
            lo, hi = h * dh, (h + 1) * dh
            qh = q_b[:, lo:hi]                         # (Lq, dh)
            kh = k_b[:, lo:hi]                         # (Lk, dh)
            vh = v_b[:, lo:hi]                         # (Lk, dh)
            # s = qh @ kh^T via dot_general contracting last dims (no .T).
            s = lax.dot_general(qh, kh, (((1,), (1,)), ((), ())),
                                preferred_element_type=jnp.float32)  # (Lq, Lk)
            m = jnp.max(s, axis=-1, keepdims=True)
            p = jnp.exp(s - m)
            l = jnp.sum(p, axis=-1, keepdims=True)                   # (Lq, 1)
            oh = jnp.dot(p.astype(mxu_dtype), vh,
                         preferred_element_type=jnp.float32)         # (Lq, dh)
            # Normalize after P.V (Lq*dh divides instead of Lq*Lk).
            oh = oh * pl.reciprocal(l, approx=approx_recip)
            # concat_h(o_h) @ Wo_t == sum_h o_h @ Wo_t[h*dh:(h+1)*dh, :]
            acc = acc + jnp.dot(oh.astype(mxu_dtype), wo[lo:hi, :],
                                preferred_element_type=jnp.float32)
        o_ref[b] = acc + bo


def _mha_kernel_sep(x_ref, kv_ref, wq_ref, wkv_ref, wo_ref,
                    bq_ref, bkv_ref, bo_ref, o_ref, *,
                    B, Lq, Lk, nhead, mxu_dtype, approx_recip):
    """Cross-attention: Q from x, K|V fused from kv.  Whole batch, one launch."""
    C = wq_ref.shape[0]
    q = jnp.dot(x_ref[...], wq_ref[...],
                preferred_element_type=jnp.float32) + bq_ref[0]       # (B*Lq, C)
    kvp = jnp.dot(kv_ref[...], wkv_ref[...],
                  preferred_element_type=jnp.float32) + bkv_ref[0]    # (B*Lk, 2C)
    _attend_and_project(q, kvp[:, :C], kvp[:, C:], wo_ref, bo_ref, o_ref,
                        B=B, Lq=Lq, Lk=Lk, nhead=nhead, q_stride=Lq,
                        mxu_dtype=mxu_dtype, approx_recip=approx_recip)


def _mha_kernel_fused(kv_ref, wqkv_ref, wo_ref, bqkv_ref, bo_ref, o_ref, *,
                      B, Lq, Lk, nhead, mxu_dtype, approx_recip):
    """Self-attention path: x is the per-batch prefix of kv -> fused Q|K|V proj."""
    C = wo_ref.shape[0]
    proj = jnp.dot(kv_ref[...], wqkv_ref[...],
                   preferred_element_type=jnp.float32) + bqkv_ref[0]  # (B*Lk, 3C)
    _attend_and_project(proj[:, :C], proj[:, C:2 * C], proj[:, 2 * C:],
                        wo_ref, bo_ref, o_ref,
                        B=B, Lq=Lq, Lk=Lk, nhead=nhead, q_stride=Lk,
                        mxu_dtype=mxu_dtype, approx_recip=approx_recip)


def _default_mxu_dtype():
    # v5e has no bf16 VPU path and this size is nowhere near MXU-throughput
    # bound, so bf16 casts would be pure VALU overhead there.
    try:
        kind = jax.devices()[0].device_kind.lower()
    except Exception:
        return jnp.bfloat16
    if "v5e" in kind or "v5 lite" in kind or "v5lite" in kind:
        return jnp.float32
    return jnp.bfloat16


def init_attention2d_params(key, c):
    """Deterministic synthetic parameters with nn.MultiheadAttention shapes."""
    k1, k2, k3 = jax.random.split(key, 3)
    bound = math.sqrt(6.0 / (c + c))  # xavier-uniform-ish
    in_proj_weight = jax.random.uniform(k1, (3 * c, c), jnp.float32, -bound, bound)
    in_proj_bias = 0.01 * jax.random.normal(k2, (3 * c,), jnp.float32)
    out_proj_weight = jax.random.uniform(k3, (c, c), jnp.float32, -bound, bound)
    out_proj_bias = jnp.zeros((c,), jnp.float32)
    return dict(in_proj_weight=in_proj_weight, in_proj_bias=in_proj_bias,
                out_proj_weight=out_proj_weight, out_proj_bias=out_proj_bias)


def attention2d(x, kv, params, nhead, self_attn=False, mxu_dtype=None):
    """Forward pass of Attention2D.  x: (B, C, H, W) NCHW; kv: (B, Lk, C).

    mxu_dtype: matmul operand dtype (None -> bf16 on v6e/v7x, f32 on v5e).
    Biases, softmax and all accumulations are always f32.
    """
    B, C, H, W = x.shape
    Lq = H * W
    if mxu_dtype is None:
        mxu_dtype = _default_mxu_dtype()
    approx_recip = (mxu_dtype != jnp.float32)

    xf = x.reshape(B, C, Lq).transpose(0, 2, 1)            # (B, Lq, C)
    if self_attn:
        kv = jnp.concatenate([xf, kv], axis=1)
    Lk = kv.shape[1]

    wq, wk, wv = jnp.split(params["in_proj_weight"], 3, axis=0)   # each (C, C)
    bq, bk, bv = jnp.split(params["in_proj_bias"], 3, axis=0)     # each (C,)
    wo = params["out_proj_weight"]
    bo = params["out_proj_bias"]

    # Fold 1/sqrt(dh) into the Q weight/bias; pre-transpose once (kernel: x@Wt).
    scale = 1.0 / math.sqrt(C // nhead)
    wq_s_t = (wq * scale).T                                # (C, C)
    bq_s = bq * scale
    wo_t = wo.T.astype(mxu_dtype)                          # (C, C)
    bo_r = bo.reshape(1, C).astype(jnp.float32)

    kv_flat = kv.reshape(B * Lk, C).astype(mxu_dtype)

    kwargs = dict(B=B, Lq=Lq, Lk=Lk, nhead=nhead,
                  mxu_dtype=mxu_dtype, approx_recip=approx_recip)
    out_shape = jax.ShapeDtypeStruct((B, Lq, C), jnp.float32)

    # Whole problem fits easily in VMEM, so: single grid-less invocation,
    # whole-batch projections, weights DMA'd exactly once.
    if self_attn:
        wqkv_t = jnp.concatenate([wq_s_t, wk.T, wv.T], axis=1).astype(mxu_dtype)
        bqkv_r = jnp.concatenate([bq_s, bk, bv]).reshape(1, 3 * C).astype(jnp.float32)
        out = pl.pallas_call(
            functools.partial(_mha_kernel_fused, **kwargs),
            out_shape=out_shape,
        )(kv_flat, wqkv_t, wo_t, bqkv_r, bo_r)
    else:
        wq_t = wq_s_t.astype(mxu_dtype)
        wkv_t = jnp.concatenate([wk.T, wv.T], axis=1).astype(mxu_dtype)  # (C, 2C)
        bq_r = bq_s.reshape(1, C).astype(jnp.float32)
        bkv_r = jnp.concatenate([bk, bv]).reshape(1, 2 * C).astype(jnp.float32)
        x_flat = xf.reshape(B * Lq, C).astype(mxu_dtype)
        out = pl.pallas_call(
            functools.partial(_mha_kernel_sep, **kwargs),
            out_shape=out_shape,
        )(x_flat, kv_flat, wq_t, wkv_t, wo_t, bq_r, bkv_r, bo_r)

    return out.transpose(0, 2, 1).reshape(B, C, H, W)


def attention2d_ref(x, kv, params, nhead, self_attn=False):
    """Pure-JAX reference replicating torch.nn.MultiheadAttention forward."""
    B, C, H, W = x.shape
    xf = x.reshape(B, C, H * W).transpose(0, 2, 1)
    if self_attn:
        kv = jnp.concatenate([xf, kv], axis=1)
    wq, wk, wv = jnp.split(params["in_proj_weight"], 3, axis=0)
    bq, bk, bv = jnp.split(params["in_proj_bias"], 3, axis=0)
    q = xf @ wq.T + bq
    k = kv @ wk.T + bk
    v = kv @ wv.T + bv
    dh = C // nhead
    q = q.reshape(B, -1, nhead, dh).transpose(0, 2, 1, 3)
    k = k.reshape(B, -1, nhead, dh).transpose(0, 2, 1, 3)
    v = v.reshape(B, -1, nhead, dh).transpose(0, 2, 1, 3)
    s = jnp.einsum("bhqd,bhkd->bhqk", q, k) / math.sqrt(dh)
    p = jax.nn.softmax(s, axis=-1)
    o = jnp.einsum("bhqk,bhkd->bhqd", p, v)
    o = o.transpose(0, 2, 1, 3).reshape(B, -1, C)
    o = o @ params["out_proj_weight"].T + params["out_proj_bias"]
    return o.transpose(0, 2, 1).reshape(B, C, H, W)


if __name__ == "__main__":
    B, C, Hs, Ws = 2, 32, 8, 8
    nhead = 4
    Lkv = 16

    key = jax.random.PRNGKey(0)
    kx, kkv, kp = jax.random.split(key, 3)
    x = jax.random.normal(kx, (B, C, Hs, Ws), jnp.float32)
    kv = jax.random.normal(kkv, (B, Lkv, C), jnp.float32)
    params = init_attention2d_params(kp, C)

    # f32 MXU path (exact reciprocal): tight tolerance vs pure-JAX reference.
    for sa in (False, True):
        out = attention2d(x, kv, params, nhead, self_attn=sa,
                          mxu_dtype=jnp.float32)
        out = jax.block_until_ready(out)
        ref = attention2d_ref(x, kv, params, nhead, self_attn=sa)
        np.testing.assert_allclose(np.asarray(out), np.asarray(ref),
                                   rtol=2e-5, atol=2e-5)

    # bf16 MXU path (fast): loosened tolerance.
    for sa in (False, True):
        out = attention2d(x, kv, params, nhead, self_attn=sa,
                          mxu_dtype=jnp.bfloat16)
        out = jax.block_until_ready(out)
        ref = attention2d_ref(x, kv, params, nhead, self_attn=sa)
        np.testing.assert_allclose(np.asarray(out), np.asarray(ref),
                                   rtol=3e-2, atol=3e-2)

    # Auto-dispatched default dtype path (chip-dependent) just has to run.
    out = attention2d(x, kv, params, nhead, self_attn=True)
    jax.block_until_ready(out)

    print("KERNEL_OK")
</pallas_src>

<mosaic_0001>
module attributes {stable_mosaic.version = 11 : i64} {
  func.func @_mha_kernel_sep(%arg0: memref<128x32xf32, #tpu.memory_space<vmem>>, %arg1: memref<32x32xf32, #tpu.memory_space<vmem>>, %arg2: memref<32x32xf32, #tpu.memory_space<vmem>>, %arg3: memref<32x64xf32, #tpu.memory_space<vmem>>, %arg4: memref<32x32xf32, #tpu.memory_space<vmem>>, %arg5: memref<1x32xf32, #tpu.memory_space<vmem>>, %arg6: memref<1x64xf32, #tpu.memory_space<vmem>>, %arg7: memref<1x32xf32, #tpu.memory_space<vmem>>, %arg8: memref<2x64x32xf32, #tpu.memory_space<vmem>>) attributes {dimension_semantics = [], scalar_prefetch = 0 : i64, scratch_operands = 0 : i64, tpu.core_type = #tpu.core_type<tc>} {
    %c0 = arith.constant 0 : index
    %c0_0 = arith.constant 0 : index
    %0 = vector.load %arg0[%c0, %c0_0] : memref<128x32xf32, #tpu.memory_space<vmem>>, vector<128x32xf32>
    %c0_1 = arith.constant 0 : index
    %c0_2 = arith.constant 0 : index
    %1 = vector.load %arg2[%c0_1, %c0_2] : memref<32x32xf32, #tpu.memory_space<vmem>>, vector<32x32xf32>
    %cst = arith.constant dense<0.000000e+00> : vector<128x32xf32>
    %2 = tpu.matmul %0, %1, %cst {dimension_numbers = #tpu.dot_dimension_numbers<[1], [0], [0], [1], [0, 0, 1, 1], [], []>} : vector<128x32xf32>, vector<32x32xf32>, vector<128x32xf32> -> vector<128x32xf32>
    %c0_3 = arith.constant 0 : index
    %c0_4 = arith.constant 0 : index
    %3 = vector.load %arg5[%c0_3, %c0_4] : memref<1x32xf32, #tpu.memory_space<vmem>>, vector<1x32xf32>
    %4 = vector.shape_cast %3 : vector<1x32xf32> to vector<32xf32>
    %5 = vector.shape_cast %4 : vector<32xf32> to vector<1x32xf32>
    %6 = vector.broadcast %5 : vector<1x32xf32> to vector<128x32xf32>
    %7 = arith.addf %2, %6 : vector<128x32xf32>
    %c0_5 = arith.constant 0 : index
    %c0_6 = arith.constant 0 : index
    %8 = vector.load %arg1[%c0_5, %c0_6] : memref<32x32xf32, #tpu.memory_space<vmem>>, vector<32x32xf32>
    %c0_7 = arith.constant 0 : index
    %c0_8 = arith.constant 0 : index
    %9 = vector.load %arg3[%c0_7, %c0_8] : memref<32x64xf32, #tpu.memory_space<vmem>>, vector<32x64xf32>
    %cst_9 = arith.constant dense<0.000000e+00> : vector<32x64xf32>
    %10 = tpu.matmul %8, %9, %cst_9 {dimension_numbers = #tpu.dot_dimension_numbers<[1], [0], [0], [1], [0, 0, 1, 1], [], []>} : vector<32x32xf32>, vector<32x64xf32>, vector<32x64xf32> -> vector<32x64xf32>
    %c0_10 = arith.constant 0 : index
    %c0_11 = arith.constant 0 : index
    %11 = vector.load %arg6[%c0_10, %c0_11] : memref<1x64xf32, #tpu.memory_space<vmem>>, vector<1x64xf32>
    %12 = vector.shape_cast %11 : vector<1x64xf32> to vector<64xf32>
    %13 = vector.shape_cast %12 : vector<64xf32> to vector<1x64xf32>
    %14 = vector.broadcast %13 : vector<1x64xf32> to vector<32x64xf32>
    %15 = arith.addf %10, %14 : vector<32x64xf32>
    %16 = vector.extract_strided_slice %15 {offsets = [0, 0], sizes = [32, 32], strides = [1, 1]} : vector<32x64xf32> to vector<32x32xf32>
    %17 = vector.extract_strided_slice %15 {offsets = [0, 32], sizes = [32, 32], strides = [1, 1]} : vector<32x64xf32> to vector<32x32xf32>
    %c0_12 = arith.constant 0 : index
    %c0_13 = arith.constant 0 : index
    %18 = vector.load %arg4[%c0_12, %c0_13] : memref<32x32xf32, #tpu.memory_space<vmem>>, vector<32x32xf32>
    %c0_14 = arith.constant 0 : index
    %c0_15 = arith.constant 0 : index
    %19 = vector.load %arg7[%c0_14, %c0_15] : memref<1x32xf32, #tpu.memory_space<vmem>>, vector<1x32xf32>
    %20 = vector.shape_cast %19 : vector<1x32xf32> to vector<32xf32>
    %21 = vector.extract_strided_slice %7 {offsets = [0, 0], sizes = [64, 32], strides = [1, 1]} : vector<128x32xf32> to vector<64x32xf32>
    %22 = vector.extract_strided_slice %16 {offsets = [0, 0], sizes = [16, 32], strides = [1, 1]} : vector<32x32xf32> to vector<16x32xf32>
    %23 = vector.extract_strided_slice %17 {offsets = [0, 0], sizes = [16, 32], strides = [1, 1]} : vector<32x32xf32> to vector<16x32xf32>
    %cst_16 = arith.constant 0.000000e+00 : f32
    %24 = vector.broadcast %cst_16 : f32 to vector<64x32xf32>
    %25 = vector.extract_strided_slice %21 {offsets = [0, 0], sizes = [64, 8], strides = [1, 1]} : vector<64x32xf32> to vector<64x8xf32>
    %26 = vector.extract_strided_slice %22 {offsets = [0, 0], sizes = [16, 8], strides = [1, 1]} : vector<16x32xf32> to vector<16x8xf32>
    %27 = vector.extract_strided_slice %23 {offsets = [0, 0], sizes = [16, 8], strides = [1, 1]} : vector<16x32xf32> to vector<16x8xf32>
    %cst_17 = arith.constant dense<0.000000e+00> : vector<64x16xf32>
    %28 = tpu.matmul %25, %26, %cst_17 {dimension_numbers = #tpu.dot_dimension_numbers<[1], [1], [0], [0], [0, 0, 1, 0], [], []>} : vector<64x8xf32>, vector<16x8xf32>, vector<64x16xf32> -> vector<64x16xf32>
    %cst_18 = arith.constant dense<0xFF800000> : vector<64xf32>
    %29 = vector.multi_reduction <maximumf>, %28, %cst_18 [1] : vector<64x16xf32> to vector<64xf32>
    %30 = vector.shape_cast %29 : vector<64xf32> to vector<64x1xf32>
    %31 = vector.broadcast %30 : vector<64x1xf32> to vector<64x16xf32>
    %32 = arith.subf %28, %31 : vector<64x16xf32>
    %33 = math.exp %32 : vector<64x16xf32>
    %cst_19 = arith.constant dense<0.000000e+00> : vector<64xf32>
    %34 = vector.multi_reduction <add>, %33, %cst_19 [1] : vector<64x16xf32> to vector<64xf32>
    %35 = vector.shape_cast %34 : vector<64xf32> to vector<64x1xf32>
    %cst_20 = arith.constant dense<0.000000e+00> : vector<64x8xf32>
    %36 = tpu.matmul %33, %27, %cst_20 {dimension_numbers = #tpu.dot_dimension_numbers<[1], [0], [0], [1], [0, 0, 1, 1], [], []>} : vector<64x16xf32>, vector<16x8xf32>, vector<64x8xf32> -> vector<64x8xf32>
    %37 = tpu.reciprocal %35 : vector<64x1xf32> -> vector<64x1xf32>
    %38 = vector.broadcast %37 : vector<64x1xf32> to vector<64x8xf32>
    %39 = arith.mulf %36, %38 : vector<64x8xf32>
    %40 = vector.extract_strided_slice %18 {offsets = [0, 0], sizes = [8, 32], strides = [1, 1]} : vector<32x32xf32> to vector<8x32xf32>
    %cst_21 = arith.constant dense<0.000000e+00> : vector<64x32xf32>
    %41 = tpu.matmul %39, %40, %cst_21 {dimension_numbers = #tpu.dot_dimension_numbers<[1], [0], [0], [1], [0, 0, 1, 1], [], []>} : vector<64x8xf32>, vector<8x32xf32>, vector<64x32xf32> -> vector<64x32xf32>
    %42 = arith.addf %24, %41 : vector<64x32xf32>
    %43 = vector.extract_strided_slice %21 {offsets = [0, 8], sizes = [64, 8], strides = [1, 1]} : vector<64x32xf32> to vector<64x8xf32>
    %44 = vector.extract_strided_slice %22 {offsets = [0, 8], sizes = [16, 8], strides = [1, 1]} : vector<16x32xf32> to vector<16x8xf32>
    %45 = vector.extract_strided_slice %23 {offsets = [0, 8], sizes = [16, 8], strides = [1, 1]} : vector<16x32xf32> to vector<16x8xf32>
    %cst_22 = arith.constant dense<0.000000e+00> : vector<64x16xf32>
    %46 = tpu.matmul %43, %44, %cst_22 {dimension_numbers = #tpu.dot_dimension_numbers<[1], [1], [0], [0], [0, 0, 1, 0], [], []>} : vector<64x8xf32>, vector<16x8xf32>, vector<64x16xf32> -> vector<64x16xf32>
    %cst_23 = arith.constant dense<0xFF800000> : vector<64xf32>
    %47 = vector.multi_reduction <maximumf>, %46, %cst_23 [1] : vector<64x16xf32> to vector<64xf32>
    %48 = vector.shape_cast %47 : vector<64xf32> to vector<64x1xf32>
    %49 = vector.broadcast %48 : vector<64x1xf32> to vector<64x16xf32>
    %50 = arith.subf %46, %49 : vector<64x16xf32>
    %51 = math.exp %50 : vector<64x16xf32>
    %cst_24 = arith.constant dense<0.000000e+00> : vector<64xf32>
    %52 = vector.multi_reduction <add>, %51, %cst_24 [1] : vector<64x16xf32> to vector<64xf32>
    %53 = vector.shape_cast %52 : vector<64xf32> to vector<64x1xf32>
    %cst_25 = arith.constant dense<0.000000e+00> : vector<64x8xf32>
    %54 = tpu.matmul %51, %45, %cst_25 {dimension_numbers = #tpu.dot_dimension_numbers<[1], [0], [0], [1], [0, 0, 1, 1], [], []>} : vector<64x16xf32>, vector<16x8xf32>, vector<64x8xf32> -> vector<64x8xf32>
    %55 = tpu.reciprocal %53 : vector<64x1xf32> -> vector<64x1xf32>
    %56 = vector.broadcast %55 : vector<64x1xf32> to vector<64x8xf32>
    %57 = arith.mulf %54, %56 : vector<64x8xf32>
    %58 = vector.extract_strided_slice %18 {offsets = [8, 0], sizes = [8, 32], strides = [1, 1]} : vector<32x32xf32> to vector<8x32xf32>
    %cst_26 = arith.constant dense<0.000000e+00> : vector<64x32xf32>
    %59 = tpu.matmul %57, %58, %cst_26 {dimension_numbers = #tpu.dot_dimension_numbers<[1], [0], [0], [1], [0, 0, 1, 1], [], []>} : vector<64x8xf32>, vector<8x32xf32>, vector<64x32xf32> -> vector<64x32xf32>
    %60 = arith.addf %42, %59 : vector<64x32xf32>
    %61 = vector.extract_strided_slice %21 {offsets = [0, 16], sizes = [64, 8], strides = [1, 1]} : vector<64x32xf32> to vector<64x8xf32>
    %62 = vector.extract_strided_slice %22 {offsets = [0, 16], sizes = [16, 8], strides = [1, 1]} : vector<16x32xf32> to vector<16x8xf32>
    %63 = vector.extract_strided_slice %23 {offsets = [0, 16], sizes = [16, 8], strides = [1, 1]} : vector<16x32xf32> to vector<16x8xf32>
    %cst_27 = arith.constant dense<0.000000e+00> : vector<64x16xf32>
    %64 = tpu.matmul %61, %62, %cst_27 {dimension_numbers = #tpu.dot_dimension_numbers<[1], [1], [0], [0], [0, 0, 1, 0], [], []>} : vector<64x8xf32>, vector<16x8xf32>, vector<64x16xf32> -> vector<64x16xf32>
    %cst_28 = arith.constant dense<0xFF800000> : vector<64xf32>
    %65 = vector.multi_reduction <maximumf>, %64, %cst_28 [1] : vector<64x16xf32> to vector<64xf32>
    %66 = vector.shape_cast %65 : vector<64xf32> to vector<64x1xf32>
    %67 = vector.broadcast %66 : vector<64x1xf32> to vector<64x16xf32>
    %68 = arith.subf %64, %67 : vector<64x16xf32>
    %69 = math.exp %68 : vector<64x16xf32>
    %cst_29 = arith.constant dense<0.000000e+00> : vector<64xf32>
    %70 = vector.multi_reduction <add>, %69, %cst_29 [1] : vector<64x16xf32> to vector<64xf32>
    %71 = vector.shape_cast %70 : vector<64xf32> to vector<64x1xf32>
    %cst_30 = arith.constant dense<0.000000e+00> : vector<64x8xf32>
    %72 = tpu.matmul %69, %63, %cst_30 {dimension_numbers = #tpu.dot_dimension_numbers<[1], [0], [0], [1], [0, 0, 1, 1], [], []>} : vector<64x16xf32>, vector<16x8xf32>, vector<64x8xf32> -> vector<64x8xf32>
    %73 = tpu.reciprocal %71 : vector<64x1xf32> -> vector<64x1xf32>
    %74 = vector.broadcast %73 : vector<64x1xf32> to vector<64x8xf32>
    %75 = arith.mulf %72, %74 : vector<64x8xf32>
    %76 = vector.extract_strided_slice %18 {offsets = [16, 0], sizes = [8, 32], strides = [1, 1]} : vector<32x32xf32> to vector<8x32xf32>
    %cst_31 = arith.constant dense<0.000000e+00> : vector<64x32xf32>
    %77 = tpu.matmul %75, %76, %cst_31 {dimension_numbers = #tpu.dot_dimension_numbers<[1], [0], [0], [1], [0, 0, 1, 1], [], []>} : vector<64x8xf32>, vector<8x32xf32>, vector<64x32xf32> -> vector<64x32xf32>
    %78 = arith.addf %60, %77 : vector<64x32xf32>
    %79 = vector.extract_strided_slice %21 {offsets = [0, 24], sizes = [64, 8], strides = [1, 1]} : vector<64x32xf32> to vector<64x8xf32>
    %80 = vector.extract_strided_slice %22 {offsets = [0, 24], sizes = [16, 8], strides = [1, 1]} : vector<16x32xf32> to vector<16x8xf32>
    %81 = vector.extract_strided_slice %23 {offsets = [0, 24], sizes = [16, 8], strides = [1, 1]} : vector<16x32xf32> to vector<16x8xf32>
    %cst_32 = arith.constant dense<0.000000e+00> : vector<64x16xf32>
    %82 = tpu.matmul %79, %80, %cst_32 {dimension_numbers = #tpu.dot_dimension_numbers<[1], [1], [0], [0], [0, 0, 1, 0], [], []>} : vector<64x8xf32>, vector<16x8xf32>, vector<64x16xf32> -> vector<64x16xf32>
    %cst_33 = arith.constant dense<0xFF800000> : vector<64xf32>
    %83 = vector.multi_reduction <maximumf>, %82, %cst_33 [1] : vector<64x16xf32> to vector<64xf32>
    %84 = vector.shape_cast %83 : vector<64xf32> to vector<64x1xf32>
    %85 = vector.broadcast %84 : vector<64x1xf32> to vector<64x16xf32>
    %86 = arith.subf %82, %85 : vector<64x16xf32>
    %87 = math.exp %86 : vector<64x16xf32>
    %cst_34 = arith.constant dense<0.000000e+00> : vector<64xf32>
    %88 = vector.multi_reduction <add>, %87, %cst_34 [1] : vector<64x16xf32> to vector<64xf32>
    %89 = vector.shape_cast %88 : vector<64xf32> to vector<64x1xf32>
    %cst_35 = arith.constant dense<0.000000e+00> : vector<64x8xf32>
    %90 = tpu.matmul %87, %81, %cst_35 {dimension_numbers = #tpu.dot_dimension_numbers<[1], [0], [0], [1], [0, 0, 1, 1], [], []>} : vector<64x16xf32>, vector<16x8xf32>, vector<64x8xf32> -> vector<64x8xf32>
    %91 = tpu.reciprocal %89 : vector<64x1xf32> -> vector<64x1xf32>
    %92 = vector.broadcast %91 : vector<64x1xf32> to vector<64x8xf32>
    %93 = arith.mulf %90, %92 : vector<64x8xf32>
    %94 = vector.extract_strided_slice %18 {offsets = [24, 0], sizes = [8, 32], strides = [1, 1]} : vector<32x32xf32> to vector<8x32xf32>
    %cst_36 = arith.constant dense<0.000000e+00> : vector<64x32xf32>
    %95 = tpu.matmul %93, %94, %cst_36 {dimension_numbers = #tpu.dot_dimension_numbers<[1], [0], [0], [1], [0, 0, 1, 1], [], []>} : vector<64x8xf32>, vector<8x32xf32>, vector<64x32xf32> -> vector<64x32xf32>
    %96 = arith.addf %78, %95 : vector<64x32xf32>
    %97 = vector.shape_cast %20 : vector<32xf32> to vector<1x32xf32>
    %98 = vector.broadcast %97 : vector<1x32xf32> to vector<64x32xf32>
    %99 = arith.addf %96, %98 : vector<64x32xf32>
    %c0_37 = arith.constant 0 : index
    %c0_38 = arith.constant 0 : index
    %c0_39 = arith.constant 0 : index
    %100 = vector.load %arg8[%c0_37, %c0_38, %c0_39] : memref<2x64x32xf32, #tpu.memory_space<vmem>>, vector<1x64x32xf32>
    %101 = vector.shape_cast %100 : vector<1x64x32xf32> to vector<64x32xf32>
    %102 = vector.shape_cast %99 : vector<64x32xf32> to vector<1x64x32xf32>
    tpu.vector_store %arg8[%c0_37, %c0_38, %c0_39], %102 {strides = array<i32>} : memref<2x64x32xf32, #tpu.memory_space<vmem>>, vector<1x64x32xf32>,
    %103 = vector.extract_strided_slice %7 {offsets = [64, 0], sizes = [64, 32], strides = [1, 1]} : vector<128x32xf32> to vector<64x32xf32>
    %104 = vector.extract_strided_slice %16 {offsets = [16, 0], sizes = [16, 32], strides = [1, 1]} : vector<32x32xf32> to vector<16x32xf32>
    %105 = vector.extract_strided_slice %17 {offsets = [16, 0], sizes = [16, 32], strides = [1, 1]} : vector<32x32xf32> to vector<16x32xf32>
    %cst_40 = arith.constant 0.000000e+00 : f32
    %106 = vector.broadcast %cst_40 : f32 to vector<64x32xf32>
    %107 = vector.extract_strided_slice %103 {offsets = [0, 0], sizes = [64, 8], strides = [1, 1]} : vector<64x32xf32> to vector<64x8xf32>
    %108 = vector.extract_strided_slice %104 {offsets = [0, 0], sizes = [16, 8], strides = [1, 1]} : vector<16x32xf32> to vector<16x8xf32>
    %109 = vector.extract_strided_slice %105 {offsets = [0, 0], sizes = [16, 8], strides = [1, 1]} : vector<16x32xf32> to vector<16x8xf32>
    %cst_41 = arith.constant dense<0.000000e+00> : vector<64x16xf32>
    %110 = tpu.matmul %107, %108, %cst_41 {dimension_numbers = #tpu.dot_dimension_numbers<[1], [1], [0], [0], [0, 0, 1, 0], [], []>} : vector<64x8xf32>, vector<16x8xf32>, vector<64x16xf32> -> vector<64x16xf32>
    %cst_42 = arith.constant dense<0xFF800000> : vector<64xf32>
    %111 = vector.multi_reduction <maximumf>, %110, %cst_42 [1] : vector<64x16xf32> to vector<64xf32>
    %112 = vector.shape_cast %111 : vector<64xf32> to vector<64x1xf32>
    %113 = vector.broadcast %112 : vector<64x1xf32> to vector<64x16xf32>
    %114 = arith.subf %110, %113 : vector<64x16xf32>
    %115 = math.exp %114 : vector<64x16xf32>
    %cst_43 = arith.constant dense<0.000000e+00> : vector<64xf32>
    %116 = vector.multi_reduction <add>, %115, %cst_43 [1] : vector<64x16xf32> to vector<64xf32>
    %117 = vector.shape_cast %116 : vector<64xf32> to vector<64x1xf32>
    %cst_44 = arith.constant dense<0.000000e+00> : vector<64x8xf32>
    %118 = tpu.matmul %115, %109, %cst_44 {dimension_numbers = #tpu.dot_dimension_numbers<[1], [0], [0], [1], [0, 0, 1, 1], [], []>} : vector<64x16xf32>, vector<16x8xf32>, vector<64x8xf32> -> vector<64x8xf32>
    %119 = tpu.reciprocal %117 : vector<64x1xf32> -> vector<64x1xf32>
    %120 = vector.broadcast %119 : vector<64x1xf32> to vector<64x8xf32>
    %121 = arith.mulf %118, %120 : vector<64x8xf32>
    %122 = vector.extract_strided_slice %18 {offsets = [0, 0], sizes = [8, 32], strides = [1, 1]} : vector<32x32xf32> to vector<8x32xf32>
    %cst_45 = arith.constant dense<0.000000e+00> : vector<64x32xf32>
    %123 = tpu.matmul %121, %122, %cst_45 {dimension_numbers = #tpu.dot_dimension_numbers<[1], [0], [0], [1], [0, 0, 1, 1], [], []>} : vector<64x8xf32>, vector<8x32xf32>, vector<64x32xf32> -> vector<64x32xf32>
    %124 = arith.addf %106, %123 : vector<64x32xf32>
    %125 = vector.extract_strided_slice %103 {offsets = [0, 8], sizes = [64, 8], strides = [1, 1]} : vector<64x32xf32> to vector<64x8xf32>
    %126 = vector.extract_strided_slice %104 {offsets = [0, 8], sizes = [16, 8], strides = [1, 1]} : vector<16x32xf32> to vector<16x8xf32>
    %127 = vector.extract_strided_slice %105 {offsets = [0, 8], sizes = [16, 8], strides = [1, 1]} : vector<16x32xf32> to vector<16x8xf32>
    %cst_46 = arith.constant dense<0.000000e+00> : vector<64x16xf32>
    %128 = tpu.matmul %125, %126, %cst_46 {dimension_numbers = #tpu.dot_dimension_numbers<[1], [1], [0], [0], [0, 0, 1, 0], [], []>} : vector<64x8xf32>, vector<16x8xf32>, vector<64x16xf32> -> vector<64x16xf32>
    %cst_47 = arith.constant dense<0xFF800000> : vector<64xf32>
    %129 = vector.multi_reduction <maximumf>, %128, %cst_47 [1] : vector<64x16xf32> to vector<64xf32>
    %130 = vector.shape_cast %129 : vector<64xf32> to vector<64x1xf32>
    %131 = vector.broadcast %130 : vector<64x1xf32> to vector<64x16xf32>
    %132 = arith.subf %128, %131 : vector<64x16xf32>
    %133 = math.exp %132 : vector<64x16xf32>
    %cst_48 = arith.constant dense<0.000000e+00> : vector<64xf32>
    %134 = vector.multi_reduction <add>, %133, %cst_48 [1] : vector<64x16xf32> to vector<64xf32>
    %135 = vector.shape_cast %134 : vector<64xf32> to vector<64x1xf32>
    %cst_49 = arith.constant dense<0.000000e+00> : vector<64x8xf32>
    %136 = tpu.matmul %133, %127, %cst_49 {dimension_numbers = #tpu.dot_dimension_numbers<[1], [0], [0], [1], [0, 0, 1, 1], [], []>} : vector<64x16xf32>, vector<16x8xf32>, vector<64x8xf32> -> vector<64x8xf32>
    %137 = tpu.reciprocal %135 : vector<64x1xf32> -> vector<64x1xf32>
    %138 = vector.broadcast %137 : vector<64x1xf32> to vector<64x8xf32>
    %139 = arith.mulf %136, %138 : vector<64x8xf32>
    %140 = vector.extract_strided_slice %18 {offsets = [8, 0], sizes = [8, 32], strides = [1, 1]} : vector<32x32xf32> to vector<8x32xf32>
    %cst_50 = arith.constant dense<0.000000e+00> : vector<64x32xf32>
    %141 = tpu.matmul %139, %140, %cst_50 {dimension_numbers = #tpu.dot_dimension_numbers<[1], [0], [0], [1], [0, 0, 1, 1], [], []>} : vector<64x8xf32>, vector<8x32xf32>, vector<64x32xf32> -> vector<64x32xf32>
    %142 = arith.addf %124, %141 : vector<64x32xf32>
    %143 = vector.extract_strided_slice %103 {offsets = [0, 16], sizes = [64, 8], strides = [1, 1]} : vector<64x32xf32> to vector<64x8xf32>
    %144 = vector.extract_strided_slice %104 {offsets = [0, 16], sizes = [16, 8], strides = [1, 1]} : vector<16x32xf32> to vector<16x8xf32>
    %145 = vector.extract_strided_slice %105 {offsets = [0, 16], sizes = [16, 8], strides = [1, 1]} : vector<16x32xf32> to vector<16x8xf32>
    %cst_51 = arith.constant dense<0.000000e+00> : vector<64x16xf32>
    %146 = tpu.matmul %143, %144, %cst_51 {dimension_numbers = #tpu.dot_dimension_numbers<[1], [1], [0], [0], [0, 0, 1, 0], [], []>} : vector<64x8xf32>, vector<16x8xf32>, vector<64x16xf32> -> vector<64x16xf32>
    %cst_52 = arith.constant dense<0xFF800000> : vector<64xf32>
    %147 = vector.multi_reduction <maximumf>, %146, %cst_52 [1] : vector<64x16xf32> to vector<64xf32>
    %148 = vector.shape_cast %147 : vector<64xf32> to vector<64x1xf32>
    %149 = vector.broadcast %148 : vector<64x1xf32> to vector<64x16xf32>
    %150 = arith.subf %146, %149 : vector<64x16xf32>
    %151 = math.exp %150 : vector<64x16xf32>
    %cst_53 = arith.constant dense<0.000000e+00> : vector<64xf32>
    %152 = vector.multi_reduction <add>, %151, %cst_53 [1] : vector<64x16xf32> to vector<64xf32>
    %153 = vector.shape_cast %152 : vector<64xf32> to vector<64x1xf32>
    %cst_54 = arith.constant dense<0.000000e+00> : vector<64x8xf32>
    %154 = tpu.matmul %151, %145, %cst_54 {dimension_numbers = #tpu.dot_dimension_numbers<[1], [0], [0], [1], [0, 0, 1, 1], [], []>} : vector<64x16xf32>, vector<16x8xf32>, vector<64x8xf32> -> vector<64x8xf32>
    %155 = tpu.reciprocal %153 : vector<64x1xf32> -> vector<64x1xf32>
    %156 = vector.broadcast %155 : vector<64x1xf32> to vector<64x8xf32>
    %157 = arith.mulf %154, %156 : vector<64x8xf32>
    %158 = vector.extract_strided_slice %18 {offsets = [16, 0], sizes = [8, 32], strides = [1, 1]} : vector<32x32xf32> to vector<8x32xf32>
    %cst_55 = arith.constant dense<0.000000e+00> : vector<64x32xf32>
    %159 = tpu.matmul %157, %158, %cst_55 {dimension_numbers = #tpu.dot_dimension_numbers<[1], [0], [0], [1], [0, 0, 1, 1], [], []>} : vector<64x8xf32>, vector<8x32xf32>, vector<64x32xf32> -> vector<64x32xf32>
    %160 = arith.addf %142, %159 : vector<64x32xf32>
    %161 = vector.extract_strided_slice %103 {offsets = [0, 24], sizes = [64, 8], strides = [1, 1]} : vector<64x32xf32> to vector<64x8xf32>
    %162 = vector.extract_strided_slice %104 {offsets = [0, 24], sizes = [16, 8], strides = [1, 1]} : vector<16x32xf32> to vector<16x8xf32>
    %163 = vector.extract_strided_slice %105 {offsets = [0, 24], sizes = [16, 8], strides = [1, 1]} : vector<16x32xf32> to vector<16x8xf32>
    %cst_56 = arith.constant dense<0.000000e+00> : vector<64x16xf32>
    %164 = tpu.matmul %161, %162, %cst_56 {dimension_numbers = #tpu.dot_dimension_numbers<[1], [1], [0], [0], [0, 0, 1, 0], [], []>} : vector<64x8xf32>, vector<16x8xf32>, vector<64x16xf32> -> vector<64x16xf32>
    %cst_57 = arith.constant dense<0xFF800000> : vector<64xf32>
    %165 = vector.multi_reduction <maximumf>, %164, %cst_57 [1] : vector<64x16xf32> to vector<64xf32>
    %166 = vector.shape_cast %165 : vector<64xf32> to vector<64x1xf32>
    %167 = vector.broadcast %166 : vector<64x1xf32> to vector<64x16xf32>
    %168 = arith.subf %164, %167 : vector<64x16xf32>
    %169 = math.exp %168 : vector<64x16xf32>
    %cst_58 = arith.constant dense<0.000000e+00> : vector<64xf32>
    %170 = vector.multi_reduction <add>, %169, %cst_58 [1] : vector<64x16xf32> to vector<64xf32>
    %171 = vector.shape_cast %170 : vector<64xf32> to vector<64x1xf32>
    %cst_59 = arith.constant dense<0.000000e+00> : vector<64x8xf32>
    %172 = tpu.matmul %169, %163, %cst_59 {dimension_numbers = #tpu.dot_dimension_numbers<[1], [0], [0], [1], [0, 0, 1, 1], [], []>} : vector<64x16xf32>, vector<16x8xf32>, vector<64x8xf32> -> vector<64x8xf32>
    %173 = tpu.reciprocal %171 : vector<64x1xf32> -> vector<64x1xf32>
    %174 = vector.broadcast %173 : vector<64x1xf32> to vector<64x8xf32>
    %175 = arith.mulf %172, %174 : vector<64x8xf32>
    %176 = vector.extract_strided_slice %18 {offsets = [24, 0], sizes = [8, 32], strides = [1, 1]} : vector<32x32xf32> to vector<8x32xf32>
    %cst_60 = arith.constant dense<0.000000e+00> : vector<64x32xf32>
    %177 = tpu.matmul %175, %176, %cst_60 {dimension_numbers = #tpu.dot_dimension_numbers<[1], [0], [0], [1], [0, 0, 1, 1], [], []>} : vector<64x8xf32>, vector<8x32xf32>, vector<64x32xf32> -> vector<64x32xf32>
    %178 = arith.addf %160, %177 : vector<64x32xf32>
    %179 = vector.shape_cast %20 : vector<32xf32> to vector<1x32xf32>
    %180 = vector.broadcast %179 : vector<1x32xf32> to vector<64x32xf32>
    %181 = arith.addf %178, %180 : vector<64x32xf32>
    %c1 = arith.constant 1 : index
    %c0_61 = arith.constant 0 : index
    %c0_62 = arith.constant 0 : index
    %182 = vector.load %arg8[%c1, %c0_61, %c0_62] : memref<2x64x32xf32, #tpu.memory_space<vmem>>, vector<1x64x32xf32>
    %183 = vector.shape_cast %182 : vector<1x64x32xf32> to vector<64x32xf32>
    %184 = vector.shape_cast %181 : vector<64x32xf32> to vector<1x64x32xf32>
    tpu.vector_store %arg8[%c1, %c0_61, %c0_62], %184 {strides = array<i32>} : memref<2x64x32xf32, #tpu.memory_space<vmem>>, vector<1x64x32xf32>,
    return
  }
}

</mosaic_0001>

<llo_original>
// kernel: tpu_custom_call.1
$region0: #{tpu_custom_call.1}
  #allocation0 [shape = 'u32[]', space=smem, size = 0x4, offset = 0x4, fixed_abs, tag = 'smem constant byte address 0x4 - core index']
  #allocation1 [shape = 'u32[72,128]{1,0:T(1,128)}', space=vmem, size = 0x9000, scoped, tag = 'internal scratch']
  %s0 = inlined_call_operand.vmem [shape: f32[128,32], index: 0, kind: input, shape index: {}]
  %s1 = inlined_call_operand.vmem [shape: f32[32,32], index: 1, kind: input, shape index: {}]
  %s2 = inlined_call_operand.vmem [shape: f32[32,32], index: 2, kind: input, shape index: {}]
  %s3 = inlined_call_operand.vmem [shape: f32[32,64], index: 3, kind: input, shape index: {}]
  %s4 = inlined_call_operand.vmem [shape: f32[32,32], index: 4, kind: input, shape index: {}]
  %s5 = inlined_call_operand.vmem [shape: f32[1,32], index: 5, kind: input, shape index: {}]
  %s6 = inlined_call_operand.vmem [shape: f32[1,64], index: 6, kind: input, shape index: {}]
  %s7 = inlined_call_operand.vmem [shape: f32[1,32], index: 7, kind: input, shape index: {}]
  %s8 = inlined_call_operand.vmem [shape: f32[2,64,32], index: 8, kind: output, shape index: {}]
  %s9 = sld [smem:[#allocation0]]
  $region42: #{tpu_custom_call.1} parent=0
    _
  %s11 = ssub.s32 1, %s9
  %s12 = scalar_select 0, %s11, %s9
  // Predicated region
  $region2: #{tpu_custom_call.1} parent=0 // pred_check
    _
  $region3: #{tpu_custom_call.1} parent=0 // pred_check_branch
    %14 = sbr.rel (0) target = $region5
  $region4: #{tpu_custom_call.1} parent=0 // pred_region
    _
  $region5: #{tpu_custom_call.1} parent=0 // pred_fallthru
    _
  // Predicated region
  $region6: #{tpu_custom_call.1} parent=0 // pred_check
    _
  $region7: #{tpu_custom_call.1} parent=0 // pred_check_branch
    %16 = sbr.rel (0) target = $region9
  $region8: #{tpu_custom_call.1} parent=0 // pred_region
    _
  $region9: #{tpu_custom_call.1} parent=0 // pred_fallthru
    _
  // Predicated region
  $region10: #{tpu_custom_call.1} parent=0 // pred_check
    _
  $region11: #{tpu_custom_call.1} parent=0 // pred_check_branch
    %18 = sbr.rel (0) target = $region13
  $region12: #{tpu_custom_call.1} parent=0 // pred_region
    _
  $region13: #{tpu_custom_call.1} parent=0 // pred_fallthru
    _
  // Predicated region
  $region14: #{tpu_custom_call.1} parent=0 // pred_check
    _
  $region15: #{tpu_custom_call.1} parent=0 // pred_check_branch
    %20 = sbr.rel (0) target = $region17
  $region16: #{tpu_custom_call.1} parent=0 // pred_region
    _
  $region17: #{tpu_custom_call.1} parent=0 // pred_fallthru
    _
  // Predicated region
  $region18: #{tpu_custom_call.1} parent=0 // pred_check
    _
  $region19: #{tpu_custom_call.1} parent=0 // pred_check_branch
    %22 = sbr.rel (0) target = $region21
  $region20: #{tpu_custom_call.1} parent=0 // pred_region
    _
  $region21: #{tpu_custom_call.1} parent=0 // pred_fallthru
    _
  // Predicated region
  $region22: #{tpu_custom_call.1} parent=0 // pred_check
    _
  $region23: #{tpu_custom_call.1} parent=0 // pred_check_branch
    %24 = sbr.rel (0) target = $region25
  $region24: #{tpu_custom_call.1} parent=0 // pred_region
    _
  $region25: #{tpu_custom_call.1} parent=0 // pred_fallthru
    _
  // Predicated region
  $region26: #{tpu_custom_call.1} parent=0 // pred_check
    _
  $region27: #{tpu_custom_call.1} parent=0 // pred_check_branch
    %26 = sbr.rel (0) target = $region29
  $region28: #{tpu_custom_call.1} parent=0 // pred_region
    _
  $region29: #{tpu_custom_call.1} parent=0 // pred_fallthru
    _
  // Predicated region
  $region30: #{tpu_custom_call.1} parent=0 // pred_check
    _
  $region31: #{tpu_custom_call.1} parent=0 // pred_check_branch
    %28 = sbr.rel (0) target = $region33
  $region32: #{tpu_custom_call.1} parent=0 // pred_region
    _
  $region33: #{tpu_custom_call.1} parent=0 // pred_fallthru
    _
  %v29 = vld [vmem:[%s0] sm:$0xff]
  %v30 = vld [vmem:[%s0 + $0x8] sm:$0xff]
  %v31 = vld [vmem:[%s0 + $0x10] sm:$0xff]
  %v32 = vld [vmem:[%s0 + $0x18] sm:$0xff]
  %v33 = vld [vmem:[%s0 + $0x20] sm:$0xff]
  %v34 = vld [vmem:[%s0 + $0x28] sm:$0xff]
  %v35 = vld [vmem:[%s0 + $0x30] sm:$0xff]
  %v36 = vld [vmem:[%s0 + $0x38] sm:$0xff]
  %v37 = vld [vmem:[%s0 + $0x40] sm:$0xff]
  %v38 = vld [vmem:[%s0 + $0x48] sm:$0xff]
  %v39 = vld [vmem:[%s0 + $0x50] sm:$0xff]
  %v40 = vld [vmem:[%s0 + $0x58] sm:$0xff]
  %v41 = vld [vmem:[%s0 + $0x60] sm:$0xff]
  %v42 = vld [vmem:[%s0 + $0x68] sm:$0xff]
  %v43 = vld [vmem:[%s0 + $0x70] sm:$0xff]
  %v44 = vld [vmem:[%s0 + $0x78] sm:$0xff]
  %v45 = vld [vmem:[%s2] sm:$0xff]
  %v46 = vld [vmem:[%s2 + $0x8] sm:$0xff]
  %v47 = vld [vmem:[%s2 + $0x10] sm:$0xff]
  %v48 = vld [vmem:[%s2 + $0x18] sm:$0xff]
  %v49 = vld [vmem:[%s5] sm:$0x1]
  %v51 = vperm.slane %v49, 0
  %vm53 = vcmask 261120
  %v55 = vsel %vm53, %v29, 0
  %v58 = vsel %vm53, %v30, 0
  %v61 = vsel %vm53, %v31, 0
  %v64 = vsel %vm53, %v32, 0
  %v67 = vsel %vm53, %v33, 0
  %v70 = vsel %vm53, %v34, 0
  %v73 = vsel %vm53, %v35, 0
  %v76 = vsel %vm53, %v36, 0
  %v79 = vsel %vm53, %v37, 0
  %v82 = vsel %vm53, %v38, 0
  %v85 = vsel %vm53, %v39, 0
  %v88 = vsel %vm53, %v40, 0
  %v91 = vsel %vm53, %v41, 0
  %v94 = vsel %vm53, %v42, 0
  %v97 = vsel %vm53, %v43, 0
  %v100 = vsel %vm53, %v44, 0
  %102 = vmatpush.msra.mxu0 0.0
  %103 = vmatpush.msra.mxu0 0.0
  %104 = vmatpush.msra.mxu0 0.0
  %105 = vmatpush.msra.mxu0 0.0
  %106 = vmatpush.msra.mxu0 0.0
  %107 = vmatpush.msra.mxu0 0.0
  %108 = vmatpush.msra.mxu0 0.0
  %109 = vmatpush.msra.mxu0 0.0
  %110 = vmatpush.msra.mxu0 0.0
  %111 = vmatpush.msra.mxu0 0.0
  %112 = vmatpush.msra.mxu0 0.0
  %113 = vmatpush.msra.mxu0 0.0
  %114 = vmatpush.msra.mxu0 %v48
  %115 = vmatpush.msra.mxu0 %v47
  %116 = vmatpush.msra.mxu0 %v46
  %117 = vmatpush.msra.mxu0 %v45
  %118 = vmatmul.f32.gmra.mxu0 %v55
  %v119 = vpop.f32.mrf.mxu0
  %v120 = vadd.f32 %v51, %v119
  %121 = vmatmul.f32.gmra.mxu0 %v58
  %v122 = vpop.f32.mrf.mxu0
  %v123 = vadd.f32 %v51, %v122
  %124 = vmatmul.f32.gmra.mxu0 %v61
  %v125 = vpop.f32.mrf.mxu0
  %v126 = vadd.f32 %v51, %v125
  %127 = vmatmul.f32.gmra.mxu0 %v64
  %v128 = vpop.f32.mrf.mxu0
  %v129 = vadd.f32 %v51, %v128
  %130 = vmatmul.f32.gmra.mxu0 %v67
  %v131 = vpop.f32.mrf.mxu0
  %v132 = vadd.f32 %v51, %v131
  %133 = vmatmul.f32.gmra.mxu0 %v70
  %v134 = vpop.f32.mrf.mxu0
  %v135 = vadd.f32 %v51, %v134
  %136 = vmatmul.f32.gmra.mxu0 %v73
  %v137 = vpop.f32.mrf.mxu0
  %v138 = vadd.f32 %v51, %v137
  %139 = vmatmul.f32.gmra.mxu0 %v76
  %v140 = vpop.f32.mrf.mxu0
  %v141 = vadd.f32 %v51, %v140
  %142 = vmatmul.f32.gmra.mxu0 %v79
  %v143 = vpop.f32.mrf.mxu0
  %v144 = vadd.f32 %v51, %v143
  %145 = vmatmul.f32.gmra.mxu0 %v82
  %v146 = vpop.f32.mrf.mxu0
  %v147 = vadd.f32 %v51, %v146
  %148 = vmatmul.f32.gmra.mxu0 %v85
  %v149 = vpop.f32.mrf.mxu0
  %v150 = vadd.f32 %v51, %v149
  %151 = vmatmul.f32.gmra.mxu0 %v88
  %v152 = vpop.f32.mrf.mxu0
  %v153 = vadd.f32 %v51, %v152
  %154 = vmatmul.f32.gmra.mxu0 %v91
  %v155 = vpop.f32.mrf.mxu0
  %v156 = vadd.f32 %v51, %v155
  %157 = vmatmul.f32.gmra.mxu0 %v94
  %v158 = vpop.f32.mrf.mxu0
  %v159 = vadd.f32 %v51, %v158
  %160 = vmatmul.f32.gmra.mxu0 %v97
  %v161 = vpop.f32.mrf.mxu0
  %v162 = vadd.f32 %v51, %v161
  %163 = vmatmul.f32.gmra.mxu0 %v100
  %v164 = vpop.f32.mrf.mxu0
  %v165 = vadd.f32 %v51, %v164
  %166 = vdwg.mxu0
  %v167 = vld [vmem:[%s1] sm:$0xff]
  %v168 = vld [vmem:[%s1 + $0x8] sm:$0xff]
  %v169 = vld [vmem:[%s1 + $0x10] sm:$0xff]
  %v170 = vld [vmem:[%s1 + $0x18] sm:$0xff]
  %v171 = vld [vmem:[%s3] sm:$0xff]
  %v172 = vld [vmem:[%s3 + $0x8] sm:$0xff]
  %v173 = vld [vmem:[%s3 + $0x10] sm:$0xff]
  %v174 = vld [vmem:[%s3 + $0x18] sm:$0xff]
  %v175 = vld [vmem:[%s6] sm:$0x1]
  %v177 = vperm.slane %v175, 0
  %v180 = vsel %vm53, %v167, 0
  %v183 = vsel %vm53, %v168, 0
  %v186 = vsel %vm53, %v169, 0
  %v189 = vsel %vm53, %v170, 0
  %191 = vmatpush.msra.mxu0 0.0
  %192 = vmatpush.msra.mxu0 0.0
  %193 = vmatpush.msra.mxu0 0.0
  %194 = vmatpush.msra.mxu0 0.0
  %195 = vmatpush.msra.mxu0 0.0
  %196 = vmatpush.msra.mxu0 0.0
  %197 = vmatpush.msra.mxu0 0.0
  %198 = vmatpush.msra.mxu0 0.0
  %199 = vmatpush.msra.mxu0 0.0
  %200 = vmatpush.msra.mxu0 0.0
  %201 = vmatpush.msra.mxu0 0.0
  %202 = vmatpush.msra.mxu0 0.0
  %203 = vmatpush.msra.mxu0 %v174
  %204 = vmatpush.msra.mxu0 %v173
  %205 = vmatpush.msra.mxu0 %v172
  %206 = vmatpush.msra.mxu0 %v171
  %207 = vmatmul.f32.gmra.mxu0 %v180
  %v208 = vpop.f32.mrf.mxu0
  %v209 = vadd.f32 %v177, %v208
  %210 = vmatmul.f32.gmra.mxu0 %v183
  %v211 = vpop.f32.mrf.mxu0
  %v212 = vadd.f32 %v177, %v211
  %213 = vmatmul.f32.gmra.mxu0 %v186
  %v214 = vpop.f32.mrf.mxu0
  %v215 = vadd.f32 %v177, %v214
  %216 = vmatmul.f32.gmra.mxu0 %v189
  %v217 = vpop.f32.mrf.mxu0
  %v218 = vadd.f32 %v177, %v217
  %219 = vdwg.mxu0
  %v220 = vld [vmem:[%s4] sm:$0xff]
  %v221 = vld [vmem:[%s4 + $0x8] sm:$0xff]
  %v222 = vld [vmem:[%s4 + $0x10] sm:$0xff]
  %v223 = vld [vmem:[%s4 + $0x18] sm:$0xff]
  %v224 = vld [vmem:[%s7] sm:$0x1]
  %vm225 = vcmask 64512
  %v227 = vsel %vm225, %v120, 0
  %v230 = vsel %vm225, %v123, 0
  %v233 = vsel %vm225, %v126, 0
  %v236 = vsel %vm225, %v129, 0
  %v239 = vsel %vm225, %v132, 0
  %v242 = vsel %vm225, %v135, 0
  %v245 = vsel %vm225, %v138, 0
  %v248 = vsel %vm225, %v141, 0
  %v251 = vsel %vm225, %v209, 0
  %v254 = vsel %vm225, %v212, 0
  %256 = vmatpush.xpose.msra.mxu0 0.0
  %257 = vmatpush.xpose.msra.mxu0 0.0
  %258 = vmatpush.xpose.msra.mxu0 0.0
  %259 = vmatpush.xpose.msra.mxu0 0.0
  %260 = vmatpush.xpose.msra.mxu0 0.0
  %261 = vmatpush.xpose.msra.mxu0 0.0
  %262 = vmatpush.xpose.msra.mxu0 0.0
  %263 = vmatpush.xpose.msra.mxu0 0.0
  %264 = vmatpush.xpose.msra.mxu0 0.0
  %265 = vmatpush.xpose.msra.mxu0 0.0
  %266 = vmatpush.xpose.msra.mxu0 0.0
  %267 = vmatpush.xpose.msra.mxu0 0.0
  %268 = vmatpush.xpose.msra.mxu0 0.0
  %269 = vmatpush.xpose.msra.mxu0 0.0
  %270 = vmatpush.xpose.msra.mxu0 %v254
  %271 = vmatpush.xpose.msra.mxu0 %v251
  %272 = vmatmul.f32.gmra.mxu0 %v227
  %v273 = vpop.f32.mrf.mxu0
  %v274 = vadd.f32 0.0, %v273
  %275 = vmatmul.f32.gmra.mxu0 %v230
  %v276 = vpop.f32.mrf.mxu0
  %v277 = vadd.f32 0.0, %v276
  %278 = vmatmul.f32.gmra.mxu0 %v233
  %v279 = vpop.f32.mrf.mxu0
  %v280 = vadd.f32 0.0, %v279
  %281 = vmatmul.f32.gmra.mxu0 %v236
  %v282 = vpop.f32.mrf.mxu0
  %v283 = vadd.f32 0.0, %v282
  %284 = vmatmul.f32.gmra.mxu0 %v239
  %v285 = vpop.f32.mrf.mxu0
  %v286 = vadd.f32 0.0, %v285
  %287 = vmatmul.f32.gmra.mxu0 %v242
  %v288 = vpop.f32.mrf.mxu0
  %v289 = vadd.f32 0.0, %v288
  %290 = vmatmul.f32.gmra.mxu0 %v245
  %v291 = vpop.f32.mrf.mxu0
  %v292 = vadd.f32 0.0, %v291
  %293 = vmatmul.f32.gmra.mxu0 %v248
  %v294 = vpop.f32.mrf.mxu0
  %v295 = vadd.f32 0.0, %v294
  %296 = vdwg.mxu0
  %vm297 = vcmask 130048
  %v298 = vsel %vm297, %v274, -inf
  %299 = vmax.xlane.f32.xlu0 %v298
  %v300 = vpop.xlane.xlu0 %299
  %v301 = vsel %vm297, %v277, -inf
  %302 = vmax.xlane.f32.xlu0 %v301
  %v303 = vpop.xlane.xlu0 %302
  %v304 = vsel %vm297, %v280, -inf
  %305 = vmax.xlane.f32.xlu0 %v304
  %v306 = vpop.xlane.xlu0 %305
  %v307 = vsel %vm297, %v283, -inf
  %308 = vmax.xlane.f32.xlu0 %v307
  %v309 = vpop.xlane.xlu0 %308
  %v310 = vsel %vm297, %v286, -inf
  %311 = vmax.xlane.f32.xlu0 %v310
  %v312 = vpop.xlane.xlu0 %311
  %v313 = vsel %vm297, %v289, -inf
  %314 = vmax.xlane.f32.xlu0 %v313
  %v315 = vpop.xlane.xlu0 %314
  %v316 = vsel %vm297, %v292, -inf
  %317 = vmax.xlane.f32.xlu0 %v316
  %v318 = vpop.xlane.xlu0 %317
  %v319 = vsel %vm297, %v295, -inf
  %320 = vmax.xlane.f32.xlu0 %v319
  %v321 = vpop.xlane.xlu0 %320
  %v322 = vsub.f32 %v274, %v300
  %v323 = vsub.f32 %v277, %v303
  %v324 = vsub.f32 %v280, %v306
  %v325 = vsub.f32 %v283, %v309
  %v326 = vsub.f32 %v286, %v312
  %v327 = vsub.f32 %v289, %v315
  %v328 = vsub.f32 %v292, %v318
  %v329 = vsub.f32 %v295, %v321
  %v330 = vmul.f32 %v322, 1.442695
  %v331 = vpow.pop %v330
  %v332 = vmul.f32 %v323, 1.442695
  %v333 = vpow.pop %v332
  %v334 = vmul.f32 %v324, 1.442695
  %v335 = vpow.pop %v334
  %v336 = vmul.f32 %v325, 1.442695
  %v337 = vpow.pop %v336
  %v338 = vmul.f32 %v326, 1.442695
  %v339 = vpow.pop %v338
  %v340 = vmul.f32 %v327, 1.442695
  %v341 = vpow.pop %v340
  %v342 = vmul.f32 %v328, 1.442695
  %v343 = vpow.pop %v342
  %v344 = vmul.f32 %v329, 1.442695
  %v345 = vpow.pop %v344
  %v346 = vsel %vm297, %v331, 0.0
  %347 = vadd.xlane.f32.xlu0 %v346
  %v348 = vpop.xlane.xlu0 %347
  %v349 = vsel %vm297, %v333, 0.0
  %350 = vadd.xlane.f32.xlu0 %v349
  %v351 = vpop.xlane.xlu0 %350
  %v352 = vsel %vm297, %v335, 0.0
  %353 = vadd.xlane.f32.xlu0 %v352
  %v354 = vpop.xlane.xlu0 %353
  %v355 = vsel %vm297, %v337, 0.0
  %356 = vadd.xlane.f32.xlu0 %v355
  %v357 = vpop.xlane.xlu0 %356
  %v358 = vsel %vm297, %v339, 0.0
  %359 = vadd.xlane.f32.xlu0 %v358
  %v360 = vpop.xlane.xlu0 %359
  %v361 = vsel %vm297, %v341, 0.0
  %362 = vadd.xlane.f32.xlu0 %v361
  %v363 = vpop.xlane.xlu0 %362
  %v364 = vsel %vm297, %v343, 0.0
  %365 = vadd.xlane.f32.xlu0 %v364
  %v366 = vpop.xlane.xlu0 %365
  %v367 = vsel %vm297, %v345, 0.0
  %368 = vadd.xlane.f32.xlu0 %v367
  %v369 = vpop.xlane.xlu0 %368
  %370 = vrot.lane.b32.xlu0 %v209, 96
  %v371 = vpop.permute.xlu0 %370
  %372 = vrot.lane.b32.xlu0 %v212, 96
  %v373 = vpop.permute.xlu0 %372
  %v377 = vsel %vm297, %v331, 0
  %v380 = vsel %vm297, %v333, 0
  %v383 = vsel %vm297, %v335, 0
  %v386 = vsel %vm297, %v337, 0
  %v389 = vsel %vm297, %v339, 0
  %v392 = vsel %vm297, %v341, 0
  %v395 = vsel %vm297, %v343, 0
  %v398 = vsel %vm297, %v345, 0
  %400 = vmatpush.msra.mxu0 0.0
  %401 = vmatpush.msra.mxu0 0.0
  %402 = vmatpush.msra.mxu0 0.0
  %403 = vmatpush.msra.mxu0 0.0
  %404 = vmatpush.msra.mxu0 0.0
  %405 = vmatpush.msra.mxu0 0.0
  %406 = vmatpush.msra.mxu0 0.0
  %407 = vmatpush.msra.mxu0 0.0
  %408 = vmatpush.msra.mxu0 0.0
  %409 = vmatpush.msra.mxu0 0.0
  %410 = vmatpush.msra.mxu0 0.0
  %411 = vmatpush.msra.mxu0 0.0
  %412 = vmatpush.msra.mxu0 0.0
  %413 = vmatpush.msra.mxu0 0.0
  %414 = vmatpush.msra.mxu0 %v373
  %415 = vmatpush.msra.mxu0 %v371
  %416 = vmatmul.f32.gmra.mxu0 %v377
  %v417 = vpop.f32.mrf.mxu0
  %v418 = vadd.f32 0.0, %v417
  %419 = vmatmul.f32.gmra.mxu0 %v380
  %v420 = vpop.f32.mrf.mxu0
  %v421 = vadd.f32 0.0, %v420
  %422 = vmatmul.f32.gmra.mxu0 %v383
  %v423 = vpop.f32.mrf.mxu0
  %v424 = vadd.f32 0.0, %v423
  %425 = vmatmul.f32.gmra.mxu0 %v386
  %v426 = vpop.f32.mrf.mxu0
  %v427 = vadd.f32 0.0, %v426
  %428 = vmatmul.f32.gmra.mxu0 %v389
  %v429 = vpop.f32.mrf.mxu0
  %v430 = vadd.f32 0.0, %v429
  %431 = vmatmul.f32.gmra.mxu0 %v392
  %v432 = vpop.f32.mrf.mxu0
  %v433 = vadd.f32 0.0, %v432
  %434 = vmatmul.f32.gmra.mxu0 %v395
  %v435 = vpop.f32.mrf.mxu0
  %v436 = vadd.f32 0.0, %v435
  %437 = vmatmul.f32.gmra.mxu0 %v398
  %v438 = vpop.f32.mrf.mxu0
  %v439 = vadd.f32 0.0, %v438
  %440 = vdwg.mxu0
  %v441 = vrcp.pop %v348
  %v442 = vmul.f32 %v348, %v441
  %v443 = vsub.f32 1.0, %v442
  %v444 = vmul.f32 %v441, %v443
  %v445 = vadd.f32 %v441, %v444
  %vm446 = vweird.f32 %v348
  %vm447 = vweird.f32 %v441
  %vm448 = vmor %vm446, %vm447
  %v449 = vsel %vm448, %v441, %v445
  %v450 = vand.u32 2147483647, %v348
  %vm451 = vcmp.eq.f32.partialorder %v450, 8.507059e+37
  %v452 = vand.u32 %v348, 2147483648
  %v453 = vor.u32 1.1754944e-38, %v452
  %v454 = vsel %vm451, %v453, %v449
  %v455 = vrcp.pop %v351
  %v456 = vmul.f32 %v351, %v455
  %v457 = vsub.f32 1.0, %v456
  %v458 = vmul.f32 %v455, %v457
  %v459 = vadd.f32 %v455, %v458
  %vm460 = vweird.f32 %v351
  %vm461 = vweird.f32 %v455
  %vm462 = vmor %vm460, %vm461
  %v463 = vsel %vm462, %v455, %v459
  %v464 = vand.u32 2147483647, %v351
  %vm465 = vcmp.eq.f32.partialorder %v464, 8.507059e+37
  %v466 = vand.u32 %v351, 2147483648
  %v467 = vor.u32 1.1754944e-38, %v466
  %v468 = vsel %vm465, %v467, %v463
  %v469 = vrcp.pop %v354
  %v470 = vmul.f32 %v354, %v469
  %v471 = vsub.f32 1.0, %v470
  %v472 = vmul.f32 %v469, %v471
  %v473 = vadd.f32 %v469, %v472
  %vm474 = vweird.f32 %v354
  %vm475 = vweird.f32 %v469
  %vm476 = vmor %vm474, %vm475
  %v477 = vsel %vm476, %v469, %v473
  %v478 = vand.u32 2147483647, %v354
  %vm479 = vcmp.eq.f32.partialorder %v478, 8.507059e+37
  %v480 = vand.u32 %v354, 2147483648
  %v481 = vor.u32 1.1754944e-38, %v480
  %v482 = vsel %vm479, %v481, %v477
  %v483 = vrcp.pop %v357
  %v484 = vmul.f32 %v357, %v483
  %v485 = vsub.f32 1.0, %v484
  %v486 = vmul.f32 %v483, %v485
  %v487 = vadd.f32 %v483, %v486
  %vm488 = vweird.f32 %v357
  %vm489 = vweird.f32 %v483
  %vm490 = vmor %vm488, %vm489
  %v491 = vsel %vm490, %v483, %v487
  %v492 = vand.u32 2147483647, %v357
  %vm493 = vcmp.eq.f32.partialorder %v492, 8.507059e+37
  %v494 = vand.u32 %v357, 2147483648
  %v495 = vor.u32 1.1754944e-38, %v494
  %v496 = vsel %vm493, %v495, %v491
  %v497 = vrcp.pop %v360
  %v498 = vmul.f32 %v360, %v497
  %v499 = vsub.f32 1.0, %v498
  %v500 = vmul.f32 %v497, %v499
  %v501 = vadd.f32 %v497, %v500
  %vm502 = vweird.f32 %v360
  %vm503 = vweird.f32 %v497
  %vm504 = vmor %vm502, %vm503
  %v505 = vsel %vm504, %v497, %v501
  %v506 = vand.u32 2147483647, %v360
  %vm507 = vcmp.eq.f32.partialorder %v506, 8.507059e+37
  %v508 = vand.u32 %v360, 2147483648
  %v509 = vor.u32 1.1754944e-38, %v508
  %v510 = vsel %vm507, %v509, %v505
  %v511 = vrcp.pop %v363
  %v512 = vmul.f32 %v363, %v511
  %v513 = vsub.f32 1.0, %v512
  %v514 = vmul.f32 %v511, %v513
  %v515 = vadd.f32 %v511, %v514
  %vm516 = vweird.f32 %v363
  %vm517 = vweird.f32 %v511
  %vm518 = vmor %vm516, %vm517
  %v519 = vsel %vm518, %v511, %v515
  %v520 = vand.u32 2147483647, %v363
  %vm521 = vcmp.eq.f32.partialorder %v520, 8.507059e+37
  %v522 = vand.u32 %v363, 2147483648
  %v523 = vor.u32 1.1754944e-38, %v522
  %v524 = vsel %vm521, %v523, %v519
  %v525 = vrcp.pop %v366
  %v526 = vmul.f32 %v366, %v525
  %v527 = vsub.f32 1.0, %v526
  %v528 = vmul.f32 %v525, %v527
  %v529 = vadd.f32 %v525, %v528
  %vm530 = vweird.f32 %v366
  %vm531 = vweird.f32 %v525
  %vm532 = vmor %vm530, %vm531
  %v533 = vsel %vm532, %v525, %v529
  %v534 = vand.u32 2147483647, %v366
  %vm535 = vcmp.eq.f32.partialorder %v534, 8.507059e+37
  %v536 = vand.u32 %v366, 2147483648
  %v537 = vor.u32 1.1754944e-38, %v536
  %v538 = vsel %vm535, %v537, %v533
  %v539 = vrcp.pop %v369
  %v540 = vmul.f32 %v369, %v539
  %v541 = vsub.f32 1.0, %v540
  %v542 = vmul.f32 %v539, %v541
  %v543 = vadd.f32 %v539, %v542
  %vm544 = vweird.f32 %v369
  %vm545 = vweird.f32 %v539
  %vm546 = vmor %vm544, %vm545
  %v547 = vsel %vm546, %v539, %v543
  %v548 = vand.u32 2147483647, %v369
  %vm549 = vcmp.eq.f32.partialorder %v548, 8.507059e+37
  %v550 = vand.u32 %v369, 2147483648
  %v551 = vor.u32 1.1754944e-38, %v550
  %v552 = vsel %vm549, %v551, %v547
  %v553 = vmul.f32 %v418, %v454
  %v554 = vmul.f32 %v421, %v468
  %v555 = vmul.f32 %v424, %v482
  %v556 = vmul.f32 %v427, %v496
  %v557 = vmul.f32 %v430, %v510
  %v558 = vmul.f32 %v433, %v524
  %v559 = vmul.f32 %v436, %v538
  %v560 = vmul.f32 %v439, %v552
  %561 = vrot.lane.b32.xlu0 %v120, 120
  %v562 = vpop.permute.xlu0 %561
  %563 = vrot.lane.b32.xlu0 %v123, 120
  %v564 = vpop.permute.xlu0 %563
  %565 = vrot.lane.b32.xlu0 %v126, 120
  %v566 = vpop.permute.xlu0 %565
  %567 = vrot.lane.b32.xlu0 %v129, 120
  %v568 = vpop.permute.xlu0 %567
  %569 = vrot.lane.b32.xlu0 %v132, 120
  %v570 = vpop.permute.xlu0 %569
  %571 = vrot.lane.b32.xlu0 %v135, 120
  %v572 = vpop.permute.xlu0 %571
  %573 = vrot.lane.b32.xlu0 %v138, 120
  %v574 = vpop.permute.xlu0 %573
  %575 = vrot.lane.b32.xlu0 %v141, 120
  %v576 = vpop.permute.xlu0 %575
  %577 = vrot.lane.b32.xlu0 %v209, 120
  %v578 = vpop.permute.xlu0 %577
  %579 = vrot.lane.b32.xlu0 %v212, 120
  %v580 = vpop.permute.xlu0 %579
  %v581 = vsel %vm225, %v562, 0
  %v583 = vsel %vm225, %v564, 0
  %v585 = vsel %vm225, %v566, 0
  %v587 = vsel %vm225, %v568, 0
  %v589 = vsel %vm225, %v570, 0
  %v591 = vsel %vm225, %v572, 0
  %v593 = vsel %vm225, %v574, 0
  %v595 = vsel %vm225, %v576, 0
  %v597 = vsel %vm225, %v578, 0
  %v599 = vsel %vm225, %v580, 0
  %601 = vmatpush.xpose.msra.mxu0 0.0
  %602 = vmatpush.xpose.msra.mxu0 0.0
  %603 = vmatpush.xpose.msra.mxu0 0.0
  %604 = vmatpush.xpose.msra.mxu0 0.0
  %605 = vmatpush.xpose.msra.mxu0 0.0
  %606 = vmatpush.xpose.msra.mxu0 0.0
  %607 = vmatpush.xpose.msra.mxu0 0.0
  %608 = vmatpush.xpose.msra.mxu0 0.0
  %609 = vmatpush.xpose.msra.mxu0 0.0
  %610 = vmatpush.xpose.msra.mxu0 0.0
  %611 = vmatpush.xpose.msra.mxu0 0.0
  %612 = vmatpush.xpose.msra.mxu0 0.0
  %613 = vmatpush.xpose.msra.mxu0 0.0
  %614 = vmatpush.xpose.msra.mxu0 0.0
  %615 = vmatpush.xpose.msra.mxu0 %v599
  %616 = vmatpush.xpose.msra.mxu0 %v597
  %617 = vmatmul.f32.gmra.mxu0 %v581
  %v618 = vpop.f32.mrf.mxu0
  %v619 = vadd.f32 0.0, %v618
  %620 = vmatmul.f32.gmra.mxu0 %v583
  %v621 = vpop.f32.mrf.mxu0
  %v622 = vadd.f32 0.0, %v621
  %623 = vmatmul.f32.gmra.mxu0 %v585
  %v624 = vpop.f32.mrf.mxu0
  %v625 = vadd.f32 0.0, %v624
  %626 = vmatmul.f32.gmra.mxu0 %v587
  %v627 = vpop.f32.mrf.mxu0
  %v628 = vadd.f32 0.0, %v627
  %629 = vmatmul.f32.gmra.mxu0 %v589
  %v630 = vpop.f32.mrf.mxu0
  %v631 = vadd.f32 0.0, %v630
  %632 = vmatmul.f32.gmra.mxu0 %v591
  %v633 = vpop.f32.mrf.mxu0
  %v634 = vadd.f32 0.0, %v633
  %635 = vmatmul.f32.gmra.mxu0 %v593
  %v636 = vpop.f32.mrf.mxu0
  %v637 = vadd.f32 0.0, %v636
  %638 = vmatmul.f32.gmra.mxu0 %v595
  %v639 = vpop.f32.mrf.mxu0
  %v640 = vadd.f32 0.0, %v639
  %641 = vdwg.mxu0
  %v642 = vsel %vm297, %v619, -inf
  %643 = vmax.xlane.f32.xlu0 %v642
  %v644 = vpop.xlane.xlu0 %643
  %v645 = vsel %vm297, %v622, -inf
  %646 = vmax.xlane.f32.xlu0 %v645
  %v647 = vpop.xlane.xlu0 %646
  %v648 = vsel %vm297, %v625, -inf
  %649 = vmax.xlane.f32.xlu0 %v648
  %v650 = vpop.xlane.xlu0 %649
  %v651 = vsel %vm297, %v628, -inf
  %652 = vmax.xlane.f32.xlu0 %v651
  %v653 = vpop.xlane.xlu0 %652
  %v654 = vsel %vm297, %v631, -inf
  %655 = vmax.xlane.f32.xlu0 %v654
  %v656 = vpop.xlane.xlu0 %655
  %v657 = vsel %vm297, %v634, -inf
  %658 = vmax.xlane.f32.xlu0 %v657
  %v659 = vpop.xlane.xlu0 %658
  %v660 = vsel %vm297, %v637, -inf
  %661 = vmax.xlane.f32.xlu0 %v660
  %v662 = vpop.xlane.xlu0 %661
  %v663 = vsel %vm297, %v640, -inf
  %664 = vmax.xlane.f32.xlu0 %v663
  %v665 = vpop.xlane.xlu0 %664
  %v666 = vsub.f32 %v619, %v644
  %v667 = vsub.f32 %v622, %v647
  %v668 = vsub.f32 %v625, %v650
  %v669 = vsub.f32 %v628, %v653
  %v670 = vsub.f32 %v631, %v656
  %v671 = vsub.f32 %v634, %v659
  %v672 = vsub.f32 %v637, %v662
  %v673 = vsub.f32 %v640, %v665
  %v674 = vmul.f32 %v666, 1.442695
  %v675 = vpow.pop %v674
  %v676 = vmul.f32 %v667, 1.442695
  %v677 = vpow.pop %v676
  %v678 = vmul.f32 %v668, 1.442695
  %v679 = vpow.pop %v678
  %v680 = vmul.f32 %v669, 1.442695
  %v681 = vpow.pop %v680
  %v682 = vmul.f32 %v670, 1.442695
  %v683 = vpow.pop %v682
  %v684 = vmul.f32 %v671, 1.442695
  %v685 = vpow.pop %v684
  %v686 = vmul.f32 %v672, 1.442695
  %v687 = vpow.pop %v686
  %v688 = vmul.f32 %v673, 1.442695
  %v689 = vpow.pop %v688
  %v690 = vsel %vm297, %v675, 0.0
  %691 = vadd.xlane.f32.xlu0 %v690
  %v692 = vpop.xlane.xlu0 %691
  %v693 = vsel %vm297, %v677, 0.0
  %694 = vadd.xlane.f32.xlu0 %v693
  %v695 = vpop.xlane.xlu0 %694
  %v696 = vsel %vm297, %v679, 0.0
  %697 = vadd.xlane.f32.xlu0 %v696
  %v698 = vpop.xlane.xlu0 %697
  %v699 = vsel %vm297, %v681, 0.0
  %700 = vadd.xlane.f32.xlu0 %v699
  %v701 = vpop.xlane.xlu0 %700
  %v702 = vsel %vm297, %v683, 0.0
  %703 = vadd.xlane.f32.xlu0 %v702
  %v704 = vpop.xlane.xlu0 %703
  %v705 = vsel %vm297, %v685, 0.0
  %706 = vadd.xlane.f32.xlu0 %v705
  %v707 = vpop.xlane.xlu0 %706
  %v708 = vsel %vm297, %v687, 0.0
  %709 = vadd.xlane.f32.xlu0 %v708
  %v710 = vpop.xlane.xlu0 %709
  %v711 = vsel %vm297, %v689, 0.0
  %712 = vadd.xlane.f32.xlu0 %v711
  %v713 = vpop.xlane.xlu0 %712
  %714 = vrot.lane.b32.xlu0 %v209, 88
  %v715 = vpop.permute.xlu0 %714
  %716 = vrot.lane.b32.xlu0 %v212, 88
  %v717 = vpop.permute.xlu0 %716
  %v721 = vsel %vm297, %v675, 0
  %v724 = vsel %vm297, %v677, 0
  %v727 = vsel %vm297, %v679, 0
  %v730 = vsel %vm297, %v681, 0
  %v733 = vsel %vm297, %v683, 0
  %v736 = vsel %vm297, %v685, 0
  %v739 = vsel %vm297, %v687, 0
  %v742 = vsel %vm297, %v689, 0
  %744 = vmatpush.msra.mxu0 0.0
  %745 = vmatpush.msra.mxu0 0.0
  %746 = vmatpush.msra.mxu0 0.0
  %747 = vmatpush.msra.mxu0 0.0
  %748 = vmatpush.msra.mxu0 0.0
  %749 = vmatpush.msra.mxu0 0.0
  %750 = vmatpush.msra.mxu0 0.0
  %751 = vmatpush.msra.mxu0 0.0
  %752 = vmatpush.msra.mxu0 0.0
  %753 = vmatpush.msra.mxu0 0.0
  %754 = vmatpush.msra.mxu0 0.0
  %755 = vmatpush.msra.mxu0 0.0
  %756 = vmatpush.msra.mxu0 0.0
  %757 = vmatpush.msra.mxu0 0.0
  %758 = vmatpush.msra.mxu0 %v717
  %759 = vmatpush.msra.mxu0 %v715
  %760 = vmatmul.f32.gmra.mxu0 %v721
  %v761 = vpop.f32.mrf.mxu0
  %v762 = vadd.f32 0.0, %v761
  %763 = vmatmul.f32.gmra.mxu0 %v724
  %v764 = vpop.f32.mrf.mxu0
  %v765 = vadd.f32 0.0, %v764
  %766 = vmatmul.f32.gmra.mxu0 %v727
  %v767 = vpop.f32.mrf.mxu0
  %v768 = vadd.f32 0.0, %v767
  %769 = vmatmul.f32.gmra.mxu0 %v730
  %v770 = vpop.f32.mrf.mxu0
  %v771 = vadd.f32 0.0, %v770
  %772 = vmatmul.f32.gmra.mxu0 %v733
  %v773 = vpop.f32.mrf.mxu0
  %v774 = vadd.f32 0.0, %v773
  %775 = vmatmul.f32.gmra.mxu0 %v736
  %v776 = vpop.f32.mrf.mxu0
  %v777 = vadd.f32 0.0, %v776
  %778 = vmatmul.f32.gmra.mxu0 %v739
  %v779 = vpop.f32.mrf.mxu0
  %v780 = vadd.f32 0.0, %v779
  %781 = vmatmul.f32.gmra.mxu0 %v742
  %v782 = vpop.f32.mrf.mxu0
  %v783 = vadd.f32 0.0, %v782
  %784 = vdwg.mxu0
  %v785 = vrcp.pop %v692
  %v786 = vmul.f32 %v692, %v785
  %v787 = vsub.f32 1.0, %v786
  %v788 = vmul.f32 %v785, %v787
  %v789 = vadd.f32 %v785, %v788
  %vm790 = vweird.f32 %v692
  %vm791 = vweird.f32 %v785
  %vm792 = vmor %vm790, %vm791
  %v793 = vsel %vm792, %v785, %v789
  %v794 = vand.u32 2147483647, %v692
  %vm795 = vcmp.eq.f32.partialorder %v794, 8.507059e+37
  %v796 = vand.u32 %v692, 2147483648
  %v797 = vor.u32 1.1754944e-38, %v796
  %v798 = vsel %vm795, %v797, %v793
  %v799 = vrcp.pop %v695
  %v800 = vmul.f32 %v695, %v799
  %v801 = vsub.f32 1.0, %v800
  %v802 = vmul.f32 %v799, %v801
  %v803 = vadd.f32 %v799, %v802
  %vm804 = vweird.f32 %v695
  %vm805 = vweird.f32 %v799
  %vm806 = vmor %vm804, %vm805
  %v807 = vsel %vm806, %v799, %v803
  %v808 = vand.u32 2147483647, %v695
  %vm809 = vcmp.eq.f32.partialorder %v808, 8.507059e+37
  %v810 = vand.u32 %v695, 2147483648
  %v811 = vor.u32 1.1754944e-38, %v810
  %v812 = vsel %vm809, %v811, %v807
  %v813 = vrcp.pop %v698
  %v814 = vmul.f32 %v698, %v813
  %v815 = vsub.f32 1.0, %v814
  %v816 = vmul.f32 %v813, %v815
  %v817 = vadd.f32 %v813, %v816
  %vm818 = vweird.f32 %v698
  %vm819 = vweird.f32 %v813
  %vm820 = vmor %vm818, %vm819
  %v821 = vsel %vm820, %v813, %v817
  %v822 = vand.u32 2147483647, %v698
  %vm823 = vcmp.eq.f32.partialorder %v822, 8.507059e+37
  %v824 = vand.u32 %v698, 2147483648
  %v825 = vor.u32 1.1754944e-38, %v824
  %v826 = vsel %vm823, %v825, %v821
  %v827 = vrcp.pop %v701
  %v828 = vmul.f32 %v701, %v827
  %v829 = vsub.f32 1.0, %v828
  %v830 = vmul.f32 %v827, %v829
  %v831 = vadd.f32 %v827, %v830
  %vm832 = vweird.f32 %v701
  %vm833 = vweird.f32 %v827
  %vm834 = vmor %vm832, %vm833
  %v835 = vsel %vm834, %v827, %v831
  %v836 = vand.u32 2147483647, %v701
  %vm837 = vcmp.eq.f32.partialorder %v836, 8.507059e+37
  %v838 = vand.u32 %v701, 2147483648
  %v839 = vor.u32 1.1754944e-38, %v838
  %v840 = vsel %vm837, %v839, %v835
  %v841 = vrcp.pop %v704
  %v842 = vmul.f32 %v704, %v841
  %v843 = vsub.f32 1.0, %v842
  %v844 = vmul.f32 %v841, %v843
  %v845 = vadd.f32 %v841, %v844
  %vm846 = vweird.f32 %v704
  %vm847 = vweird.f32 %v841
  %vm848 = vmor %vm846, %vm847
  %v849 = vsel %vm848, %v841, %v845
  %v850 = vand.u32 2147483647, %v704
  %vm851 = vcmp.eq.f32.partialorder %v850, 8.507059e+37
  %v852 = vand.u32 %v704, 2147483648
  %v853 = vor.u32 1.1754944e-38, %v852
  %v854 = vsel %vm851, %v853, %v849
  %v855 = vrcp.pop %v707
  %v856 = vmul.f32 %v707, %v855
  %v857 = vsub.f32 1.0, %v856
  %v858 = vmul.f32 %v855, %v857
  %v859 = vadd.f32 %v855, %v858
  %vm860 = vweird.f32 %v707
  %vm861 = vweird.f32 %v855
  %vm862 = vmor %vm860, %vm861
  %v863 = vsel %vm862, %v855, %v859
  %v864 = vand.u32 2147483647, %v707
  %vm865 = vcmp.eq.f32.partialorder %v864, 8.507059e+37
  %v866 = vand.u32 %v707, 2147483648
  %v867 = vor.u32 1.1754944e-38, %v866
  %v868 = vsel %vm865, %v867, %v863
  %v869 = vrcp.pop %v710
  %v870 = vmul.f32 %v710, %v869
  %v871 = vsub.f32 1.0, %v870
  %v872 = vmul.f32 %v869, %v871
  %v873 = vadd.f32 %v869, %v872
  %vm874 = vweird.f32 %v710
  %vm875 = vweird.f32 %v869
  %vm876 = vmor %vm874, %vm875
  %v877 = vsel %vm876, %v869, %v873
  %v878 = vand.u32 2147483647, %v710
  %vm879 = vcmp.eq.f32.partialorder %v878, 8.507059e+37
  %v880 = vand.u32 %v710, 2147483648
  %v881 = vor.u32 1.1754944e-38, %v880
  %v882 = vsel %vm879, %v881, %v877
  %v883 = vrcp.pop %v713
  %v884 = vmul.f32 %v713, %v883
  %v885 = vsub.f32 1.0, %v884
  %v886 = vmul.f32 %v883, %v885
  %v887 = vadd.f32 %v883, %v886
  %vm888 = vweird.f32 %v713
  %vm889 = vweird.f32 %v883
  %vm890 = vmor %vm888, %vm889
  %v891 = vsel %vm890, %v883, %v887
  %v892 = vand.u32 2147483647, %v713
  %vm893 = vcmp.eq.f32.partialorder %v892, 8.507059e+37
  %v894 = vand.u32 %v713, 2147483648
  %v895 = vor.u32 1.1754944e-38, %v894
  %v896 = vsel %vm893, %v895, %v891
  %v897 = vmul.f32 %v762, %v798
  %v898 = vmul.f32 %v765, %v812
  %v899 = vmul.f32 %v768, %v826
  %v900 = vmul.f32 %v771, %v840
  %v901 = vmul.f32 %v774, %v854
  %v902 = vmul.f32 %v777, %v868
  %v903 = vmul.f32 %v780, %v882
  %v904 = vmul.f32 %v783, %v896
  %v906 = vsel %vm225, %v897, 0
  %v909 = vsel %vm225, %v898, 0
  %v912 = vsel %vm225, %v899, 0
  %v915 = vsel %vm225, %v900, 0
  %v918 = vsel %vm225, %v901, 0
  %v921 = vsel %vm225, %v902, 0
  %v924 = vsel %vm225, %v903, 0
  %v927 = vsel %vm225, %v904, 0
  %929 = vmatpush.msra.mxu0 0.0
  %930 = vmatpush.msra.mxu0 0.0
  %931 = vmatpush.msra.mxu0 0.0
  %932 = vmatpush.msra.mxu0 0.0
  %933 = vmatpush.msra.mxu0 0.0
  %934 = vmatpush.msra.mxu0 0.0
  %935 = vmatpush.msra.mxu0 0.0
  %936 = vmatpush.msra.mxu0 0.0
  %937 = vmatpush.msra.mxu0 0.0
  %938 = vmatpush.msra.mxu0 0.0
  %939 = vmatpush.msra.mxu0 0.0
  %940 = vmatpush.msra.mxu0 0.0
  %941 = vmatpush.msra.mxu0 0.0
  %942 = vmatpush.msra.mxu0 0.0
  %943 = vmatpush.msra.mxu0 0.0
  %944 = vmatpush.msra.mxu0 %v221
  %945 = vmatmul.f32.gmra.mxu0 %v906
  %v946 = vpop.f32.mrf.mxu0
  %v947 = vadd.f32 0.0, %v946
  %948 = vmatmul.f32.gmra.mxu0 %v909
  %v949 = vpop.f32.mrf.mxu0
  %v950 = vadd.f32 0.0, %v949
  %951 = vmatmul.f32.gmra.mxu0 %v912
  %v952 = vpop.f32.mrf.mxu0
  %v953 = vadd.f32 0.0, %v952
  %954 = vmatmul.f32.gmra.mxu0 %v915
  %v955 = vpop.f32.mrf.mxu0
  %v956 = vadd.f32 0.0, %v955
  %957 = vmatmul.f32.gmra.mxu0 %v918
  %v958 = vpop.f32.mrf.mxu0
  %v959 = vadd.f32 0.0, %v958
  %960 = vmatmul.f32.gmra.mxu0 %v921
  %v961 = vpop.f32.mrf.mxu0
  %v962 = vadd.f32 0.0, %v961
  %963 = vmatmul.f32.gmra.mxu0 %v924
  %v964 = vpop.f32.mrf.mxu0
  %v965 = vadd.f32 0.0, %v964
  %966 = vmatmul.f32.gmra.mxu0 %v927
  %v967 = vpop.f32.mrf.mxu0
  %v968 = vadd.f32 0.0, %v967
  %969 = vdwg.mxu0
  %v971 = vsel %vm225, %v553, 0
  %v974 = vsel %vm225, %v554, 0
  %v977 = vsel %vm225, %v555, 0
  %v980 = vsel %vm225, %v556, 0
  %v983 = vsel %vm225, %v557, 0
  %v986 = vsel %vm225, %v558, 0
  %v989 = vsel %vm225, %v559, 0
  %v992 = vsel %vm225, %v560, 0
  %994 = vmatpush.msra.mxu0 0.0
  %995 = vmatpush.msra.mxu0 0.0
  %996 = vmatpush.msra.mxu0 0.0
  %997 = vmatpush.msra.mxu0 0.0
  %998 = vmatpush.msra.mxu0 0.0
  %999 = vmatpush.msra.mxu0 0.0
  %1000 = vmatpush.msra.mxu0 0.0
  %1001 = vmatpush.msra.mxu0 0.0
  %1002 = vmatpush.msra.mxu0 0.0
  %1003 = vmatpush.msra.mxu0 0.0
  %1004 = vmatpush.msra.mxu0 0.0
  %1005 = vmatpush.msra.mxu0 0.0
  %1006 = vmatpush.msra.mxu0 0.0
  %1007 = vmatpush.msra.mxu0 0.0
  %1008 = vmatpush.msra.mxu0 0.0
  %1009 = vmatpush.msra.mxu0 %v220
  %1010 = vmatmul.f32.gmra.mxu0 %v971
  %v1011 = vpop.f32.mrf.mxu0
  %v1012 = vadd.f32 %v947, %v1011
  %1013 = vmatmul.f32.gmra.mxu0 %v974
  %v1014 = vpop.f32.mrf.mxu0
  %v1015 = vadd.f32 %v950, %v1014
  %1016 = vmatmul.f32.gmra.mxu0 %v977
  %v1017 = vpop.f32.mrf.mxu0
  %v1018 = vadd.f32 %v953, %v1017
  %1019 = vmatmul.f32.gmra.mxu0 %v980
  %v1020 = vpop.f32.mrf.mxu0
  %v1021 = vadd.f32 %v956, %v1020
  %1022 = vmatmul.f32.gmra.mxu0 %v983
  %v1023 = vpop.f32.mrf.mxu0
  %v1024 = vadd.f32 %v959, %v1023
  %1025 = vmatmul.f32.gmra.mxu0 %v986
  %v1026 = vpop.f32.mrf.mxu0
  %v1027 = vadd.f32 %v962, %v1026
  %1028 = vmatmul.f32.gmra.mxu0 %v989
  %v1029 = vpop.f32.mrf.mxu0
  %v1030 = vadd.f32 %v965, %v1029
  %1031 = vmatmul.f32.gmra.mxu0 %v992
  %v1032 = vpop.f32.mrf.mxu0
  %v1033 = vadd.f32 %v968, %v1032
  %1034 = vdwg.mxu0
  %1035 = vrot.lane.b32.xlu0 %v120, 112
  %v1036 = vpop.permute.xlu0 %1035
  %1037 = vrot.lane.b32.xlu0 %v123, 112
  %v1038 = vpop.permute.xlu0 %1037
  %1039 = vrot.lane.b32.xlu0 %v126, 112
  %v1040 = vpop.permute.xlu0 %1039
  %1041 = vrot.lane.b32.xlu0 %v129, 112
  %v1042 = vpop.permute.xlu0 %1041
  %1043 = vrot.lane.b32.xlu0 %v132, 112
  %v1044 = vpop.permute.xlu0 %1043
  %1045 = vrot.lane.b32.xlu0 %v135, 112
  %v1046 = vpop.permute.xlu0 %1045
  %1047 = vrot.lane.b32.xlu0 %v138, 112
  %v1048 = vpop.permute.xlu0 %1047
  %1049 = vrot.lane.b32.xlu0 %v141, 112
  %v1050 = vpop.permute.xlu0 %1049
  %1051 = vrot.lane.b32.xlu0 %v209, 112
  %v1052 = vpop.permute.xlu0 %1051
  %1053 = vrot.lane.b32.xlu0 %v212, 112
  %v1054 = vpop.permute.xlu0 %1053
  %v1055 = vsel %vm225, %v1036, 0
  %v1057 = vsel %vm225, %v1038, 0
  %v1059 = vsel %vm225, %v1040, 0
  %v1061 = vsel %vm225, %v1042, 0
  %v1063 = vsel %vm225, %v1044, 0
  %v1065 = vsel %vm225, %v1046, 0
  %v1067 = vsel %vm225, %v1048, 0
  %v1069 = vsel %vm225, %v1050, 0
  %v1071 = vsel %vm225, %v1052, 0
  %v1073 = vsel %vm225, %v1054, 0
  %1075 = vmatpush.xpose.msra.mxu0 0.0
  %1076 = vmatpush.xpose.msra.mxu0 0.0
  %1077 = vmatpush.xpose.msra.mxu0 0.0
  %1078 = vmatpush.xpose.msra.mxu0 0.0
  %1079 = vmatpush.xpose.msra.mxu0 0.0
  %1080 = vmatpush.xpose.msra.mxu0 0.0
  %1081 = vmatpush.xpose.msra.mxu0 0.0
  %1082 = vmatpush.xpose.msra.mxu0 0.0
  %1083 = vmatpush.xpose.msra.mxu0 0.0
  %1084 = vmatpush.xpose.msra.mxu0 0.0
  %1085 = vmatpush.xpose.msra.mxu0 0.0
  %1086 = vmatpush.xpose.msra.mxu0 0.0
  %1087 = vmatpush.xpose.msra.mxu0 0.0
  %1088 = vmatpush.xpose.msra.mxu0 0.0
  %1089 = vmatpush.xpose.msra.mxu0 %v1073
  %1090 = vmatpush.xpose.msra.mxu0 %v1071
  %1091 = vmatmul.f32.gmra.mxu0 %v1055
  %v1092 = vpop.f32.mrf.mxu0
  %v1093 = vadd.f32 0.0, %v1092
  %1094 = vmatmul.f32.gmra.mxu0 %v1057
  %v1095 = vpop.f32.mrf.mxu0
  %v1096 = vadd.f32 0.0, %v1095
  %1097 = vmatmul.f32.gmra.mxu0 %v1059
  %v1098 = vpop.f32.mrf.mxu0
  %v1099 = vadd.f32 0.0, %v1098
  %1100 = vmatmul.f32.gmra.mxu0 %v1061
  %v1101 = vpop.f32.mrf.mxu0
  %v1102 = vadd.f32 0.0, %v1101
  %1103 = vmatmul.f32.gmra.mxu0 %v1063
  %v1104 = vpop.f32.mrf.mxu0
  %v1105 = vadd.f32 0.0, %v1104
  %1106 = vmatmul.f32.gmra.mxu0 %v1065
  %v1107 = vpop.f32.mrf.mxu0
  %v1108 = vadd.f32 0.0, %v1107
  %1109 = vmatmul.f32.gmra.mxu0 %v1067
  %v1110 = vpop.f32.mrf.mxu0
  %v1111 = vadd.f32 0.0, %v1110
  %1112 = vmatmul.f32.gmra.mxu0 %v1069
  %v1113 = vpop.f32.mrf.mxu0
  %v1114 = vadd.f32 0.0, %v1113
  %1115 = vdwg.mxu0
  %v1116 = vsel %vm297, %v1093, -inf
  %1117 = vmax.xlane.f32.xlu0 %v1116
  %v1118 = vpop.xlane.xlu0 %1117
  %v1119 = vsel %vm297, %v1096, -inf
  %1120 = vmax.xlane.f32.xlu0 %v1119
  %v1121 = vpop.xlane.xlu0 %1120
  %v1122 = vsel %vm297, %v1099, -inf
  %1123 = vmax.xlane.f32.xlu0 %v1122
  %v1124 = vpop.xlane.xlu0 %1123
  %v1125 = vsel %vm297, %v1102, -inf
  %1126 = vmax.xlane.f32.xlu0 %v1125
  %v1127 = vpop.xlane.xlu0 %1126
  %v1128 = vsel %vm297, %v1105, -inf
  %1129 = vmax.xlane.f32.xlu0 %v1128
  %v1130 = vpop.xlane.xlu0 %1129
  %v1131 = vsel %vm297, %v1108, -inf
  %1132 = vmax.xlane.f32.xlu0 %v1131
  %v1133 = vpop.xlane.xlu0 %1132
  %v1134 = vsel %vm297, %v1111, -inf
  %1135 = vmax.xlane.f32.xlu0 %v1134
  %v1136 = vpop.xlane.xlu0 %1135
  %v1137 = vsel %vm297, %v1114, -inf
  %1138 = vmax.xlane.f32.xlu0 %v1137
  %v1139 = vpop.xlane.xlu0 %1138
  %v1140 = vsub.f32 %v1093, %v1118
  %v1141 = vsub.f32 %v1096, %v1121
  %v1142 = vsub.f32 %v1099, %v1124
  %v1143 = vsub.f32 %v1102, %v1127
  %v1144 = vsub.f32 %v1105, %v1130
  %v1145 = vsub.f32 %v1108, %v1133
  %v1146 = vsub.f32 %v1111, %v1136
  %v1147 = vsub.f32 %v1114, %v1139
  %v1148 = vmul.f32 %v1140, 1.442695
  %v1149 = vpow.pop %v1148
  %v1150 = vmul.f32 %v1141, 1.442695
  %v1151 = vpow.pop %v1150
  %v1152 = vmul.f32 %v1142, 1.442695
  %v1153 = vpow.pop %v1152
  %v1154 = vmul.f32 %v1143, 1.442695
  %v1155 = vpow.pop %v1154
  %v1156 = vmul.f32 %v1144, 1.442695
  %v1157 = vpow.pop %v1156
  %v1158 = vmul.f32 %v1145, 1.442695
  %v1159 = vpow.pop %v1158
  %v1160 = vmul.f32 %v1146, 1.442695
  %v1161 = vpow.pop %v1160
  %v1162 = vmul.f32 %v1147, 1.442695
  %v1163 = vpow.pop %v1162
  %v1164 = vsel %vm297, %v1149, 0.0
  %1165 = vadd.xlane.f32.xlu0 %v1164
  %v1166 = vpop.xlane.xlu0 %1165
  %v1167 = vsel %vm297, %v1151, 0.0
  %1168 = vadd.xlane.f32.xlu0 %v1167
  %v1169 = vpop.xlane.xlu0 %1168
  %v1170 = vsel %vm297, %v1153, 0.0
  %1171 = vadd.xlane.f32.xlu0 %v1170
  %v1172 = vpop.xlane.xlu0 %1171
  %v1173 = vsel %vm297, %v1155, 0.0
  %1174 = vadd.xlane.f32.xlu0 %v1173
  %v1175 = vpop.xlane.xlu0 %1174
  %v1176 = vsel %vm297, %v1157, 0.0
  %1177 = vadd.xlane.f32.xlu0 %v1176
  %v1178 = vpop.xlane.xlu0 %1177
  %v1179 = vsel %vm297, %v1159, 0.0
  %1180 = vadd.xlane.f32.xlu0 %v1179
  %v1181 = vpop.xlane.xlu0 %1180
  %v1182 = vsel %vm297, %v1161, 0.0
  %1183 = vadd.xlane.f32.xlu0 %v1182
  %v1184 = vpop.xlane.xlu0 %1183
  %v1185 = vsel %vm297, %v1163, 0.0
  %1186 = vadd.xlane.f32.xlu0 %v1185
  %v1187 = vpop.xlane.xlu0 %1186
  %1188 = vrot.lane.b32.xlu0 %v209, 80
  %v1189 = vpop.permute.xlu0 %1188
  %1190 = vrot.lane.b32.xlu0 %v212, 80
  %v1191 = vpop.permute.xlu0 %1190
  %v1195 = vsel %vm297, %v1149, 0
  %v1198 = vsel %vm297, %v1151, 0
  %v1201 = vsel %vm297, %v1153, 0
  %v1204 = vsel %vm297, %v1155, 0
  %v1207 = vsel %vm297, %v1157, 0
  %v1210 = vsel %vm297, %v1159, 0
  %v1213 = vsel %vm297, %v1161, 0
  %v1216 = vsel %vm297, %v1163, 0
  %1218 = vmatpush.msra.mxu0 0.0
  %1219 = vmatpush.msra.mxu0 0.0
  %1220 = vmatpush.msra.mxu0 0.0
  %1221 = vmatpush.msra.mxu0 0.0
  %1222 = vmatpush.msra.mxu0 0.0
  %1223 = vmatpush.msra.mxu0 0.0
  %1224 = vmatpush.msra.mxu0 0.0
  %1225 = vmatpush.msra.mxu0 0.0
  %1226 = vmatpush.msra.mxu0 0.0
  %1227 = vmatpush.msra.mxu0 0.0
  %1228 = vmatpush.msra.mxu0 0.0
  %1229 = vmatpush.msra.mxu0 0.0
  %1230 = vmatpush.msra.mxu0 0.0
  %1231 = vmatpush.msra.mxu0 0.0
  %1232 = vmatpush.msra.mxu0 %v1191
  %1233 = vmatpush.msra.mxu0 %v1189
  %1234 = vmatmul.f32.gmra.mxu0 %v1195
  %v1235 = vpop.f32.mrf.mxu0
  %v1236 = vadd.f32 0.0, %v1235
  %1237 = vmatmul.f32.gmra.mxu0 %v1198
  %v1238 = vpop.f32.mrf.mxu0
  %v1239 = vadd.f32 0.0, %v1238
  %1240 = vmatmul.f32.gmra.mxu0 %v1201
  %v1241 = vpop.f32.mrf.mxu0
  %v1242 = vadd.f32 0.0, %v1241
  %1243 = vmatmul.f32.gmra.mxu0 %v1204
  %v1244 = vpop.f32.mrf.mxu0
  %v1245 = vadd.f32 0.0, %v1244
  %1246 = vmatmul.f32.gmra.mxu0 %v1207
  %v1247 = vpop.f32.mrf.mxu0
  %v1248 = vadd.f32 0.0, %v1247
  %1249 = vmatmul.f32.gmra.mxu0 %v1210
  %v1250 = vpop.f32.mrf.mxu0
  %v1251 = vadd.f32 0.0, %v1250
  %1252 = vmatmul.f32.gmra.mxu0 %v1213
  %v1253 = vpop.f32.mrf.mxu0
  %v1254 = vadd.f32 0.0, %v1253
  %1255 = vmatmul.f32.gmra.mxu0 %v1216
  %v1256 = vpop.f32.mrf.mxu0
  %v1257 = vadd.f32 0.0, %v1256
  %1258 = vdwg.mxu0
  %v1259 = vrcp.pop %v1166
  %v1260 = vmul.f32 %v1166, %v1259
  %v1261 = vsub.f32 1.0, %v1260
  %v1262 = vmul.f32 %v1259, %v1261
  %v1263 = vadd.f32 %v1259, %v1262
  %vm1264 = vweird.f32 %v1166
  %vm1265 = vweird.f32 %v1259
  %vm1266 = vmor %vm1264, %vm1265
  %v1267 = vsel %vm1266, %v1259, %v1263
  %v1268 = vand.u32 2147483647, %v1166
  %vm1269 = vcmp.eq.f32.partialorder %v1268, 8.507059e+37
  %v1270 = vand.u32 %v1166, 2147483648
  %v1271 = vor.u32 1.1754944e-38, %v1270
  %v1272 = vsel %vm1269, %v1271, %v1267
  %v1273 = vrcp.pop %v1169
  %v1274 = vmul.f32 %v1169, %v1273
  %v1275 = vsub.f32 1.0, %v1274
  %v1276 = vmul.f32 %v1273, %v1275
  %v1277 = vadd.f32 %v1273, %v1276
  %vm1278 = vweird.f32 %v1169
  %vm1279 = vweird.f32 %v1273
  %vm1280 = vmor %vm1278, %vm1279
  %v1281 = vsel %vm1280, %v1273, %v1277
  %v1282 = vand.u32 2147483647, %v1169
  %vm1283 = vcmp.eq.f32.partialorder %v1282, 8.507059e+37
  %v1284 = vand.u32 %v1169, 2147483648
  %v1285 = vor.u32 1.1754944e-38, %v1284
  %v1286 = vsel %vm1283, %v1285, %v1281
  %v1287 = vrcp.pop %v1172
  %v1288 = vmul.f32 %v1172, %v1287
  %v1289 = vsub.f32 1.0, %v1288
  %v1290 = vmul.f32 %v1287, %v1289
  %v1291 = vadd.f32 %v1287, %v1290
  %vm1292 = vweird.f32 %v1172
  %vm1293 = vweird.f32 %v1287
  %vm1294 = vmor %vm1292, %vm1293
  %v1295 = vsel %vm1294, %v1287, %v1291
  %v1296 = vand.u32 2147483647, %v1172
  %vm1297 = vcmp.eq.f32.partialorder %v1296, 8.507059e+37
  %v1298 = vand.u32 %v1172, 2147483648
  %v1299 = vor.u32 1.1754944e-38, %v1298
  %v1300 = vsel %vm1297, %v1299, %v1295
  %v1301 = vrcp.pop %v1175
  %v1302 = vmul.f32 %v1175, %v1301
  %v1303 = vsub.f32 1.0, %v1302
  %v1304 = vmul.f32 %v1301, %v1303
  %v1305 = vadd.f32 %v1301, %v1304
  %vm1306 = vweird.f32 %v1175
  %vm1307 = vweird.f32 %v1301
  %vm1308 = vmor %vm1306, %vm1307
  %v1309 = vsel %vm1308, %v1301, %v1305
  %v1310 = vand.u32 2147483647, %v1175
  %vm1311 = vcmp.eq.f32.partialorder %v1310, 8.507059e+37
  %v1312 = vand.u32 %v1175, 2147483648
  %v1313 = vor.u32 1.1754944e-38, %v1312
  %v1314 = vsel %vm1311, %v1313, %v1309
  %v1315 = vrcp.pop %v1178
  %v1316 = vmul.f32 %v1178, %v1315
  %v1317 = vsub.f32 1.0, %v1316
  %v1318 = vmul.f32 %v1315, %v1317
  %v1319 = vadd.f32 %v1315, %v1318
  %vm1320 = vweird.f32 %v1178
  %vm1321 = vweird.f32 %v1315
  %vm1322 = vmor %vm1320, %vm1321
  %v1323 = vsel %vm1322, %v1315, %v1319
  %v1324 = vand.u32 2147483647, %v1178
  %vm1325 = vcmp.eq.f32.partialorder %v1324, 8.507059e+37
  %v1326 = vand.u32 %v1178, 2147483648
  %v1327 = vor.u32 1.1754944e-38, %v1326
  %v1328 = vsel %vm1325, %v1327, %v1323
  %v1329 = vrcp.pop %v1181
  %v1330 = vmul.f32 %v1181, %v1329
  %v1331 = vsub.f32 1.0, %v1330
  %v1332 = vmul.f32 %v1329, %v1331
  %v1333 = vadd.f32 %v1329, %v1332
  %vm1334 = vweird.f32 %v1181
  %vm1335 = vweird.f32 %v1329
  %vm1336 = vmor %vm1334, %vm1335
  %v1337 = vsel %vm1336, %v1329, %v1333
  %v1338 = vand.u32 2147483647, %v1181
  %vm1339 = vcmp.eq.f32.partialorder %v1338, 8.507059e+37
  %v1340 = vand.u32 %v1181, 2147483648
  %v1341 = vor.u32 1.1754944e-38, %v1340
  %v1342 = vsel %vm1339, %v1341, %v1337
  %v1343 = vrcp.pop %v1184
  %v1344 = vmul.f32 %v1184, %v1343
  %v1345 = vsub.f32 1.0, %v1344
  %v1346 = vmul.f32 %v1343, %v1345
  %v1347 = vadd.f32 %v1343, %v1346
  %vm1348 = vweird.f32 %v1184
  %vm1349 = vweird.f32 %v1343
  %vm1350 = vmor %vm1348, %vm1349
  %v1351 = vsel %vm1350, %v1343, %v1347
  %v1352 = vand.u32 2147483647, %v1184
  %vm1353 = vcmp.eq.f32.partialorder %v1352, 8.507059e+37
  %v1354 = vand.u32 %v1184, 2147483648
  %v1355 = vor.u32 1.1754944e-38, %v1354
  %v1356 = vsel %vm1353, %v1355, %v1351
  %v1357 = vrcp.pop %v1187
  %v1358 = vmul.f32 %v1187, %v1357
  %v1359 = vsub.f32 1.0, %v1358
  %v1360 = vmul.f32 %v1357, %v1359
  %v1361 = vadd.f32 %v1357, %v1360
  %vm1362 = vweird.f32 %v1187
  %vm1363 = vweird.f32 %v1357
  %vm1364 = vmor %vm1362, %vm1363
  %v1365 = vsel %vm1364, %v1357, %v1361
  %v1366 = vand.u32 2147483647, %v1187
  %vm1367 = vcmp.eq.f32.partialorder %v1366, 8.507059e+37
  %v1368 = vand.u32 %v1187, 2147483648
  %v1369 = vor.u32 1.1754944e-38, %v1368
  %v1370 = vsel %vm1367, %v1369, %v1365
  %v1371 = vmul.f32 %v1236, %v1272
  %v1372 = vmul.f32 %v1239, %v1286
  %v1373 = vmul.f32 %v1242, %v1300
  %v1374 = vmul.f32 %v1245, %v1314
  %v1375 = vmul.f32 %v1248, %v1328
  %v1376 = vmul.f32 %v1251, %v1342
  %v1377 = vmul.f32 %v1254, %v1356
  %v1378 = vmul.f32 %v1257, %v1370
  %v1380 = vsel %vm225, %v1371, 0
  %v1383 = vsel %vm225, %v1372, 0
  %v1386 = vsel %vm225, %v1373, 0
  %v1389 = vsel %vm225, %v1374, 0
  %v1392 = vsel %vm225, %v1375, 0
  %v1395 = vsel %vm225, %v1376, 0
  %v1398 = vsel %vm225, %v1377, 0
  %v1401 = vsel %vm225, %v1378, 0
  %1403 = vmatpush.msra.mxu0 0.0
  %1404 = vmatpush.msra.mxu0 0.0
  %1405 = vmatpush.msra.mxu0 0.0
  %1406 = vmatpush.msra.mxu0 0.0
  %1407 = vmatpush.msra.mxu0 0.0
  %1408 = vmatpush.msra.mxu0 0.0
  %1409 = vmatpush.msra.mxu0 0.0
  %1410 = vmatpush.msra.mxu0 0.0
  %1411 = vmatpush.msra.mxu0 0.0
  %1412 = vmatpush.msra.mxu0 0.0
  %1413 = vmatpush.msra.mxu0 0.0
  %1414 = vmatpush.msra.mxu0 0.0
  %1415 = vmatpush.msra.mxu0 0.0
  %1416 = vmatpush.msra.mxu0 0.0
  %1417 = vmatpush.msra.mxu0 0.0
  %1418 = vmatpush.msra.mxu0 %v222
  %1419 = vmatmul.f32.gmra.mxu0 %v1380
  %v1420 = vpop.f32.mrf.mxu0
  %v1421 = vadd.f32 0.0, %v1420
  %1422 = vmatmul.f32.gmra.mxu0 %v1383
  %v1423 = vpop.f32.mrf.mxu0
  %v1424 = vadd.f32 0.0, %v1423
  %1425 = vmatmul.f32.gmra.mxu0 %v1386
  %v1426 = vpop.f32.mrf.mxu0
  %v1427 = vadd.f32 0.0, %v1426
  %1428 = vmatmul.f32.gmra.mxu0 %v1389
  %v1429 = vpop.f32.mrf.mxu0
  %v1430 = vadd.f32 0.0, %v1429
  %1431 = vmatmul.f32.gmra.mxu0 %v1392
  %v1432 = vpop.f32.mrf.mxu0
  %v1433 = vadd.f32 0.0, %v1432
  %1434 = vmatmul.f32.gmra.mxu0 %v1395
  %v1435 = vpop.f32.mrf.mxu0
  %v1436 = vadd.f32 0.0, %v1435
  %1437 = vmatmul.f32.gmra.mxu0 %v1398
  %v1438 = vpop.f32.mrf.mxu0
  %v1439 = vadd.f32 0.0, %v1438
  %1440 = vmatmul.f32.gmra.mxu0 %v1401
  %v1441 = vpop.f32.mrf.mxu0
  %v1442 = vadd.f32 0.0, %v1441
  %1443 = vdwg.mxu0
  %v1444 = vadd.f32 %v1012, %v1421
  %v1445 = vadd.f32 %v1015, %v1424
  %v1446 = vadd.f32 %v1018, %v1427
  %v1447 = vadd.f32 %v1021, %v1430
  %v1448 = vadd.f32 %v1024, %v1433
  %v1449 = vadd.f32 %v1027, %v1436
  %v1450 = vadd.f32 %v1030, %v1439
  %v1451 = vadd.f32 %v1033, %v1442
  %1452 = vrot.lane.b32.xlu0 %v120, 104
  %v1453 = vpop.permute.xlu0 %1452
  %1454 = vrot.lane.b32.xlu0 %v123, 104
  %v1455 = vpop.permute.xlu0 %1454
  %1456 = vrot.lane.b32.xlu0 %v126, 104
  %v1457 = vpop.permute.xlu0 %1456
  %1458 = vrot.lane.b32.xlu0 %v129, 104
  %v1459 = vpop.permute.xlu0 %1458
  %1460 = vrot.lane.b32.xlu0 %v132, 104
  %v1461 = vpop.permute.xlu0 %1460
  %1462 = vrot.lane.b32.xlu0 %v135, 104
  %v1463 = vpop.permute.xlu0 %1462
  %1464 = vrot.lane.b32.xlu0 %v138, 104
  %v1465 = vpop.permute.xlu0 %1464
  %1466 = vrot.lane.b32.xlu0 %v141, 104
  %v1467 = vpop.permute.xlu0 %1466
  %1468 = vrot.lane.b32.xlu0 %v209, 104
  %v1469 = vpop.permute.xlu0 %1468
  %1470 = vrot.lane.b32.xlu0 %v212, 104
  %v1471 = vpop.permute.xlu0 %1470
  %v1472 = vsel %vm225, %v1453, 0
  %v1474 = vsel %vm225, %v1455, 0
  %v1476 = vsel %vm225, %v1457, 0
  %v1478 = vsel %vm225, %v1459, 0
  %v1480 = vsel %vm225, %v1461, 0
  %v1482 = vsel %vm225, %v1463, 0
  %v1484 = vsel %vm225, %v1465, 0
  %v1486 = vsel %vm225, %v1467, 0
  %v1488 = vsel %vm225, %v1469, 0
  %v1490 = vsel %vm225, %v1471, 0
  %1492 = vmatpush.xpose.msra.mxu0 0.0
  %1493 = vmatpush.xpose.msra.mxu0 0.0
  %1494 = vmatpush.xpose.msra.mxu0 0.0
  %1495 = vmatpush.xpose.msra.mxu0 0.0
  %1496 = vmatpush.xpose.msra.mxu0 0.0
  %1497 = vmatpush.xpose.msra.mxu0 0.0
  %1498 = vmatpush.xpose.msra.mxu0 0.0
  %1499 = vmatpush.xpose.msra.mxu0 0.0
  %1500 = vmatpush.xpose.msra.mxu0 0.0
  %1501 = vmatpush.xpose.msra.mxu0 0.0
  %1502 = vmatpush.xpose.msra.mxu0 0.0
  %1503 = vmatpush.xpose.msra.mxu0 0.0
  %1504 = vmatpush.xpose.msra.mxu0 0.0
  %1505 = vmatpush.xpose.msra.mxu0 0.0
  %1506 = vmatpush.xpose.msra.mxu0 %v1490
  %1507 = vmatpush.xpose.msra.mxu0 %v1488
  %1508 = vmatmul.f32.gmra.mxu0 %v1472
  %v1509 = vpop.f32.mrf.mxu0
  %v1510 = vadd.f32 0.0, %v1509
  %1511 = vmatmul.f32.gmra.mxu0 %v1474
  %v1512 = vpop.f32.mrf.mxu0
  %v1513 = vadd.f32 0.0, %v1512
  %1514 = vmatmul.f32.gmra.mxu0 %v1476
  %v1515 = vpop.f32.mrf.mxu0
  %v1516 = vadd.f32 0.0, %v1515
  %1517 = vmatmul.f32.gmra.mxu0 %v1478
  %v1518 = vpop.f32.mrf.mxu0
  %v1519 = vadd.f32 0.0, %v1518
  %1520 = vmatmul.f32.gmra.mxu0 %v1480
  %v1521 = vpop.f32.mrf.mxu0
  %v1522 = vadd.f32 0.0, %v1521
  %1523 = vmatmul.f32.gmra.mxu0 %v1482
  %v1524 = vpop.f32.mrf.mxu0
  %v1525 = vadd.f32 0.0, %v1524
  %1526 = vmatmul.f32.gmra.mxu0 %v1484
  %v1527 = vpop.f32.mrf.mxu0
  %v1528 = vadd.f32 0.0, %v1527
  %1529 = vmatmul.f32.gmra.mxu0 %v1486
  %v1530 = vpop.f32.mrf.mxu0
  %v1531 = vadd.f32 0.0, %v1530
  %1532 = vdwg.mxu0
  %v1533 = vsel %vm297, %v1510, -inf
  %1534 = vmax.xlane.f32.xlu0 %v1533
  %v1535 = vpop.xlane.xlu0 %1534
  %v1536 = vsel %vm297, %v1513, -inf
  %1537 = vmax.xlane.f32.xlu0 %v1536
  %v1538 = vpop.xlane.xlu0 %1537
  %v1539 = vsel %vm297, %v1516, -inf
  %1540 = vmax.xlane.f32.xlu0 %v1539
  %v1541 = vpop.xlane.xlu0 %1540
  %v1542 = vsel %vm297, %v1519, -inf
  %1543 = vmax.xlane.f32.xlu0 %v1542
  %v1544 = vpop.xlane.xlu0 %1543
  %v1545 = vsel %vm297, %v1522, -inf
  %1546 = vmax.xlane.f32.xlu0 %v1545
  %v1547 = vpop.xlane.xlu0 %1546
  %v1548 = vsel %vm297, %v1525, -inf
  %1549 = vmax.xlane.f32.xlu0 %v1548
  %v1550 = vpop.xlane.xlu0 %1549
  %v1551 = vsel %vm297, %v1528, -inf
  %1552 = vmax.xlane.f32.xlu0 %v1551
  %v1553 = vpop.xlane.xlu0 %1552
  %v1554 = vsel %vm297, %v1531, -inf
  %1555 = vmax.xlane.f32.xlu0 %v1554
  %v1556 = vpop.xlane.xlu0 %1555
  %v1557 = vsub.f32 %v1510, %v1535
  %v1558 = vsub.f32 %v1513, %v1538
  %v1559 = vsub.f32 %v1516, %v1541
  %v1560 = vsub.f32 %v1519, %v1544
  %v1561 = vsub.f32 %v1522, %v1547
  %v1562 = vsub.f32 %v1525, %v1550
  %v1563 = vsub.f32 %v1528, %v1553
  %v1564 = vsub.f32 %v1531, %v1556
  %v1565 = vmul.f32 %v1557, 1.442695
  %v1566 = vpow.pop %v1565
  %v1567 = vmul.f32 %v1558, 1.442695
  %v1568 = vpow.pop %v1567
  %v1569 = vmul.f32 %v1559, 1.442695
  %v1570 = vpow.pop %v1569
  %v1571 = vmul.f32 %v1560, 1.442695
  %v1572 = vpow.pop %v1571
  %v1573 = vmul.f32 %v1561, 1.442695
  %v1574 = vpow.pop %v1573
  %v1575 = vmul.f32 %v1562, 1.442695
  %v1576 = vpow.pop %v1575
  %v1577 = vmul.f32 %v1563, 1.442695
  %v1578 = vpow.pop %v1577
  %v1579 = vmul.f32 %v1564, 1.442695
  %v1580 = vpow.pop %v1579
  %v1581 = vsel %vm297, %v1566, 0.0
  %1582 = vadd.xlane.f32.xlu0 %v1581
  %v1583 = vpop.xlane.xlu0 %1582
  %v1584 = vsel %vm297, %v1568, 0.0
  %1585 = vadd.xlane.f32.xlu0 %v1584
  %v1586 = vpop.xlane.xlu0 %1585
  %v1587 = vsel %vm297, %v1570, 0.0
  %1588 = vadd.xlane.f32.xlu0 %v1587
  %v1589 = vpop.xlane.xlu0 %1588
  %v1590 = vsel %vm297, %v1572, 0.0
  %1591 = vadd.xlane.f32.xlu0 %v1590
  %v1592 = vpop.xlane.xlu0 %1591
  %v1593 = vsel %vm297, %v1574, 0.0
  %1594 = vadd.xlane.f32.xlu0 %v1593
  %v1595 = vpop.xlane.xlu0 %1594
  %v1596 = vsel %vm297, %v1576, 0.0
  %1597 = vadd.xlane.f32.xlu0 %v1596
  %v1598 = vpop.xlane.xlu0 %1597
  %v1599 = vsel %vm297, %v1578, 0.0
  %1600 = vadd.xlane.f32.xlu0 %v1599
  %v1601 = vpop.xlane.xlu0 %1600
  %v1602 = vsel %vm297, %v1580, 0.0
  %1603 = vadd.xlane.f32.xlu0 %v1602
  %v1604 = vpop.xlane.xlu0 %1603
  %1605 = vrot.lane.b32.xlu0 %v209, 72
  %v1606 = vpop.permute.xlu0 %1605
  %1607 = vrot.lane.b32.xlu0 %v212, 72
  %v1608 = vpop.permute.xlu0 %1607
  %v1612 = vsel %vm297, %v1566, 0
  %v1615 = vsel %vm297, %v1568, 0
  %v1618 = vsel %vm297, %v1570, 0
  %v1621 = vsel %vm297, %v1572, 0
  %v1624 = vsel %vm297, %v1574, 0
  %v1627 = vsel %vm297, %v1576, 0
  %v1630 = vsel %vm297, %v1578, 0
  %v1633 = vsel %vm297, %v1580, 0
  %1635 = vmatpush.msra.mxu0 0.0
  %1636 = vmatpush.msra.mxu0 0.0
  %1637 = vmatpush.msra.mxu0 0.0
  %1638 = vmatpush.msra.mxu0 0.0
  %1639 = vmatpush.msra.mxu0 0.0
  %1640 = vmatpush.msra.mxu0 0.0
  %1641 = vmatpush.msra.mxu0 0.0
  %1642 = vmatpush.msra.mxu0 0.0
  %1643 = vmatpush.msra.mxu0 0.0
  %1644 = vmatpush.msra.mxu0 0.0
  %1645 = vmatpush.msra.mxu0 0.0
  %1646 = vmatpush.msra.mxu0 0.0
  %1647 = vmatpush.msra.mxu0 0.0
  %1648 = vmatpush.msra.mxu0 0.0
  %1649 = vmatpush.msra.mxu0 %v1608
  %1650 = vmatpush.msra.mxu0 %v1606
  %1651 = vmatmul.f32.gmra.mxu0 %v1612
  %v1652 = vpop.f32.mrf.mxu0
  %v1653 = vadd.f32 0.0, %v1652
  %1654 = vmatmul.f32.gmra.mxu0 %v1615
  %v1655 = vpop.f32.mrf.mxu0
  %v1656 = vadd.f32 0.0, %v1655
  %1657 = vmatmul.f32.gmra.mxu0 %v1618
  %v1658 = vpop.f32.mrf.mxu0
  %v1659 = vadd.f32 0.0, %v1658
  %1660 = vmatmul.f32.gmra.mxu0 %v1621
  %v1661 = vpop.f32.mrf.mxu0
  %v1662 = vadd.f32 0.0, %v1661
  %1663 = vmatmul.f32.gmra.mxu0 %v1624
  %v1664 = vpop.f32.mrf.mxu0
  %v1665 = vadd.f32 0.0, %v1664
  %1666 = vmatmul.f32.gmra.mxu0 %v1627
  %v1667 = vpop.f32.mrf.mxu0
  %v1668 = vadd.f32 0.0, %v1667
  %1669 = vmatmul.f32.gmra.mxu0 %v1630
  %v1670 = vpop.f32.mrf.mxu0
  %v1671 = vadd.f32 0.0, %v1670
  %1672 = vmatmul.f32.gmra.mxu0 %v1633
  %v1673 = vpop.f32.mrf.mxu0
  %v1674 = vadd.f32 0.0, %v1673
  %1675 = vdwg.mxu0
  %v1676 = vrcp.pop %v1583
  %v1677 = vmul.f32 %v1583, %v1676
  %v1678 = vsub.f32 1.0, %v1677
  %v1679 = vmul.f32 %v1676, %v1678
  %v1680 = vadd.f32 %v1676, %v1679
  %vm1681 = vweird.f32 %v1583
  %vm1682 = vweird.f32 %v1676
  %vm1683 = vmor %vm1681, %vm1682
  %v1684 = vsel %vm1683, %v1676, %v1680
  %v1685 = vand.u32 2147483647, %v1583
  %vm1686 = vcmp.eq.f32.partialorder %v1685, 8.507059e+37
  %v1687 = vand.u32 %v1583, 2147483648
  %v1688 = vor.u32 1.1754944e-38, %v1687
  %v1689 = vsel %vm1686, %v1688, %v1684
  %v1690 = vrcp.pop %v1586
  %v1691 = vmul.f32 %v1586, %v1690
  %v1692 = vsub.f32 1.0, %v1691
  %v1693 = vmul.f32 %v1690, %v1692
  %v1694 = vadd.f32 %v1690, %v1693
  %vm1695 = vweird.f32 %v1586
  %vm1696 = vweird.f32 %v1690
  %vm1697 = vmor %vm1695, %vm1696
  %v1698 = vsel %vm1697, %v1690, %v1694
  %v1699 = vand.u32 2147483647, %v1586
  %vm1700 = vcmp.eq.f32.partialorder %v1699, 8.507059e+37
  %v1701 = vand.u32 %v1586, 2147483648
  %v1702 = vor.u32 1.1754944e-38, %v1701
  %v1703 = vsel %vm1700, %v1702, %v1698
  %v1704 = vrcp.pop %v1589
  %v1705 = vmul.f32 %v1589, %v1704
  %v1706 = vsub.f32 1.0, %v1705
  %v1707 = vmul.f32 %v1704, %v1706
  %v1708 = vadd.f32 %v1704, %v1707
  %vm1709 = vweird.f32 %v1589
  %vm1710 = vweird.f32 %v1704
  %vm1711 = vmor %vm1709, %vm1710
  %v1712 = vsel %vm1711, %v1704, %v1708
  %v1713 = vand.u32 2147483647, %v1589
  %vm1714 = vcmp.eq.f32.partialorder %v1713, 8.507059e+37
  %v1715 = vand.u32 %v1589, 2147483648
  %v1716 = vor.u32 1.1754944e-38, %v1715
  %v1717 = vsel %vm1714, %v1716, %v1712
  %v1718 = vrcp.pop %v1592
  %v1719 = vmul.f32 %v1592, %v1718
  %v1720 = vsub.f32 1.0, %v1719
  %v1721 = vmul.f32 %v1718, %v1720
  %v1722 = vadd.f32 %v1718, %v1721
  %vm1723 = vweird.f32 %v1592
  %vm1724 = vweird.f32 %v1718
  %vm1725 = vmor %vm1723, %vm1724
  %v1726 = vsel %vm1725, %v1718, %v1722
  %v1727 = vand.u32 2147483647, %v1592
  %vm1728 = vcmp.eq.f32.partialorder %v1727, 8.507059e+37
  %v1729 = vand.u32 %v1592, 2147483648
  %v1730 = vor.u32 1.1754944e-38, %v1729
  %v1731 = vsel %vm1728, %v1730, %v1726
  %v1732 = vrcp.pop %v1595
  %v1733 = vmul.f32 %v1595, %v1732
  %v1734 = vsub.f32 1.0, %v1733
  %v1735 = vmul.f32 %v1732, %v1734
  %v1736 = vadd.f32 %v1732, %v1735
  %vm1737 = vweird.f32 %v1595
  %vm1738 = vweird.f32 %v1732
  %vm1739 = vmor %vm1737, %vm1738
  %v1740 = vsel %vm1739, %v1732, %v1736
  %v1741 = vand.u32 2147483647, %v1595
  %vm1742 = vcmp.eq.f32.partialorder %v1741, 8.507059e+37
  %v1743 = vand.u32 %v1595, 2147483648
  %v1744 = vor.u32 1.1754944e-38, %v1743
  %v1745 = vsel %vm1742, %v1744, %v1740
  %v1746 = vrcp.pop %v1598
  %v1747 = vmul.f32 %v1598, %v1746
  %v1748 = vsub.f32 1.0, %v1747
  %v1749 = vmul.f32 %v1746, %v1748
  %v1750 = vadd.f32 %v1746, %v1749
  %vm1751 = vweird.f32 %v1598
  %vm1752 = vweird.f32 %v1746
  %vm1753 = vmor %vm1751, %vm1752
  %v1754 = vsel %vm1753, %v1746, %v1750
  %v1755 = vand.u32 2147483647, %v1598
  %vm1756 = vcmp.eq.f32.partialorder %v1755, 8.507059e+37
  %v1757 = vand.u32 %v1598, 2147483648
  %v1758 = vor.u32 1.1754944e-38, %v1757
  %v1759 = vsel %vm1756, %v1758, %v1754
  %v1760 = vrcp.pop %v1601
  %v1761 = vmul.f32 %v1601, %v1760
  %v1762 = vsub.f32 1.0, %v1761
  %v1763 = vmul.f32 %v1760, %v1762
  %v1764 = vadd.f32 %v1760, %v1763
  %vm1765 = vweird.f32 %v1601
  %vm1766 = vweird.f32 %v1760
  %vm1767 = vmor %vm1765, %vm1766
  %v1768 = vsel %vm1767, %v1760, %v1764
  %v1769 = vand.u32 2147483647, %v1601
  %vm1770 = vcmp.eq.f32.partialorder %v1769, 8.507059e+37
  %v1771 = vand.u32 %v1601, 2147483648
  %v1772 = vor.u32 1.1754944e-38, %v1771
  %v1773 = vsel %vm1770, %v1772, %v1768
  %v1774 = vrcp.pop %v1604
  %v1775 = vmul.f32 %v1604, %v1774
  %v1776 = vsub.f32 1.0, %v1775
  %v1777 = vmul.f32 %v1774, %v1776
  %v1778 = vadd.f32 %v1774, %v1777
  %vm1779 = vweird.f32 %v1604
  %vm1780 = vweird.f32 %v1774
  %vm1781 = vmor %vm1779, %vm1780
  %v1782 = vsel %vm1781, %v1774, %v1778
  %v1783 = vand.u32 2147483647, %v1604
  %vm1784 = vcmp.eq.f32.partialorder %v1783, 8.507059e+37
  %v1785 = vand.u32 %v1604, 2147483648
  %v1786 = vor.u32 1.1754944e-38, %v1785
  %v1787 = vsel %vm1784, %v1786, %v1782
  %v1788 = vmul.f32 %v1653, %v1689
  %v1789 = vmul.f32 %v1656, %v1703
  %v1790 = vmul.f32 %v1659, %v1717
  %v1791 = vmul.f32 %v1662, %v1731
  %v1792 = vmul.f32 %v1665, %v1745
  %v1793 = vmul.f32 %v1668, %v1759
  %v1794 = vmul.f32 %v1671, %v1773
  %v1795 = vmul.f32 %v1674, %v1787
  %v1797 = vsel %vm225, %v1788, 0
  %v1800 = vsel %vm225, %v1789, 0
  %v1803 = vsel %vm225, %v1790, 0
  %v1806 = vsel %vm225, %v1791, 0
  %v1809 = vsel %vm225, %v1792, 0
  %v1812 = vsel %vm225, %v1793, 0
  %v1815 = vsel %vm225, %v1794, 0
  %v1818 = vsel %vm225, %v1795, 0
  %1820 = vmatpush.msra.mxu0 0.0
  %1821 = vmatpush.msra.mxu0 0.0
  %1822 = vmatpush.msra.mxu0 0.0
  %1823 = vmatpush.msra.mxu0 0.0
  %1824 = vmatpush.msra.mxu0 0.0
  %1825 = vmatpush.msra.mxu0 0.0
  %1826 = vmatpush.msra.mxu0 0.0
  %1827 = vmatpush.msra.mxu0 0.0
  %1828 = vmatpush.msra.mxu0 0.0
  %1829 = vmatpush.msra.mxu0 0.0
  %1830 = vmatpush.msra.mxu0 0.0
  %1831 = vmatpush.msra.mxu0 0.0
  %1832 = vmatpush.msra.mxu0 0.0
  %1833 = vmatpush.msra.mxu0 0.0
  %1834 = vmatpush.msra.mxu0 0.0
  %1835 = vmatpush.msra.mxu0 %v223
  %1836 = vmatmul.f32.gmra.mxu0 %v1797
  %v1837 = vpop.f32.mrf.mxu0
  %v1838 = vadd.f32 0.0, %v1837
  %1839 = vmatmul.f32.gmra.mxu0 %v1800
  %v1840 = vpop.f32.mrf.mxu0
  %v1841 = vadd.f32 0.0, %v1840
  %1842 = vmatmul.f32.gmra.mxu0 %v1803
  %v1843 = vpop.f32.mrf.mxu0
  %v1844 = vadd.f32 0.0, %v1843
  %1845 = vmatmul.f32.gmra.mxu0 %v1806
  %v1846 = vpop.f32.mrf.mxu0
  %v1847 = vadd.f32 0.0, %v1846
  %1848 = vmatmul.f32.gmra.mxu0 %v1809
  %v1849 = vpop.f32.mrf.mxu0
  %v1850 = vadd.f32 0.0, %v1849
  %1851 = vmatmul.f32.gmra.mxu0 %v1812
  %v1852 = vpop.f32.mrf.mxu0
  %v1853 = vadd.f32 0.0, %v1852
  %1854 = vmatmul.f32.gmra.mxu0 %v1815
  %v1855 = vpop.f32.mrf.mxu0
  %v1856 = vadd.f32 0.0, %v1855
  %1857 = vmatmul.f32.gmra.mxu0 %v1818
  %v1858 = vpop.f32.mrf.mxu0
  %v1859 = vadd.f32 0.0, %v1858
  %1860 = vdwg.mxu0
  %v1861 = vadd.f32 %v1444, %v1838
  %v1862 = vadd.f32 %v1445, %v1841
  %v1863 = vadd.f32 %v1446, %v1844
  %v1864 = vadd.f32 %v1447, %v1847
  %v1865 = vadd.f32 %v1448, %v1850
  %v1866 = vadd.f32 %v1449, %v1853
  %v1867 = vadd.f32 %v1450, %v1856
  %v1868 = vadd.f32 %v1451, %v1859
  %v1870 = vperm.slane %v224, 0
  %v1872 = vadd.f32 %v1861, %v1870
  %v1873 = vadd.f32 %v1862, %v1870
  %v1874 = vadd.f32 %v1863, %v1870
  %v1875 = vadd.f32 %v1864, %v1870
  %v1876 = vadd.f32 %v1865, %v1870
  %v1877 = vadd.f32 %v1866, %v1870
  %v1878 = vadd.f32 %v1867, %v1870
  %v1879 = vadd.f32 %v1868, %v1870
  %1880 = vst.msk [vmem:[%s8] sm:$0xff] %vm53, %v1872
  %1881 = vst.msk [vmem:[%s8 + $0x8] sm:$0xff] %vm53, %v1873
  %1882 = vst.msk [vmem:[%s8 + $0x10] sm:$0xff] %vm53, %v1874
  %1883 = vst.msk [vmem:[%s8 + $0x18] sm:$0xff] %vm53, %v1875
  %1884 = vst.msk [vmem:[%s8 + $0x20] sm:$0xff] %vm53, %v1876
  %1885 = vst.msk [vmem:[%s8 + $0x28] sm:$0xff] %vm53, %v1877
  %1886 = vst.msk [vmem:[%s8 + $0x30] sm:$0xff] %vm53, %v1878
  %1887 = vst.msk [vmem:[%s8 + $0x38] sm:$0xff] %vm53, %v1879
  %v1889 = vsel %vm225, %v144, 0
  %v1892 = vsel %vm225, %v147, 0
  %v1895 = vsel %vm225, %v150, 0
  %v1898 = vsel %vm225, %v153, 0
  %v1901 = vsel %vm225, %v156, 0
  %v1904 = vsel %vm225, %v159, 0
  %v1907 = vsel %vm225, %v162, 0
  %v1910 = vsel %vm225, %v165, 0
  %v1913 = vsel %vm225, %v215, 0
  %v1916 = vsel %vm225, %v218, 0
  %1918 = vmatpush.xpose.msra.mxu0 0.0
  %1919 = vmatpush.xpose.msra.mxu0 0.0
  %1920 = vmatpush.xpose.msra.mxu0 0.0
  %1921 = vmatpush.xpose.msra.mxu0 0.0
  %1922 = vmatpush.xpose.msra.mxu0 0.0
  %1923 = vmatpush.xpose.msra.mxu0 0.0
  %1924 = vmatpush.xpose.msra.mxu0 0.0
  %1925 = vmatpush.xpose.msra.mxu0 0.0
  %1926 = vmatpush.xpose.msra.mxu0 0.0
  %1927 = vmatpush.xpose.msra.mxu0 0.0
  %1928 = vmatpush.xpose.msra.mxu0 0.0
  %1929 = vmatpush.xpose.msra.mxu0 0.0
  %1930 = vmatpush.xpose.msra.mxu0 0.0
  %1931 = vmatpush.xpose.msra.mxu0 0.0
  %1932 = vmatpush.xpose.msra.mxu0 %v1916
  %1933 = vmatpush.xpose.msra.mxu0 %v1913
  %1934 = vmatmul.f32.gmra.mxu0 %v1889
  %v1935 = vpop.f32.mrf.mxu0
  %v1936 = vadd.f32 0.0, %v1935
  %1937 = vmatmul.f32.gmra.mxu0 %v1892
  %v1938 = vpop.f32.mrf.mxu0
  %v1939 = vadd.f32 0.0, %v1938
  %1940 = vmatmul.f32.gmra.mxu0 %v1895
  %v1941 = vpop.f32.mrf.mxu0
  %v1942 = vadd.f32 0.0, %v1941
  %1943 = vmatmul.f32.gmra.mxu0 %v1898
  %v1944 = vpop.f32.mrf.mxu0
  %v1945 = vadd.f32 0.0, %v1944
  %1946 = vmatmul.f32.gmra.mxu0 %v1901
  %v1947 = vpop.f32.mrf.mxu0
  %v1948 = vadd.f32 0.0, %v1947
  %1949 = vmatmul.f32.gmra.mxu0 %v1904
  %v1950 = vpop.f32.mrf.mxu0
  %v1951 = vadd.f32 0.0, %v1950
  %1952 = vmatmul.f32.gmra.mxu0 %v1907
  %v1953 = vpop.f32.mrf.mxu0
  %v1954 = vadd.f32 0.0, %v1953
  %1955 = vmatmul.f32.gmra.mxu0 %v1910
  %v1956 = vpop.f32.mrf.mxu0
  %v1957 = vadd.f32 0.0, %v1956
  %1958 = vdwg.mxu0
  %v1959 = vsel %vm297, %v1936, -inf
  %1960 = vmax.xlane.f32.xlu0 %v1959
  %v1961 = vpop.xlane.xlu0 %1960
  %v1962 = vsel %vm297, %v1939, -inf
  %1963 = vmax.xlane.f32.xlu0 %v1962
  %v1964 = vpop.xlane.xlu0 %1963
  %v1965 = vsel %vm297, %v1942, -inf
  %1966 = vmax.xlane.f32.xlu0 %v1965
  %v1967 = vpop.xlane.xlu0 %1966
  %v1968 = vsel %vm297, %v1945, -inf
  %1969 = vmax.xlane.f32.xlu0 %v1968
  %v1970 = vpop.xlane.xlu0 %1969
  %v1971 = vsel %vm297, %v1948, -inf
  %1972 = vmax.xlane.f32.xlu0 %v1971
  %v1973 = vpop.xlane.xlu0 %1972
  %v1974 = vsel %vm297, %v1951, -inf
  %1975 = vmax.xlane.f32.xlu0 %v1974
  %v1976 = vpop.xlane.xlu0 %1975
  %v1977 = vsel %vm297, %v1954, -inf
  %1978 = vmax.xlane.f32.xlu0 %v1977
  %v1979 = vpop.xlane.xlu0 %1978
  %v1980 = vsel %vm297, %v1957, -inf
  %1981 = vmax.xlane.f32.xlu0 %v1980
  %v1982 = vpop.xlane.xlu0 %1981
  %v1983 = vsub.f32 %v1936, %v1961
  %v1984 = vsub.f32 %v1939, %v1964
  %v1985 = vsub.f32 %v1942, %v1967
  %v1986 = vsub.f32 %v1945, %v1970
  %v1987 = vsub.f32 %v1948, %v1973
  %v1988 = vsub.f32 %v1951, %v1976
  %v1989 = vsub.f32 %v1954, %v1979
  %v1990 = vsub.f32 %v1957, %v1982
  %v1991 = vmul.f32 %v1983, 1.442695
  %v1992 = vpow.pop %v1991
  %v1993 = vmul.f32 %v1984, 1.442695
  %v1994 = vpow.pop %v1993
  %v1995 = vmul.f32 %v1985, 1.442695
  %v1996 = vpow.pop %v1995
  %v1997 = vmul.f32 %v1986, 1.442695
  %v1998 = vpow.pop %v1997
  %v1999 = vmul.f32 %v1987, 1.442695
  %v2000 = vpow.pop %v1999
  %v2001 = vmul.f32 %v1988, 1.442695
  %v2002 = vpow.pop %v2001
  %v2003 = vmul.f32 %v1989, 1.442695
  %v2004 = vpow.pop %v2003
  %v2005 = vmul.f32 %v1990, 1.442695
  %v2006 = vpow.pop %v2005
  %v2007 = vsel %vm297, %v1992, 0.0
  %2008 = vadd.xlane.f32.xlu0 %v2007
  %v2009 = vpop.xlane.xlu0 %2008
  %v2010 = vsel %vm297, %v1994, 0.0
  %2011 = vadd.xlane.f32.xlu0 %v2010
  %v2012 = vpop.xlane.xlu0 %2011
  %v2013 = vsel %vm297, %v1996, 0.0
  %2014 = vadd.xlane.f32.xlu0 %v2013
  %v2015 = vpop.xlane.xlu0 %2014
  %v2016 = vsel %vm297, %v1998, 0.0
  %2017 = vadd.xlane.f32.xlu0 %v2016
  %v2018 = vpop.xlane.xlu0 %2017
  %v2019 = vsel %vm297, %v2000, 0.0
  %2020 = vadd.xlane.f32.xlu0 %v2019
  %v2021 = vpop.xlane.xlu0 %2020
  %v2022 = vsel %vm297, %v2002, 0.0
  %2023 = vadd.xlane.f32.xlu0 %v2022
  %v2024 = vpop.xlane.xlu0 %2023
  %v2025 = vsel %vm297, %v2004, 0.0
  %2026 = vadd.xlane.f32.xlu0 %v2025
  %v2027 = vpop.xlane.xlu0 %2026
  %v2028 = vsel %vm297, %v2006, 0.0
  %2029 = vadd.xlane.f32.xlu0 %v2028
  %v2030 = vpop.xlane.xlu0 %2029
  %2031 = vrot.lane.b32.xlu0 %v215, 96
  %v2032 = vpop.permute.xlu0 %2031
  %2033 = vrot.lane.b32.xlu0 %v218, 96
  %v2034 = vpop.permute.xlu0 %2033
  %v2038 = vsel %vm297, %v1992, 0
  %v2041 = vsel %vm297, %v1994, 0
  %v2044 = vsel %vm297, %v1996, 0
  %v2047 = vsel %vm297, %v1998, 0
  %v2050 = vsel %vm297, %v2000, 0
  %v2053 = vsel %vm297, %v2002, 0
  %v2056 = vsel %vm297, %v2004, 0
  %v2059 = vsel %vm297, %v2006, 0
  %2061 = vmatpush.msra.mxu0 0.0
  %2062 = vmatpush.msra.mxu0 0.0
  %2063 = vmatpush.msra.mxu0 0.0
  %2064 = vmatpush.msra.mxu0 0.0
  %2065 = vmatpush.msra.mxu0 0.0
  %2066 = vmatpush.msra.mxu0 0.0
  %2067 = vmatpush.msra.mxu0 0.0
  %2068 = vmatpush.msra.mxu0 0.0
  %2069 = vmatpush.msra.mxu0 0.0
  %2070 = vmatpush.msra.mxu0 0.0
  %2071 = vmatpush.msra.mxu0 0.0
  %2072 = vmatpush.msra.mxu0 0.0
  %2073 = vmatpush.msra.mxu0 0.0
  %2074 = vmatpush.msra.mxu0 0.0
  %2075 = vmatpush.msra.mxu0 %v2034
  %2076 = vmatpush.msra.mxu0 %v2032
  %2077 = vmatmul.f32.gmra.mxu0 %v2038
  %v2078 = vpop.f32.mrf.mxu0
  %v2079 = vadd.f32 0.0, %v2078
  %2080 = vmatmul.f32.gmra.mxu0 %v2041
  %v2081 = vpop.f32.mrf.mxu0
  %v2082 = vadd.f32 0.0, %v2081
  %2083 = vmatmul.f32.gmra.mxu0 %v2044
  %v2084 = vpop.f32.mrf.mxu0
  %v2085 = vadd.f32 0.0, %v2084
  %2086 = vmatmul.f32.gmra.mxu0 %v2047
  %v2087 = vpop.f32.mrf.mxu0
  %v2088 = vadd.f32 0.0, %v2087
  %2089 = vmatmul.f32.gmra.mxu0 %v2050
  %v2090 = vpop.f32.mrf.mxu0
  %v2091 = vadd.f32 0.0, %v2090
  %2092 = vmatmul.f32.gmra.mxu0 %v2053
  %v2093 = vpop.f32.mrf.mxu0
  %v2094 = vadd.f32 0.0, %v2093
  %2095 = vmatmul.f32.gmra.mxu0 %v2056
  %v2096 = vpop.f32.mrf.mxu0
  %v2097 = vadd.f32 0.0, %v2096
  %2098 = vmatmul.f32.gmra.mxu0 %v2059
  %v2099 = vpop.f32.mrf.mxu0
  %v2100 = vadd.f32 0.0, %v2099
  %2101 = vdwg.mxu0
  %v2102 = vrcp.pop %v2009
  %v2103 = vmul.f32 %v2009, %v2102
  %v2104 = vsub.f32 1.0, %v2103
  %v2105 = vmul.f32 %v2102, %v2104
  %v2106 = vadd.f32 %v2102, %v2105
  %vm2107 = vweird.f32 %v2009
  %vm2108 = vweird.f32 %v2102
  %vm2109 = vmor %vm2107, %vm2108
  %v2110 = vsel %vm2109, %v2102, %v2106
  %v2111 = vand.u32 2147483647, %v2009
  %vm2112 = vcmp.eq.f32.partialorder %v2111, 8.507059e+37
  %v2113 = vand.u32 %v2009, 2147483648
  %v2114 = vor.u32 1.1754944e-38, %v2113
  %v2115 = vsel %vm2112, %v2114, %v2110
  %v2116 = vrcp.pop %v2012
  %v2117 = vmul.f32 %v2012, %v2116
  %v2118 = vsub.f32 1.0, %v2117
  %v2119 = vmul.f32 %v2116, %v2118
  %v2120 = vadd.f32 %v2116, %v2119
  %vm2121 = vweird.f32 %v2012
  %vm2122 = vweird.f32 %v2116
  %vm2123 = vmor %vm2121, %vm2122
  %v2124 = vsel %vm2123, %v2116, %v2120
  %v2125 = vand.u32 2147483647, %v2012
  %vm2126 = vcmp.eq.f32.partialorder %v2125, 8.507059e+37
  %v2127 = vand.u32 %v2012, 2147483648
  %v2128 = vor.u32 1.1754944e-38, %v2127
  %v2129 = vsel %vm2126, %v2128, %v2124
  %v2130 = vrcp.pop %v2015
  %v2131 = vmul.f32 %v2015, %v2130
  %v2132 = vsub.f32 1.0, %v2131
  %v2133 = vmul.f32 %v2130, %v2132
  %v2134 = vadd.f32 %v2130, %v2133
  %vm2135 = vweird.f32 %v2015
  %vm2136 = vweird.f32 %v2130
  %vm2137 = vmor %vm2135, %vm2136
  %v2138 = vsel %vm2137, %v2130, %v2134
  %v2139 = vand.u32 2147483647, %v2015
  %vm2140 = vcmp.eq.f32.partialorder %v2139, 8.507059e+37
  %v2141 = vand.u32 %v2015, 2147483648
  %v2142 = vor.u32 1.1754944e-38, %v2141
  %v2143 = vsel %vm2140, %v2142, %v2138
  %v2144 = vrcp.pop %v2018
  %v2145 = vmul.f32 %v2018, %v2144
  %v2146 = vsub.f32 1.0, %v2145
  %v2147 = vmul.f32 %v2144, %v2146
  %v2148 = vadd.f32 %v2144, %v2147
  %vm2149 = vweird.f32 %v2018
  %vm2150 = vweird.f32 %v2144
  %vm2151 = vmor %vm2149, %vm2150
  %v2152 = vsel %vm2151, %v2144, %v2148
  %v2153 = vand.u32 2147483647, %v2018
  %vm2154 = vcmp.eq.f32.partialorder %v2153, 8.507059e+37
  %v2155 = vand.u32 %v2018, 2147483648
  %v2156 = vor.u32 1.1754944e-38, %v2155
  %v2157 = vsel %vm2154, %v2156, %v2152
  %v2158 = vrcp.pop %v2021
  %v2159 = vmul.f32 %v2021, %v2158
  %v2160 = vsub.f32 1.0, %v2159
  %v2161 = vmul.f32 %v2158, %v2160
  %v2162 = vadd.f32 %v2158, %v2161
  %vm2163 = vweird.f32 %v2021
  %vm2164 = vweird.f32 %v2158
  %vm2165 = vmor %vm2163, %vm2164
  %v2166 = vsel %vm2165, %v2158, %v2162
  %v2167 = vand.u32 2147483647, %v2021
  %vm2168 = vcmp.eq.f32.partialorder %v2167, 8.507059e+37
  %v2169 = vand.u32 %v2021, 2147483648
  %v2170 = vor.u32 1.1754944e-38, %v2169
  %v2171 = vsel %vm2168, %v2170, %v2166
  %v2172 = vrcp.pop %v2024
  %v2173 = vmul.f32 %v2024, %v2172
  %v2174 = vsub.f32 1.0, %v2173
  %v2175 = vmul.f32 %v2172, %v2174
  %v2176 = vadd.f32 %v2172, %v2175
  %vm2177 = vweird.f32 %v2024
  %vm2178 = vweird.f32 %v2172
  %vm2179 = vmor %vm2177, %vm2178
  %v2180 = vsel %vm2179, %v2172, %v2176
  %v2181 = vand.u32 2147483647, %v2024
  %vm2182 = vcmp.eq.f32.partialorder %v2181, 8.507059e+37
  %v2183 = vand.u32 %v2024, 2147483648
  %v2184 = vor.u32 1.1754944e-38, %v2183
  %v2185 = vsel %vm2182, %v2184, %v2180
  %v2186 = vrcp.pop %v2027
  %v2187 = vmul.f32 %v2027, %v2186
  %v2188 = vsub.f32 1.0, %v2187
  %v2189 = vmul.f32 %v2186, %v2188
  %v2190 = vadd.f32 %v2186, %v2189
  %vm2191 = vweird.f32 %v2027
  %vm2192 = vweird.f32 %v2186
  %vm2193 = vmor %vm2191, %vm2192
  %v2194 = vsel %vm2193, %v2186, %v2190
  %v2195 = vand.u32 2147483647, %v2027
  %vm2196 = vcmp.eq.f32.partialorder %v2195, 8.507059e+37
  %v2197 = vand.u32 %v2027, 2147483648
  %v2198 = vor.u32 1.1754944e-38, %v2197
  %v2199 = vsel %vm2196, %v2198, %v2194
  %v2200 = vrcp.pop %v2030
  %v2201 = vmul.f32 %v2030, %v2200
  %v2202 = vsub.f32 1.0, %v2201
  %v2203 = vmul.f32 %v2200, %v2202
  %v2204 = vadd.f32 %v2200, %v2203
  %vm2205 = vweird.f32 %v2030
  %vm2206 = vweird.f32 %v2200
  %vm2207 = vmor %vm2205, %vm2206
  %v2208 = vsel %vm2207, %v2200, %v2204
  %v2209 = vand.u32 2147483647, %v2030
  %vm2210 = vcmp.eq.f32.partialorder %v2209, 8.507059e+37
  %v2211 = vand.u32 %v2030, 2147483648
  %v2212 = vor.u32 1.1754944e-38, %v2211
  %v2213 = vsel %vm2210, %v2212, %v2208
  %v2214 = vmul.f32 %v2079, %v2115
  %v2215 = vmul.f32 %v2082, %v2129
  %v2216 = vmul.f32 %v2085, %v2143
  %v2217 = vmul.f32 %v2088, %v2157
  %v2218 = vmul.f32 %v2091, %v2171
  %v2219 = vmul.f32 %v2094, %v2185
  %v2220 = vmul.f32 %v2097, %v2199
  %v2221 = vmul.f32 %v2100, %v2213
  %2222 = vrot.lane.b32.xlu0 %v144, 120
  %v2223 = vpop.permute.xlu0 %2222
  %2224 = vrot.lane.b32.xlu0 %v147, 120
  %v2225 = vpop.permute.xlu0 %2224
  %2226 = vrot.lane.b32.xlu0 %v150, 120
  %v2227 = vpop.permute.xlu0 %2226
  %2228 = vrot.lane.b32.xlu0 %v153, 120
  %v2229 = vpop.permute.xlu0 %2228
  %2230 = vrot.lane.b32.xlu0 %v156, 120
  %v2231 = vpop.permute.xlu0 %2230
  %2232 = vrot.lane.b32.xlu0 %v159, 120
  %v2233 = vpop.permute.xlu0 %2232
  %2234 = vrot.lane.b32.xlu0 %v162, 120
  %v2235 = vpop.permute.xlu0 %2234
  %2236 = vrot.lane.b32.xlu0 %v165, 120
  %v2237 = vpop.permute.xlu0 %2236
  %2238 = vrot.lane.b32.xlu0 %v215, 120
  %v2239 = vpop.permute.xlu0 %2238
  %2240 = vrot.lane.b32.xlu0 %v218, 120
  %v2241 = vpop.permute.xlu0 %2240
  %v2242 = vsel %vm225, %v2223, 0
  %v2244 = vsel %vm225, %v2225, 0
  %v2246 = vsel %vm225, %v2227, 0
  %v2248 = vsel %vm225, %v2229, 0
  %v2250 = vsel %vm225, %v2231, 0
  %v2252 = vsel %vm225, %v2233, 0
  %v2254 = vsel %vm225, %v2235, 0
  %v2256 = vsel %vm225, %v2237, 0
  %v2258 = vsel %vm225, %v2239, 0
  %v2260 = vsel %vm225, %v2241, 0
  %2262 = vmatpush.xpose.msra.mxu0 0.0
  %2263 = vmatpush.xpose.msra.mxu0 0.0
  %2264 = vmatpush.xpose.msra.mxu0 0.0
  %2265 = vmatpush.xpose.msra.mxu0 0.0
  %2266 = vmatpush.xpose.msra.mxu0 0.0
  %2267 = vmatpush.xpose.msra.mxu0 0.0
  %2268 = vmatpush.xpose.msra.mxu0 0.0
  %2269 = vmatpush.xpose.msra.mxu0 0.0
  %2270 = vmatpush.xpose.msra.mxu0 0.0
  %2271 = vmatpush.xpose.msra.mxu0 0.0
  %2272 = vmatpush.xpose.msra.mxu0 0.0
  %2273 = vmatpush.xpose.msra.mxu0 0.0
  %2274 = vmatpush.xpose.msra.mxu0 0.0
  %2275 = vmatpush.xpose.msra.mxu0 0.0
  %2276 = vmatpush.xpose.msra.mxu0 %v2260
  %2277 = vmatpush.xpose.msra.mxu0 %v2258
  %2278 = vmatmul.f32.gmra.mxu0 %v2242
  %v2279 = vpop.f32.mrf.mxu0
  %v2280 = vadd.f32 0.0, %v2279
  %2281 = vmatmul.f32.gmra.mxu0 %v2244
  %v2282 = vpop.f32.mrf.mxu0
  %v2283 = vadd.f32 0.0, %v2282
  %2284 = vmatmul.f32.gmra.mxu0 %v2246
  %v2285 = vpop.f32.mrf.mxu0
  %v2286 = vadd.f32 0.0, %v2285
  %2287 = vmatmul.f32.gmra.mxu0 %v2248
  %v2288 = vpop.f32.mrf.mxu0
  %v2289 = vadd.f32 0.0, %v2288
  %2290 = vmatmul.f32.gmra.mxu0 %v2250
  %v2291 = vpop.f32.mrf.mxu0
  %v2292 = vadd.f32 0.0, %v2291
  %2293 = vmatmul.f32.gmra.mxu0 %v2252
  %v2294 = vpop.f32.mrf.mxu0
  %v2295 = vadd.f32 0.0, %v2294
  %2296 = vmatmul.f32.gmra.mxu0 %v2254
  %v2297 = vpop.f32.mrf.mxu0
  %v2298 = vadd.f32 0.0, %v2297
  %2299 = vmatmul.f32.gmra.mxu0 %v2256
  %v2300 = vpop.f32.mrf.mxu0
  %v2301 = vadd.f32 0.0, %v2300
  %2302 = vdwg.mxu0
  %v2303 = vsel %vm297, %v2280, -inf
  %2304 = vmax.xlane.f32.xlu0 %v2303
  %v2305 = vpop.xlane.xlu0 %2304
  %v2306 = vsel %vm297, %v2283, -inf
  %2307 = vmax.xlane.f32.xlu0 %v2306
  %v2308 = vpop.xlane.xlu0 %2307
  %v2309 = vsel %vm297, %v2286, -inf
  %2310 = vmax.xlane.f32.xlu0 %v2309
  %v2311 = vpop.xlane.xlu0 %2310
  %v2312 = vsel %vm297, %v2289, -inf
  %2313 = vmax.xlane.f32.xlu0 %v2312
  %v2314 = vpop.xlane.xlu0 %2313
  %v2315 = vsel %vm297, %v2292, -inf
  %2316 = vmax.xlane.f32.xlu0 %v2315
  %v2317 = vpop.xlane.xlu0 %2316
  %v2318 = vsel %vm297, %v2295, -inf
  %2319 = vmax.xlane.f32.xlu0 %v2318
  %v2320 = vpop.xlane.xlu0 %2319
  %v2321 = vsel %vm297, %v2298, -inf
  %2322 = vmax.xlane.f32.xlu0 %v2321
  %v2323 = vpop.xlane.xlu0 %2322
  %v2324 = vsel %vm297, %v2301, -inf
  %2325 = vmax.xlane.f32.xlu0 %v2324
  %v2326 = vpop.xlane.xlu0 %2325
  %v2327 = vsub.f32 %v2280, %v2305
  %v2328 = vsub.f32 %v2283, %v2308
  %v2329 = vsub.f32 %v2286, %v2311
  %v2330 = vsub.f32 %v2289, %v2314
  %v2331 = vsub.f32 %v2292, %v2317
  %v2332 = vsub.f32 %v2295, %v2320
  %v2333 = vsub.f32 %v2298, %v2323
  %v2334 = vsub.f32 %v2301, %v2326
  %v2335 = vmul.f32 %v2327, 1.442695
  %v2336 = vpow.pop %v2335
  %v2337 = vmul.f32 %v2328, 1.442695
  %v2338 = vpow.pop %v2337
  %v2339 = vmul.f32 %v2329, 1.442695
  %v2340 = vpow.pop %v2339
  %v2341 = vmul.f32 %v2330, 1.442695
  %v2342 = vpow.pop %v2341
  %v2343 = vmul.f32 %v2331, 1.442695
  %v2344 = vpow.pop %v2343
  %v2345 = vmul.f32 %v2332, 1.442695
  %v2346 = vpow.pop %v2345
  %v2347 = vmul.f32 %v2333, 1.442695
  %v2348 = vpow.pop %v2347
  %v2349 = vmul.f32 %v2334, 1.442695
  %v2350 = vpow.pop %v2349
  %v2351 = vsel %vm297, %v2336, 0.0
  %2352 = vadd.xlane.f32.xlu0 %v2351
  %v2353 = vpop.xlane.xlu0 %2352
  %v2354 = vsel %vm297, %v2338, 0.0
  %2355 = vadd.xlane.f32.xlu0 %v2354
  %v2356 = vpop.xlane.xlu0 %2355
  %v2357 = vsel %vm297, %v2340, 0.0
  %2358 = vadd.xlane.f32.xlu0 %v2357
  %v2359 = vpop.xlane.xlu0 %2358
  %v2360 = vsel %vm297, %v2342, 0.0
  %2361 = vadd.xlane.f32.xlu0 %v2360
  %v2362 = vpop.xlane.xlu0 %2361
  %v2363 = vsel %vm297, %v2344, 0.0
  %2364 = vadd.xlane.f32.xlu0 %v2363
  %v2365 = vpop.xlane.xlu0 %2364
  %v2366 = vsel %vm297, %v2346, 0.0
  %2367 = vadd.xlane.f32.xlu0 %v2366
  %v2368 = vpop.xlane.xlu0 %2367
  %v2369 = vsel %vm297, %v2348, 0.0
  %2370 = vadd.xlane.f32.xlu0 %v2369
  %v2371 = vpop.xlane.xlu0 %2370
  %v2372 = vsel %vm297, %v2350, 0.0
  %2373 = vadd.xlane.f32.xlu0 %v2372
  %v2374 = vpop.xlane.xlu0 %2373
  %2375 = vrot.lane.b32.xlu0 %v215, 88
  %v2376 = vpop.permute.xlu0 %2375
  %2377 = vrot.lane.b32.xlu0 %v218, 88
  %v2378 = vpop.permute.xlu0 %2377
  %v2382 = vsel %vm297, %v2336, 0
  %v2385 = vsel %vm297, %v2338, 0
  %v2388 = vsel %vm297, %v2340, 0
  %v2391 = vsel %vm297, %v2342, 0
  %v2394 = vsel %vm297, %v2344, 0
  %v2397 = vsel %vm297, %v2346, 0
  %v2400 = vsel %vm297, %v2348, 0
  %v2403 = vsel %vm297, %v2350, 0
  %2405 = vmatpush.msra.mxu0 0.0
  %2406 = vmatpush.msra.mxu0 0.0
  %2407 = vmatpush.msra.mxu0 0.0
  %2408 = vmatpush.msra.mxu0 0.0
  %2409 = vmatpush.msra.mxu0 0.0
  %2410 = vmatpush.msra.mxu0 0.0
  %2411 = vmatpush.msra.mxu0 0.0
  %2412 = vmatpush.msra.mxu0 0.0
  %2413 = vmatpush.msra.mxu0 0.0
  %2414 = vmatpush.msra.mxu0 0.0
  %2415 = vmatpush.msra.mxu0 0.0
  %2416 = vmatpush.msra.mxu0 0.0
  %2417 = vmatpush.msra.mxu0 0.0
  %2418 = vmatpush.msra.mxu0 0.0
  %2419 = vmatpush.msra.mxu0 %v2378
  %2420 = vmatpush.msra.mxu0 %v2376
  %2421 = vmatmul.f32.gmra.mxu0 %v2382
  %v2422 = vpop.f32.mrf.mxu0
  %v2423 = vadd.f32 0.0, %v2422
  %2424 = vmatmul.f32.gmra.mxu0 %v2385
  %v2425 = vpop.f32.mrf.mxu0
  %v2426 = vadd.f32 0.0, %v2425
  %2427 = vmatmul.f32.gmra.mxu0 %v2388
  %v2428 = vpop.f32.mrf.mxu0
  %v2429 = vadd.f32 0.0, %v2428
  %2430 = vmatmul.f32.gmra.mxu0 %v2391
  %v2431 = vpop.f32.mrf.mxu0
  %v2432 = vadd.f32 0.0, %v2431
  %2433 = vmatmul.f32.gmra.mxu0 %v2394
  %v2434 = vpop.f32.mrf.mxu0
  %v2435 = vadd.f32 0.0, %v2434
  %2436 = vmatmul.f32.gmra.mxu0 %v2397
  %v2437 = vpop.f32.mrf.mxu0
  %v2438 = vadd.f32 0.0, %v2437
  %2439 = vmatmul.f32.gmra.mxu0 %v2400
  %v2440 = vpop.f32.mrf.mxu0
  %v2441 = vadd.f32 0.0, %v2440
  %2442 = vmatmul.f32.gmra.mxu0 %v2403
  %v2443 = vpop.f32.mrf.mxu0
  %v2444 = vadd.f32 0.0, %v2443
  %2445 = vdwg.mxu0
  %v2446 = vrcp.pop %v2353
  %v2447 = vmul.f32 %v2353, %v2446
  %v2448 = vsub.f32 1.0, %v2447
  %v2449 = vmul.f32 %v2446, %v2448
  %v2450 = vadd.f32 %v2446, %v2449
  %vm2451 = vweird.f32 %v2353
  %vm2452 = vweird.f32 %v2446
  %vm2453 = vmor %vm2451, %vm2452
  %v2454 = vsel %vm2453, %v2446, %v2450
  %v2455 = vand.u32 2147483647, %v2353
  %vm2456 = vcmp.eq.f32.partialorder %v2455, 8.507059e+37
  %v2457 = vand.u32 %v2353, 2147483648
  %v2458 = vor.u32 1.1754944e-38, %v2457
  %v2459 = vsel %vm2456, %v2458, %v2454
  %v2460 = vrcp.pop %v2356
  %v2461 = vmul.f32 %v2356, %v2460
  %v2462 = vsub.f32 1.0, %v2461
  %v2463 = vmul.f32 %v2460, %v2462
  %v2464 = vadd.f32 %v2460, %v2463
  %vm2465 = vweird.f32 %v2356
  %vm2466 = vweird.f32 %v2460
  %vm2467 = vmor %vm2465, %vm2466
  %v2468 = vsel %vm2467, %v2460, %v2464
  %v2469 = vand.u32 2147483647, %v2356
  %vm2470 = vcmp.eq.f32.partialorder %v2469, 8.507059e+37
  %v2471 = vand.u32 %v2356, 2147483648
  %v2472 = vor.u32 1.1754944e-38, %v2471
  %v2473 = vsel %vm2470, %v2472, %v2468
  %v2474 = vrcp.pop %v2359
  %v2475 = vmul.f32 %v2359, %v2474
  %v2476 = vsub.f32 1.0, %v2475
  %v2477 = vmul.f32 %v2474, %v2476
  %v2478 = vadd.f32 %v2474, %v2477
  %vm2479 = vweird.f32 %v2359
  %vm2480 = vweird.f32 %v2474
  %vm2481 = vmor %vm2479, %vm2480
  %v2482 = vsel %vm2481, %v2474, %v2478
  %v2483 = vand.u32 2147483647, %v2359
  %vm2484 = vcmp.eq.f32.partialorder %v2483, 8.507059e+37
  %v2485 = vand.u32 %v2359, 2147483648
  %v2486 = vor.u32 1.1754944e-38, %v2485
  %v2487 = vsel %vm2484, %v2486, %v2482
  %v2488 = vrcp.pop %v2362
  %v2489 = vmul.f32 %v2362, %v2488
  %v2490 = vsub.f32 1.0, %v2489
  %v2491 = vmul.f32 %v2488, %v2490
  %v2492 = vadd.f32 %v2488, %v2491
  %vm2493 = vweird.f32 %v2362
  %vm2494 = vweird.f32 %v2488
  %vm2495 = vmor %vm2493, %vm2494
  %v2496 = vsel %vm2495, %v2488, %v2492
  %v2497 = vand.u32 2147483647, %v2362
  %vm2498 = vcmp.eq.f32.partialorder %v2497, 8.507059e+37
  %v2499 = vand.u32 %v2362, 2147483648
  %v2500 = vor.u32 1.1754944e-38, %v2499
  %v2501 = vsel %vm2498, %v2500, %v2496
  %v2502 = vrcp.pop %v2365
  %v2503 = vmul.f32 %v2365, %v2502
  %v2504 = vsub.f32 1.0, %v2503
  %v2505 = vmul.f32 %v2502, %v2504
  %v2506 = vadd.f32 %v2502, %v2505
  %vm2507 = vweird.f32 %v2365
  %vm2508 = vweird.f32 %v2502
  %vm2509 = vmor %vm2507, %vm2508
  %v2510 = vsel %vm2509, %v2502, %v2506
  %v2511 = vand.u32 2147483647, %v2365
  %vm2512 = vcmp.eq.f32.partialorder %v2511, 8.507059e+37
  %v2513 = vand.u32 %v2365, 2147483648
  %v2514 = vor.u32 1.1754944e-38, %v2513
  %v2515 = vsel %vm2512, %v2514, %v2510
  %v2516 = vrcp.pop %v2368
  %v2517 = vmul.f32 %v2368, %v2516
  %v2518 = vsub.f32 1.0, %v2517
  %v2519 = vmul.f32 %v2516, %v2518
  %v2520 = vadd.f32 %v2516, %v2519
  %vm2521 = vweird.f32 %v2368
  %vm2522 = vweird.f32 %v2516
  %vm2523 = vmor %vm2521, %vm2522
  %v2524 = vsel %vm2523, %v2516, %v2520
  %v2525 = vand.u32 2147483647, %v2368
  %vm2526 = vcmp.eq.f32.partialorder %v2525, 8.507059e+37
  %v2527 = vand.u32 %v2368, 2147483648
  %v2528 = vor.u32 1.1754944e-38, %v2527
  %v2529 = vsel %vm2526, %v2528, %v2524
  %v2530 = vrcp.pop %v2371
  %v2531 = vmul.f32 %v2371, %v2530
  %v2532 = vsub.f32 1.0, %v2531
  %v2533 = vmul.f32 %v2530, %v2532
  %v2534 = vadd.f32 %v2530, %v2533
  %vm2535 = vweird.f32 %v2371
  %vm2536 = vweird.f32 %v2530
  %vm2537 = vmor %vm2535, %vm2536
  %v2538 = vsel %vm2537, %v2530, %v2534
  %v2539 = vand.u32 2147483647, %v2371
  %vm2540 = vcmp.eq.f32.partialorder %v2539, 8.507059e+37
  %v2541 = vand.u32 %v2371, 2147483648
  %v2542 = vor.u32 1.1754944e-38, %v2541
  %v2543 = vsel %vm2540, %v2542, %v2538
  %v2544 = vrcp.pop %v2374
  %v2545 = vmul.f32 %v2374, %v2544
  %v2546 = vsub.f32 1.0, %v2545
  %v2547 = vmul.f32 %v2544, %v2546
  %v2548 = vadd.f32 %v2544, %v2547
  %vm2549 = vweird.f32 %v2374
  %vm2550 = vweird.f32 %v2544
  %vm2551 = vmor %vm2549, %vm2550
  %v2552 = vsel %vm2551, %v2544, %v2548
  %v2553 = vand.u32 2147483647, %v2374
  %vm2554 = vcmp.eq.f32.partialorder %v2553, 8.507059e+37
  %v2555 = vand.u32 %v2374, 2147483648
  %v2556 = vor.u32 1.1754944e-38, %v2555
  %v2557 = vsel %vm2554, %v2556, %v2552
  %v2558 = vmul.f32 %v2423, %v2459
  %v2559 = vmul.f32 %v2426, %v2473
  %v2560 = vmul.f32 %v2429, %v2487
  %v2561 = vmul.f32 %v2432, %v2501
  %v2562 = vmul.f32 %v2435, %v2515
  %v2563 = vmul.f32 %v2438, %v2529
  %v2564 = vmul.f32 %v2441, %v2543
  %v2565 = vmul.f32 %v2444, %v2557
  %v2567 = vsel %vm225, %v2558, 0
  %v2570 = vsel %vm225, %v2559, 0
  %v2573 = vsel %vm225, %v2560, 0
  %v2576 = vsel %vm225, %v2561, 0
  %v2579 = vsel %vm225, %v2562, 0
  %v2582 = vsel %vm225, %v2563, 0
  %v2585 = vsel %vm225, %v2564, 0
  %v2588 = vsel %vm225, %v2565, 0
  %2590 = vmatpush.msra.mxu0 0.0
  %2591 = vmatpush.msra.mxu0 0.0
  %2592 = vmatpush.msra.mxu0 0.0
  %2593 = vmatpush.msra.mxu0 0.0
  %2594 = vmatpush.msra.mxu0 0.0
  %2595 = vmatpush.msra.mxu0 0.0
  %2596 = vmatpush.msra.mxu0 0.0
  %2597 = vmatpush.msra.mxu0 0.0
  %2598 = vmatpush.msra.mxu0 0.0
  %2599 = vmatpush.msra.mxu0 0.0
  %2600 = vmatpush.msra.mxu0 0.0
  %2601 = vmatpush.msra.mxu0 0.0
  %2602 = vmatpush.msra.mxu0 0.0
  %2603 = vmatpush.msra.mxu0 0.0
  %2604 = vmatpush.msra.mxu0 0.0
  %2605 = vmatpush.msra.mxu0 %v221
  %2606 = vmatmul.f32.gmra.mxu0 %v2567
  %v2607 = vpop.f32.mrf.mxu0
  %v2608 = vadd.f32 0.0, %v2607
  %2609 = vmatmul.f32.gmra.mxu0 %v2570
  %v2610 = vpop.f32.mrf.mxu0
  %v2611 = vadd.f32 0.0, %v2610
  %2612 = vmatmul.f32.gmra.mxu0 %v2573
  %v2613 = vpop.f32.mrf.mxu0
  %v2614 = vadd.f32 0.0, %v2613
  %2615 = vmatmul.f32.gmra.mxu0 %v2576
  %v2616 = vpop.f32.mrf.mxu0
  %v2617 = vadd.f32 0.0, %v2616
  %2618 = vmatmul.f32.gmra.mxu0 %v2579
  %v2619 = vpop.f32.mrf.mxu0
  %v2620 = vadd.f32 0.0, %v2619
  %2621 = vmatmul.f32.gmra.mxu0 %v2582
  %v2622 = vpop.f32.mrf.mxu0
  %v2623 = vadd.f32 0.0, %v2622
  %2624 = vmatmul.f32.gmra.mxu0 %v2585
  %v2625 = vpop.f32.mrf.mxu0
  %v2626 = vadd.f32 0.0, %v2625
  %2627 = vmatmul.f32.gmra.mxu0 %v2588
  %v2628 = vpop.f32.mrf.mxu0
  %v2629 = vadd.f32 0.0, %v2628
  %2630 = vdwg.mxu0
  %v2632 = vsel %vm225, %v2214, 0
  %v2635 = vsel %vm225, %v2215, 0
  %v2638 = vsel %vm225, %v2216, 0
  %v2641 = vsel %vm225, %v2217, 0
  %v2644 = vsel %vm225, %v2218, 0
  %v2647 = vsel %vm225, %v2219, 0
  %v2650 = vsel %vm225, %v2220, 0
  %v2653 = vsel %vm225, %v2221, 0
  %2655 = vmatpush.msra.mxu0 0.0
  %2656 = vmatpush.msra.mxu0 0.0
  %2657 = vmatpush.msra.mxu0 0.0
  %2658 = vmatpush.msra.mxu0 0.0
  %2659 = vmatpush.msra.mxu0 0.0
  %2660 = vmatpush.msra.mxu0 0.0
  %2661 = vmatpush.msra.mxu0 0.0
  %2662 = vmatpush.msra.mxu0 0.0
  %2663 = vmatpush.msra.mxu0 0.0
  %2664 = vmatpush.msra.mxu0 0.0
  %2665 = vmatpush.msra.mxu0 0.0
  %2666 = vmatpush.msra.mxu0 0.0
  %2667 = vmatpush.msra.mxu0 0.0
  %2668 = vmatpush.msra.mxu0 0.0
  %2669 = vmatpush.msra.mxu0 0.0
  %2670 = vmatpush.msra.mxu0 %v220
  %2671 = vmatmul.f32.gmra.mxu0 %v2632
  %v2672 = vpop.f32.mrf.mxu0
  %v2673 = vadd.f32 %v2608, %v2672
  %2674 = vmatmul.f32.gmra.mxu0 %v2635
  %v2675 = vpop.f32.mrf.mxu0
  %v2676 = vadd.f32 %v2611, %v2675
  %2677 = vmatmul.f32.gmra.mxu0 %v2638
  %v2678 = vpop.f32.mrf.mxu0
  %v2679 = vadd.f32 %v2614, %v2678
  %2680 = vmatmul.f32.gmra.mxu0 %v2641
  %v2681 = vpop.f32.mrf.mxu0
  %v2682 = vadd.f32 %v2617, %v2681
  %2683 = vmatmul.f32.gmra.mxu0 %v2644
  %v2684 = vpop.f32.mrf.mxu0
  %v2685 = vadd.f32 %v2620, %v2684
  %2686 = vmatmul.f32.gmra.mxu0 %v2647
  %v2687 = vpop.f32.mrf.mxu0
  %v2688 = vadd.f32 %v2623, %v2687
  %2689 = vmatmul.f32.gmra.mxu0 %v2650
  %v2690 = vpop.f32.mrf.mxu0
  %v2691 = vadd.f32 %v2626, %v2690
  %2692 = vmatmul.f32.gmra.mxu0 %v2653
  %v2693 = vpop.f32.mrf.mxu0
  %v2694 = vadd.f32 %v2629, %v2693
  %2695 = vdwg.mxu0
  %2696 = vrot.lane.b32.xlu0 %v144, 112
  %v2697 = vpop.permute.xlu0 %2696
  %2698 = vrot.lane.b32.xlu0 %v147, 112
  %v2699 = vpop.permute.xlu0 %2698
  %2700 = vrot.lane.b32.xlu0 %v150, 112
  %v2701 = vpop.permute.xlu0 %2700
  %2702 = vrot.lane.b32.xlu0 %v153, 112
  %v2703 = vpop.permute.xlu0 %2702
  %2704 = vrot.lane.b32.xlu0 %v156, 112
  %v2705 = vpop.permute.xlu0 %2704
  %2706 = vrot.lane.b32.xlu0 %v159, 112
  %v2707 = vpop.permute.xlu0 %2706
  %2708 = vrot.lane.b32.xlu0 %v162, 112
  %v2709 = vpop.permute.xlu0 %2708
  %2710 = vrot.lane.b32.xlu0 %v165, 112
  %v2711 = vpop.permute.xlu0 %2710
  %2712 = vrot.lane.b32.xlu0 %v215, 112
  %v2713 = vpop.permute.xlu0 %2712
  %2714 = vrot.lane.b32.xlu0 %v218, 112
  %v2715 = vpop.permute.xlu0 %2714
  %v2716 = vsel %vm225, %v2697, 0
  %v2718 = vsel %vm225, %v2699, 0
  %v2720 = vsel %vm225, %v2701, 0
  %v2722 = vsel %vm225, %v2703, 0
  %v2724 = vsel %vm225, %v2705, 0
  %v2726 = vsel %vm225, %v2707, 0
  %v2728 = vsel %vm225, %v2709, 0
  %v2730 = vsel %vm225, %v2711, 0
  %v2732 = vsel %vm225, %v2713, 0
  %v2734 = vsel %vm225, %v2715, 0
  %2736 = vmatpush.xpose.msra.mxu0 0.0
  %2737 = vmatpush.xpose.msra.mxu0 0.0
  %2738 = vmatpush.xpose.msra.mxu0 0.0
  %2739 = vmatpush.xpose.msra.mxu0 0.0
  %2740 = vmatpush.xpose.msra.mxu0 0.0
  %2741 = vmatpush.xpose.msra.mxu0 0.0
  %2742 = vmatpush.xpose.msra.mxu0 0.0
  %2743 = vmatpush.xpose.msra.mxu0 0.0
  %2744 = vmatpush.xpose.msra.mxu0 0.0
  %2745 = vmatpush.xpose.msra.mxu0 0.0
  %2746 = vmatpush.xpose.msra.mxu0 0.0
  %2747 = vmatpush.xpose.msra.mxu0 0.0
  %2748 = vmatpush.xpose.msra.mxu0 0.0
  %2749 = vmatpush.xpose.msra.mxu0 0.0
  %2750 = vmatpush.xpose.msra.mxu0 %v2734
  %2751 = vmatpush.xpose.msra.mxu0 %v2732
  %2752 = vmatmul.f32.gmra.mxu0 %v2716
  %v2753 = vpop.f32.mrf.mxu0
  %v2754 = vadd.f32 0.0, %v2753
  %2755 = vmatmul.f32.gmra.mxu0 %v2718
  %v2756 = vpop.f32.mrf.mxu0
  %v2757 = vadd.f32 0.0, %v2756
  %2758 = vmatmul.f32.gmra.mxu0 %v2720
  %v2759 = vpop.f32.mrf.mxu0
  %v2760 = vadd.f32 0.0, %v2759
  %2761 = vmatmul.f32.gmra.mxu0 %v2722
  %v2762 = vpop.f32.mrf.mxu0
  %v2763 = vadd.f32 0.0, %v2762
  %2764 = vmatmul.f32.gmra.mxu0 %v2724
  %v2765 = vpop.f32.mrf.mxu0
  %v2766 = vadd.f32 0.0, %v2765
  %2767 = vmatmul.f32.gmra.mxu0 %v2726
  %v2768 = vpop.f32.mrf.mxu0
  %v2769 = vadd.f32 0.0, %v2768
  %2770 = vmatmul.f32.gmra.mxu0 %v2728
  %v2771 = vpop.f32.mrf.mxu0
  %v2772 = vadd.f32 0.0, %v2771
  %2773 = vmatmul.f32.gmra.mxu0 %v2730
  %v2774 = vpop.f32.mrf.mxu0
  %v2775 = vadd.f32 0.0, %v2774
  %2776 = vdwg.mxu0
  %v2777 = vsel %vm297, %v2754, -inf
  %2778 = vmax.xlane.f32.xlu0 %v2777
  %v2779 = vpop.xlane.xlu0 %2778
  %v2780 = vsel %vm297, %v2757, -inf
  %2781 = vmax.xlane.f32.xlu0 %v2780
  %v2782 = vpop.xlane.xlu0 %2781
  %v2783 = vsel %vm297, %v2760, -inf
  %2784 = vmax.xlane.f32.xlu0 %v2783
  %v2785 = vpop.xlane.xlu0 %2784
  %v2786 = vsel %vm297, %v2763, -inf
  %2787 = vmax.xlane.f32.xlu0 %v2786
  %v2788 = vpop.xlane.xlu0 %2787
  %v2789 = vsel %vm297, %v2766, -inf
  %2790 = vmax.xlane.f32.xlu0 %v2789
  %v2791 = vpop.xlane.xlu0 %2790
  %v2792 = vsel %vm297, %v2769, -inf
  %2793 = vmax.xlane.f32.xlu0 %v2792
  %v2794 = vpop.xlane.xlu0 %2793
  %v2795 = vsel %vm297, %v2772, -inf
  %2796 = vmax.xlane.f32.xlu0 %v2795
  %v2797 = vpop.xlane.xlu0 %2796
  %v2798 = vsel %vm297, %v2775, -inf
  %2799 = vmax.xlane.f32.xlu0 %v2798
  %v2800 = vpop.xlane.xlu0 %2799
  %v2801 = vsub.f32 %v2754, %v2779
  %v2802 = vsub.f32 %v2757, %v2782
  %v2803 = vsub.f32 %v2760, %v2785
  %v2804 = vsub.f32 %v2763, %v2788
  %v2805 = vsub.f32 %v2766, %v2791
  %v2806 = vsub.f32 %v2769, %v2794
  %v2807 = vsub.f32 %v2772, %v2797
  %v2808 = vsub.f32 %v2775, %v2800
  %v2809 = vmul.f32 %v2801, 1.442695
  %v2810 = vpow.pop %v2809
  %v2811 = vmul.f32 %v2802, 1.442695
  %v2812 = vpow.pop %v2811
  %v2813 = vmul.f32 %v2803, 1.442695
  %v2814 = vpow.pop %v2813
  %v2815 = vmul.f32 %v2804, 1.442695
  %v2816 = vpow.pop %v2815
  %v2817 = vmul.f32 %v2805, 1.442695
  %v2818 = vpow.pop %v2817
  %v2819 = vmul.f32 %v2806, 1.442695
  %v2820 = vpow.pop %v2819
  %v2821 = vmul.f32 %v2807, 1.442695
  %v2822 = vpow.pop %v2821
  %v2823 = vmul.f32 %v2808, 1.442695
  %v2824 = vpow.pop %v2823
  %v2825 = vsel %vm297, %v2810, 0.0
  %2826 = vadd.xlane.f32.xlu0 %v2825
  %v2827 = vpop.xlane.xlu0 %2826
  %v2828 = vsel %vm297, %v2812, 0.0
  %2829 = vadd.xlane.f32.xlu0 %v2828
  %v2830 = vpop.xlane.xlu0 %2829
  %v2831 = vsel %vm297, %v2814, 0.0
  %2832 = vadd.xlane.f32.xlu0 %v2831
  %v2833 = vpop.xlane.xlu0 %2832
  %v2834 = vsel %vm297, %v2816, 0.0
  %2835 = vadd.xlane.f32.xlu0 %v2834
  %v2836 = vpop.xlane.xlu0 %2835
  %v2837 = vsel %vm297, %v2818, 0.0
  %2838 = vadd.xlane.f32.xlu0 %v2837
  %v2839 = vpop.xlane.xlu0 %2838
  %v2840 = vsel %vm297, %v2820, 0.0
  %2841 = vadd.xlane.f32.xlu0 %v2840
  %v2842 = vpop.xlane.xlu0 %2841
  %v2843 = vsel %vm297, %v2822, 0.0
  %2844 = vadd.xlane.f32.xlu0 %v2843
  %v2845 = vpop.xlane.xlu0 %2844
  %v2846 = vsel %vm297, %v2824, 0.0
  %2847 = vadd.xlane.f32.xlu0 %v2846
  %v2848 = vpop.xlane.xlu0 %2847
  %2849 = vrot.lane.b32.xlu0 %v215, 80
  %v2850 = vpop.permute.xlu0 %2849
  %2851 = vrot.lane.b32.xlu0 %v218, 80
  %v2852 = vpop.permute.xlu0 %2851
  %v2856 = vsel %vm297, %v2810, 0
  %v2859 = vsel %vm297, %v2812, 0
  %v2862 = vsel %vm297, %v2814, 0
  %v2865 = vsel %vm297, %v2816, 0
  %v2868 = vsel %vm297, %v2818, 0
  %v2871 = vsel %vm297, %v2820, 0
  %v2874 = vsel %vm297, %v2822, 0
  %v2877 = vsel %vm297, %v2824, 0
  %2879 = vmatpush.msra.mxu0 0.0
  %2880 = vmatpush.msra.mxu0 0.0
  %2881 = vmatpush.msra.mxu0 0.0
  %2882 = vmatpush.msra.mxu0 0.0
  %2883 = vmatpush.msra.mxu0 0.0
  %2884 = vmatpush.msra.mxu0 0.0
  %2885 = vmatpush.msra.mxu0 0.0
  %2886 = vmatpush.msra.mxu0 0.0
  %2887 = vmatpush.msra.mxu0 0.0
  %2888 = vmatpush.msra.mxu0 0.0
  %2889 = vmatpush.msra.mxu0 0.0
  %2890 = vmatpush.msra.mxu0 0.0
  %2891 = vmatpush.msra.mxu0 0.0
  %2892 = vmatpush.msra.mxu0 0.0
  %2893 = vmatpush.msra.mxu0 %v2852
  %2894 = vmatpush.msra.mxu0 %v2850
  %2895 = vmatmul.f32.gmra.mxu0 %v2856
  %v2896 = vpop.f32.mrf.mxu0
  %v2897 = vadd.f32 0.0, %v2896
  %2898 = vmatmul.f32.gmra.mxu0 %v2859
  %v2899 = vpop.f32.mrf.mxu0
  %v2900 = vadd.f32 0.0, %v2899
  %2901 = vmatmul.f32.gmra.mxu0 %v2862
  %v2902 = vpop.f32.mrf.mxu0
  %v2903 = vadd.f32 0.0, %v2902
  %2904 = vmatmul.f32.gmra.mxu0 %v2865
  %v2905 = vpop.f32.mrf.mxu0
  %v2906 = vadd.f32 0.0, %v2905
  %2907 = vmatmul.f32.gmra.mxu0 %v2868
  %v2908 = vpop.f32.mrf.mxu0
  %v2909 = vadd.f32 0.0, %v2908
  %2910 = vmatmul.f32.gmra.mxu0 %v2871
  %v2911 = vpop.f32.mrf.mxu0
  %v2912 = vadd.f32 0.0, %v2911
  %2913 = vmatmul.f32.gmra.mxu0 %v2874
  %v2914 = vpop.f32.mrf.mxu0
  %v2915 = vadd.f32 0.0, %v2914
  %2916 = vmatmul.f32.gmra.mxu0 %v2877
  %v2917 = vpop.f32.mrf.mxu0
  %v2918 = vadd.f32 0.0, %v2917
  %2919 = vdwg.mxu0
  %v2920 = vrcp.pop %v2827
  %v2921 = vmul.f32 %v2827, %v2920
  %v2922 = vsub.f32 1.0, %v2921
  %v2923 = vmul.f32 %v2920, %v2922
  %v2924 = vadd.f32 %v2920, %v2923
  %vm2925 = vweird.f32 %v2827
  %vm2926 = vweird.f32 %v2920
  %vm2927 = vmor %vm2925, %vm2926
  %v2928 = vsel %vm2927, %v2920, %v2924
  %v2929 = vand.u32 2147483647, %v2827
  %vm2930 = vcmp.eq.f32.partialorder %v2929, 8.507059e+37
  %v2931 = vand.u32 %v2827, 2147483648
  %v2932 = vor.u32 1.1754944e-38, %v2931
  %v2933 = vsel %vm2930, %v2932, %v2928
  %v2934 = vrcp.pop %v2830
  %v2935 = vmul.f32 %v2830, %v2934
  %v2936 = vsub.f32 1.0, %v2935
  %v2937 = vmul.f32 %v2934, %v2936
  %v2938 = vadd.f32 %v2934, %v2937
  %vm2939 = vweird.f32 %v2830
  %vm2940 = vweird.f32 %v2934
  %vm2941 = vmor %vm2939, %vm2940
  %v2942 = vsel %vm2941, %v2934, %v2938
  %v2943 = vand.u32 2147483647, %v2830
  %vm2944 = vcmp.eq.f32.partialorder %v2943, 8.507059e+37
  %v2945 = vand.u32 %v2830, 2147483648
  %v2946 = vor.u32 1.1754944e-38, %v2945
  %v2947 = vsel %vm2944, %v2946, %v2942
  %v2948 = vrcp.pop %v2833
  %v2949 = vmul.f32 %v2833, %v2948
  %v2950 = vsub.f32 1.0, %v2949
  %v2951 = vmul.f32 %v2948, %v2950
  %v2952 = vadd.f32 %v2948, %v2951
  %vm2953 = vweird.f32 %v2833
  %vm2954 = vweird.f32 %v2948
  %vm2955 = vmor %vm2953, %vm2954
  %v2956 = vsel %vm2955, %v2948, %v2952
  %v2957 = vand.u32 2147483647, %v2833
  %vm2958 = vcmp.eq.f32.partialorder %v2957, 8.507059e+37
  %v2959 = vand.u32 %v2833, 2147483648
  %v2960 = vor.u32 1.1754944e-38, %v2959
  %v2961 = vsel %vm2958, %v2960, %v2956
  %v2962 = vrcp.pop %v2836
  %v2963 = vmul.f32 %v2836, %v2962
  %v2964 = vsub.f32 1.0, %v2963
  %v2965 = vmul.f32 %v2962, %v2964
  %v2966 = vadd.f32 %v2962, %v2965
  %vm2967 = vweird.f32 %v2836
  %vm2968 = vweird.f32 %v2962
  %vm2969 = vmor %vm2967, %vm2968
  %v2970 = vsel %vm2969, %v2962, %v2966
  %v2971 = vand.u32 2147483647, %v2836
  %vm2972 = vcmp.eq.f32.partialorder %v2971, 8.507059e+37
  %v2973 = vand.u32 %v2836, 2147483648
  %v2974 = vor.u32 1.1754944e-38, %v2973
  %v2975 = vsel %vm2972, %v2974, %v2970
  %v2976 = vrcp.pop %v2839
  %v2977 = vmul.f32 %v2839, %v2976
  %v2978 = vsub.f32 1.0, %v2977
  %v2979 = vmul.f32 %v2976, %v2978
  %v2980 = vadd.f32 %v2976, %v2979
  %vm2981 = vweird.f32 %v2839
  %vm2982 = vweird.f32 %v2976
  %vm2983 = vmor %vm2981, %vm2982
  %v2984 = vsel %vm2983, %v2976, %v2980
  %v2985 = vand.u32 2147483647, %v2839
  %vm2986 = vcmp.eq.f32.partialorder %v2985, 8.507059e+37
  %v2987 = vand.u32 %v2839, 2147483648
  %v2988 = vor.u32 1.1754944e-38, %v2987
  %v2989 = vsel %vm2986, %v2988, %v2984
  %v2990 = vrcp.pop %v2842
  %v2991 = vmul.f32 %v2842, %v2990
  %v2992 = vsub.f32 1.0, %v2991
  %v2993 = vmul.f32 %v2990, %v2992
  %v2994 = vadd.f32 %v2990, %v2993
  %vm2995 = vweird.f32 %v2842
  %vm2996 = vweird.f32 %v2990
  %vm2997 = vmor %vm2995, %vm2996
  %v2998 = vsel %vm2997, %v2990, %v2994
  %v2999 = vand.u32 2147483647, %v2842
  %vm3000 = vcmp.eq.f32.partialorder %v2999, 8.507059e+37
  %v3001 = vand.u32 %v2842, 2147483648
  %v3002 = vor.u32 1.1754944e-38, %v3001
  %v3003 = vsel %vm3000, %v3002, %v2998
  %v3004 = vrcp.pop %v2845
  %v3005 = vmul.f32 %v2845, %v3004
  %v3006 = vsub.f32 1.0, %v3005
  %v3007 = vmul.f32 %v3004, %v3006
  %v3008 = vadd.f32 %v3004, %v3007
  %vm3009 = vweird.f32 %v2845
  %vm3010 = vweird.f32 %v3004
  %vm3011 = vmor %vm3009, %vm3010
  %v3012 = vsel %vm3011, %v3004, %v3008
  %v3013 = vand.u32 2147483647, %v2845
  %vm3014 = vcmp.eq.f32.partialorder %v3013, 8.507059e+37
  %v3015 = vand.u32 %v2845, 2147483648
  %v3016 = vor.u32 1.1754944e-38, %v3015
  %v3017 = vsel %vm3014, %v3016, %v3012
  %v3018 = vrcp.pop %v2848
  %v3019 = vmul.f32 %v2848, %v3018
  %v3020 = vsub.f32 1.0, %v3019
  %v3021 = vmul.f32 %v3018, %v3020
  %v3022 = vadd.f32 %v3018, %v3021
  %vm3023 = vweird.f32 %v2848
  %vm3024 = vweird.f32 %v3018
  %vm3025 = vmor %vm3023, %vm3024
  %v3026 = vsel %vm3025, %v3018, %v3022
  %v3027 = vand.u32 2147483647, %v2848
  %vm3028 = vcmp.eq.f32.partialorder %v3027, 8.507059e+37
  %v3029 = vand.u32 %v2848, 2147483648
  %v3030 = vor.u32 1.1754944e-38, %v3029
  %v3031 = vsel %vm3028, %v3030, %v3026
  %v3032 = vmul.f32 %v2897, %v2933
  %v3033 = vmul.f32 %v2900, %v2947
  %v3034 = vmul.f32 %v2903, %v2961
  %v3035 = vmul.f32 %v2906, %v2975
  %v3036 = vmul.f32 %v2909, %v2989
  %v3037 = vmul.f32 %v2912, %v3003
  %v3038 = vmul.f32 %v2915, %v3017
  %v3039 = vmul.f32 %v2918, %v3031
  %v3041 = vsel %vm225, %v3032, 0
  %v3044 = vsel %vm225, %v3033, 0
  %v3047 = vsel %vm225, %v3034, 0
  %v3050 = vsel %vm225, %v3035, 0
  %v3053 = vsel %vm225, %v3036, 0
  %v3056 = vsel %vm225, %v3037, 0
  %v3059 = vsel %vm225, %v3038, 0
  %v3062 = vsel %vm225, %v3039, 0
  %3064 = vmatpush.msra.mxu0 0.0
  %3065 = vmatpush.msra.mxu0 0.0
  %3066 = vmatpush.msra.mxu0 0.0
  %3067 = vmatpush.msra.mxu0 0.0
  %3068 = vmatpush.msra.mxu0 0.0
  %3069 = vmatpush.msra.mxu0 0.0
  %3070 = vmatpush.msra.mxu0 0.0
  %3071 = vmatpush.msra.mxu0 0.0
  %3072 = vmatpush.msra.mxu0 0.0
  %3073 = vmatpush.msra.mxu0 0.0
  %3074 = vmatpush.msra.mxu0 0.0
  %3075 = vmatpush.msra.mxu0 0.0
  %3076 = vmatpush.msra.mxu0 0.0
  %3077 = vmatpush.msra.mxu0 0.0
  %3078 = vmatpush.msra.mxu0 0.0
  %3079 = vmatpush.msra.mxu0 %v222
  %3080 = vmatmul.f32.gmra.mxu0 %v3041
  %v3081 = vpop.f32.mrf.mxu0
  %v3082 = vadd.f32 0.0, %v3081
  %3083 = vmatmul.f32.gmra.mxu0 %v3044
  %v3084 = vpop.f32.mrf.mxu0
  %v3085 = vadd.f32 0.0, %v3084
  %3086 = vmatmul.f32.gmra.mxu0 %v3047
  %v3087 = vpop.f32.mrf.mxu0
  %v3088 = vadd.f32 0.0, %v3087
  %3089 = vmatmul.f32.gmra.mxu0 %v3050
  %v3090 = vpop.f32.mrf.mxu0
  %v3091 = vadd.f32 0.0, %v3090
  %3092 = vmatmul.f32.gmra.mxu0 %v3053
  %v3093 = vpop.f32.mrf.mxu0
  %v3094 = vadd.f32 0.0, %v3093
  %3095 = vmatmul.f32.gmra.mxu0 %v3056
  %v3096 = vpop.f32.mrf.mxu0
  %v3097 = vadd.f32 0.0, %v3096
  %3098 = vmatmul.f32.gmra.mxu0 %v3059
  %v3099 = vpop.f32.mrf.mxu0
  %v3100 = vadd.f32 0.0, %v3099
  %3101 = vmatmul.f32.gmra.mxu0 %v3062
  %v3102 = vpop.f32.mrf.mxu0
  %v3103 = vadd.f32 0.0, %v3102
  %3104 = vdwg.mxu0
  %v3105 = vadd.f32 %v2673, %v3082
  %v3106 = vadd.f32 %v2676, %v3085
  %v3107 = vadd.f32 %v2679, %v3088
  %v3108 = vadd.f32 %v2682, %v3091
  %v3109 = vadd.f32 %v2685, %v3094
  %v3110 = vadd.f32 %v2688, %v3097
  %v3111 = vadd.f32 %v2691, %v3100
  %v3112 = vadd.f32 %v2694, %v3103
  %3113 = vrot.lane.b32.xlu0 %v144, 104
  %v3114 = vpop.permute.xlu0 %3113
  %3115 = vrot.lane.b32.xlu0 %v147, 104
  %v3116 = vpop.permute.xlu0 %3115
  %3117 = vrot.lane.b32.xlu0 %v150, 104
  %v3118 = vpop.permute.xlu0 %3117
  %3119 = vrot.lane.b32.xlu0 %v153, 104
  %v3120 = vpop.permute.xlu0 %3119
  %3121 = vrot.lane.b32.xlu0 %v156, 104
  %v3122 = vpop.permute.xlu0 %3121
  %3123 = vrot.lane.b32.xlu0 %v159, 104
  %v3124 = vpop.permute.xlu0 %3123
  %3125 = vrot.lane.b32.xlu0 %v162, 104
  %v3126 = vpop.permute.xlu0 %3125
  %3127 = vrot.lane.b32.xlu0 %v165, 104
  %v3128 = vpop.permute.xlu0 %3127
  %3129 = vrot.lane.b32.xlu0 %v215, 104
  %v3130 = vpop.permute.xlu0 %3129
  %3131 = vrot.lane.b32.xlu0 %v218, 104
  %v3132 = vpop.permute.xlu0 %3131
  %v3133 = vsel %vm225, %v3114, 0
  %v3135 = vsel %vm225, %v3116, 0
  %v3137 = vsel %vm225, %v3118, 0
  %v3139 = vsel %vm225, %v3120, 0
  %v3141 = vsel %vm225, %v3122, 0
  %v3143 = vsel %vm225, %v3124, 0
  %v3145 = vsel %vm225, %v3126, 0
  %v3147 = vsel %vm225, %v3128, 0
  %v3149 = vsel %vm225, %v3130, 0
  %v3151 = vsel %vm225, %v3132, 0
  %3153 = vmatpush.xpose.msra.mxu0 0.0
  %3154 = vmatpush.xpose.msra.mxu0 0.0
  %3155 = vmatpush.xpose.msra.mxu0 0.0
  %3156 = vmatpush.xpose.msra.mxu0 0.0
  %3157 = vmatpush.xpose.msra.mxu0 0.0
  %3158 = vmatpush.xpose.msra.mxu0 0.0
  %3159 = vmatpush.xpose.msra.mxu0 0.0
  %3160 = vmatpush.xpose.msra.mxu0 0.0
  %3161 = vmatpush.xpose.msra.mxu0 0.0
  %3162 = vmatpush.xpose.msra.mxu0 0.0
  %3163 = vmatpush.xpose.msra.mxu0 0.0
  %3164 = vmatpush.xpose.msra.mxu0 0.0
  %3165 = vmatpush.xpose.msra.mxu0 0.0
  %3166 = vmatpush.xpose.msra.mxu0 0.0
  %3167 = vmatpush.xpose.msra.mxu0 %v3151
  %3168 = vmatpush.xpose.msra.mxu0 %v3149
  %3169 = vmatmul.f32.gmra.mxu0 %v3133
  %v3170 = vpop.f32.mrf.mxu0
  %v3171 = vadd.f32 0.0, %v3170
  %3172 = vmatmul.f32.gmra.mxu0 %v3135
  %v3173 = vpop.f32.mrf.mxu0
  %v3174 = vadd.f32 0.0, %v3173
  %3175 = vmatmul.f32.gmra.mxu0 %v3137
  %v3176 = vpop.f32.mrf.mxu0
  %v3177 = vadd.f32 0.0, %v3176
  %3178 = vmatmul.f32.gmra.mxu0 %v3139
  %v3179 = vpop.f32.mrf.mxu0
  %v3180 = vadd.f32 0.0, %v3179
  %3181 = vmatmul.f32.gmra.mxu0 %v3141
  %v3182 = vpop.f32.mrf.mxu0
  %v3183 = vadd.f32 0.0, %v3182
  %3184 = vmatmul.f32.gmra.mxu0 %v3143
  %v3185 = vpop.f32.mrf.mxu0
  %v3186 = vadd.f32 0.0, %v3185
  %3187 = vmatmul.f32.gmra.mxu0 %v3145
  %v3188 = vpop.f32.mrf.mxu0
  %v3189 = vadd.f32 0.0, %v3188
  %3190 = vmatmul.f32.gmra.mxu0 %v3147
  %v3191 = vpop.f32.mrf.mxu0
  %v3192 = vadd.f32 0.0, %v3191
  %3193 = vdwg.mxu0
  %v3194 = vsel %vm297, %v3171, -inf
  %3195 = vmax.xlane.f32.xlu0 %v3194
  %v3196 = vpop.xlane.xlu0 %3195
  %v3197 = vsel %vm297, %v3174, -inf
  %3198 = vmax.xlane.f32.xlu0 %v3197
  %v3199 = vpop.xlane.xlu0 %3198
  %v3200 = vsel %vm297, %v3177, -inf
  %3201 = vmax.xlane.f32.xlu0 %v3200
  %v3202 = vpop.xlane.xlu0 %3201
  %v3203 = vsel %vm297, %v3180, -inf
  %3204 = vmax.xlane.f32.xlu0 %v3203
  %v3205 = vpop.xlane.xlu0 %3204
  %v3206 = vsel %vm297, %v3183, -inf
  %3207 = vmax.xlane.f32.xlu0 %v3206
  %v3208 = vpop.xlane.xlu0 %3207
  %v3209 = vsel %vm297, %v3186, -inf
  %3210 = vmax.xlane.f32.xlu0 %v3209
  %v3211 = vpop.xlane.xlu0 %3210
  %v3212 = vsel %vm297, %v3189, -inf
  %3213 = vmax.xlane.f32.xlu0 %v3212
  %v3214 = vpop.xlane.xlu0 %3213
  %v3215 = vsel %vm297, %v3192, -inf
  %3216 = vmax.xlane.f32.xlu0 %v3215
  %v3217 = vpop.xlane.xlu0 %3216
  %v3218 = vsub.f32 %v3171, %v3196
  %v3219 = vsub.f32 %v3174, %v3199
  %v3220 = vsub.f32 %v3177, %v3202
  %v3221 = vsub.f32 %v3180, %v3205
  %v3222 = vsub.f32 %v3183, %v3208
  %v3223 = vsub.f32 %v3186, %v3211
  %v3224 = vsub.f32 %v3189, %v3214
  %v3225 = vsub.f32 %v3192, %v3217
  %v3226 = vmul.f32 %v3218, 1.442695
  %v3227 = vpow.pop %v3226
  %v3228 = vmul.f32 %v3219, 1.442695
  %v3229 = vpow.pop %v3228
  %v3230 = vmul.f32 %v3220, 1.442695
  %v3231 = vpow.pop %v3230
  %v3232 = vmul.f32 %v3221, 1.442695
  %v3233 = vpow.pop %v3232
  %v3234 = vmul.f32 %v3222, 1.442695
  %v3235 = vpow.pop %v3234
  %v3236 = vmul.f32 %v3223, 1.442695
  %v3237 = vpow.pop %v3236
  %v3238 = vmul.f32 %v3224, 1.442695
  %v3239 = vpow.pop %v3238
  %v3240 = vmul.f32 %v3225, 1.442695
  %v3241 = vpow.pop %v3240
  %v3242 = vsel %vm297, %v3227, 0.0
  %3243 = vadd.xlane.f32.xlu0 %v3242
  %v3244 = vpop.xlane.xlu0 %3243
  %v3245 = vsel %vm297, %v3229, 0.0
  %3246 = vadd.xlane.f32.xlu0 %v3245
  %v3247 = vpop.xlane.xlu0 %3246
  %v3248 = vsel %vm297, %v3231, 0.0
  %3249 = vadd.xlane.f32.xlu0 %v3248
  %v3250 = vpop.xlane.xlu0 %3249
  %v3251 = vsel %vm297, %v3233, 0.0
  %3252 = vadd.xlane.f32.xlu0 %v3251
  %v3253 = vpop.xlane.xlu0 %3252
  %v3254 = vsel %vm297, %v3235, 0.0
  %3255 = vadd.xlane.f32.xlu0 %v3254
  %v3256 = vpop.xlane.xlu0 %3255
  %v3257 = vsel %vm297, %v3237, 0.0
  %3258 = vadd.xlane.f32.xlu0 %v3257
  %v3259 = vpop.xlane.xlu0 %3258
  %v3260 = vsel %vm297, %v3239, 0.0
  %3261 = vadd.xlane.f32.xlu0 %v3260
  %v3262 = vpop.xlane.xlu0 %3261
  %v3263 = vsel %vm297, %v3241, 0.0
  %3264 = vadd.xlane.f32.xlu0 %v3263
  %v3265 = vpop.xlane.xlu0 %3264
  %3266 = vrot.lane.b32.xlu0 %v215, 72
  %v3267 = vpop.permute.xlu0 %3266
  %3268 = vrot.lane.b32.xlu0 %v218, 72
  %v3269 = vpop.permute.xlu0 %3268
  %v3273 = vsel %vm297, %v3227, 0
  %v3276 = vsel %vm297, %v3229, 0
  %v3279 = vsel %vm297, %v3231, 0
  %v3282 = vsel %vm297, %v3233, 0
  %v3285 = vsel %vm297, %v3235, 0
  %v3288 = vsel %vm297, %v3237, 0
  %v3291 = vsel %vm297, %v3239, 0
  %v3294 = vsel %vm297, %v3241, 0
  %3296 = vmatpush.msra.mxu0 0.0
  %3297 = vmatpush.msra.mxu0 0.0
  %3298 = vmatpush.msra.mxu0 0.0
  %3299 = vmatpush.msra.mxu0 0.0
  %3300 = vmatpush.msra.mxu0 0.0
  %3301 = vmatpush.msra.mxu0 0.0
  %3302 = vmatpush.msra.mxu0 0.0
  %3303 = vmatpush.msra.mxu0 0.0
  %3304 = vmatpush.msra.mxu0 0.0
  %3305 = vmatpush.msra.mxu0 0.0
  %3306 = vmatpush.msra.mxu0 0.0
  %3307 = vmatpush.msra.mxu0 0.0
  %3308 = vmatpush.msra.mxu0 0.0
  %3309 = vmatpush.msra.mxu0 0.0
  %3310 = vmatpush.msra.mxu0 %v3269
  %3311 = vmatpush.msra.mxu0 %v3267
  %3312 = vmatmul.f32.gmra.mxu0 %v3273
  %v3313 = vpop.f32.mrf.mxu0
  %v3314 = vadd.f32 0.0, %v3313
  %3315 = vmatmul.f32.gmra.mxu0 %v3276
  %v3316 = vpop.f32.mrf.mxu0
  %v3317 = vadd.f32 0.0, %v3316
  %3318 = vmatmul.f32.gmra.mxu0 %v3279
  %v3319 = vpop.f32.mrf.mxu0
  %v3320 = vadd.f32 0.0, %v3319
  %3321 = vmatmul.f32.gmra.mxu0 %v3282
  %v3322 = vpop.f32.mrf.mxu0
  %v3323 = vadd.f32 0.0, %v3322
  %3324 = vmatmul.f32.gmra.mxu0 %v3285
  %v3325 = vpop.f32.mrf.mxu0
  %v3326 = vadd.f32 0.0, %v3325
  %3327 = vmatmul.f32.gmra.mxu0 %v3288
  %v3328 = vpop.f32.mrf.mxu0
  %v3329 = vadd.f32 0.0, %v3328
  %3330 = vmatmul.f32.gmra.mxu0 %v3291
  %v3331 = vpop.f32.mrf.mxu0
  %v3332 = vadd.f32 0.0, %v3331
  %3333 = vmatmul.f32.gmra.mxu0 %v3294
  %v3334 = vpop.f32.mrf.mxu0
  %v3335 = vadd.f32 0.0, %v3334
  %3336 = vdwg.mxu0
  %v3337 = vrcp.pop %v3244
  %v3338 = vmul.f32 %v3244, %v3337
  %v3339 = vsub.f32 1.0, %v3338
  %v3340 = vmul.f32 %v3337, %v3339
  %v3341 = vadd.f32 %v3337, %v3340
  %vm3342 = vweird.f32 %v3244
  %vm3343 = vweird.f32 %v3337
  %vm3344 = vmor %vm3342, %vm3343
  %v3345 = vsel %vm3344, %v3337, %v3341
  %v3346 = vand.u32 2147483647, %v3244
  %vm3347 = vcmp.eq.f32.partialorder %v3346, 8.507059e+37
  %v3348 = vand.u32 %v3244, 2147483648
  %v3349 = vor.u32 1.1754944e-38, %v3348
  %v3350 = vsel %vm3347, %v3349, %v3345
  %v3351 = vrcp.pop %v3247
  %v3352 = vmul.f32 %v3247, %v3351
  %v3353 = vsub.f32 1.0, %v3352
  %v3354 = vmul.f32 %v3351, %v3353
  %v3355 = vadd.f32 %v3351, %v3354
  %vm3356 = vweird.f32 %v3247
  %vm3357 = vweird.f32 %v3351
  %vm3358 = vmor %vm3356, %vm3357
  %v3359 = vsel %vm3358, %v3351, %v3355
  %v3360 = vand.u32 2147483647, %v3247
  %vm3361 = vcmp.eq.f32.partialorder %v3360, 8.507059e+37
  %v3362 = vand.u32 %v3247, 2147483648
  %v3363 = vor.u32 1.1754944e-38, %v3362
  %v3364 = vsel %vm3361, %v3363, %v3359
  %v3365 = vrcp.pop %v3250
  %v3366 = vmul.f32 %v3250, %v3365
  %v3367 = vsub.f32 1.0, %v3366
  %v3368 = vmul.f32 %v3365, %v3367
  %v3369 = vadd.f32 %v3365, %v3368
  %vm3370 = vweird.f32 %v3250
  %vm3371 = vweird.f32 %v3365
  %vm3372 = vmor %vm3370, %vm3371
  %v3373 = vsel %vm3372, %v3365, %v3369
  %v3374 = vand.u32 2147483647, %v3250
  %vm3375 = vcmp.eq.f32.partialorder %v3374, 8.507059e+37
  %v3376 = vand.u32 %v3250, 2147483648
  %v3377 = vor.u32 1.1754944e-38, %v3376
  %v3378 = vsel %vm3375, %v3377, %v3373
  %v3379 = vrcp.pop %v3253
  %v3380 = vmul.f32 %v3253, %v3379
  %v3381 = vsub.f32 1.0, %v3380
  %v3382 = vmul.f32 %v3379, %v3381
  %v3383 = vadd.f32 %v3379, %v3382
  %vm3384 = vweird.f32 %v3253
  %vm3385 = vweird.f32 %v3379
  %vm3386 = vmor %vm3384, %vm3385
  %v3387 = vsel %vm3386, %v3379, %v3383
  %v3388 = vand.u32 2147483647, %v3253
  %vm3389 = vcmp.eq.f32.partialorder %v3388, 8.507059e+37
  %v3390 = vand.u32 %v3253, 2147483648
  %v3391 = vor.u32 1.1754944e-38, %v3390
  %v3392 = vsel %vm3389, %v3391, %v3387
  %v3393 = vrcp.pop %v3256
  %v3394 = vmul.f32 %v3256, %v3393
  %v3395 = vsub.f32 1.0, %v3394
  %v3396 = vmul.f32 %v3393, %v3395
  %v3397 = vadd.f32 %v3393, %v3396
  %vm3398 = vweird.f32 %v3256
  %vm3399 = vweird.f32 %v3393
  %vm3400 = vmor %vm3398, %vm3399
  %v3401 = vsel %vm3400, %v3393, %v3397
  %v3402 = vand.u32 2147483647, %v3256
  %vm3403 = vcmp.eq.f32.partialorder %v3402, 8.507059e+37
  %v3404 = vand.u32 %v3256, 2147483648
  %v3405 = vor.u32 1.1754944e-38, %v3404
  %v3406 = vsel %vm3403, %v3405, %v3401
  %v3407 = vrcp.pop %v3259
  %v3408 = vmul.f32 %v3259, %v3407
  %v3409 = vsub.f32 1.0, %v3408
  %v3410 = vmul.f32 %v3407, %v3409
  %v3411 = vadd.f32 %v3407, %v3410
  %vm3412 = vweird.f32 %v3259
  %vm3413 = vweird.f32 %v3407
  %vm3414 = vmor %vm3412, %vm3413
  %v3415 = vsel %vm3414, %v3407, %v3411
  %v3416 = vand.u32 2147483647, %v3259
  %vm3417 = vcmp.eq.f32.partialorder %v3416, 8.507059e+37
  %v3418 = vand.u32 %v3259, 2147483648
  %v3419 = vor.u32 1.1754944e-38, %v3418
  %v3420 = vsel %vm3417, %v3419, %v3415
  %v3421 = vrcp.pop %v3262
  %v3422 = vmul.f32 %v3262, %v3421
  %v3423 = vsub.f32 1.0, %v3422
  %v3424 = vmul.f32 %v3421, %v3423
  %v3425 = vadd.f32 %v3421, %v3424
  %vm3426 = vweird.f32 %v3262
  %vm3427 = vweird.f32 %v3421
  %vm3428 = vmor %vm3426, %vm3427
  %v3429 = vsel %vm3428, %v3421, %v3425
  %v3430 = vand.u32 2147483647, %v3262
  %vm3431 = vcmp.eq.f32.partialorder %v3430, 8.507059e+37
  %v3432 = vand.u32 %v3262, 2147483648
  %v3433 = vor.u32 1.1754944e-38, %v3432
  %v3434 = vsel %vm3431, %v3433, %v3429
  %v3435 = vrcp.pop %v3265
  %v3436 = vmul.f32 %v3265, %v3435
  %v3437 = vsub.f32 1.0, %v3436
  %v3438 = vmul.f32 %v3435, %v3437
  %v3439 = vadd.f32 %v3435, %v3438
  %vm3440 = vweird.f32 %v3265
  %vm3441 = vweird.f32 %v3435
  %vm3442 = vmor %vm3440, %vm3441
  %v3443 = vsel %vm3442, %v3435, %v3439
  %v3444 = vand.u32 2147483647, %v3265
  %vm3445 = vcmp.eq.f32.partialorder %v3444, 8.507059e+37
  %v3446 = vand.u32 %v3265, 2147483648
  %v3447 = vor.u32 1.1754944e-38, %v3446
  %v3448 = vsel %vm3445, %v3447, %v3443
  %v3449 = vmul.f32 %v3314, %v3350
  %v3450 = vmul.f32 %v3317, %v3364
  %v3451 = vmul.f32 %v3320, %v3378
  %v3452 = vmul.f32 %v3323, %v3392
  %v3453 = vmul.f32 %v3326, %v3406
  %v3454 = vmul.f32 %v3329, %v3420
  %v3455 = vmul.f32 %v3332, %v3434
  %v3456 = vmul.f32 %v3335, %v3448
  %v3458 = vsel %vm225, %v3449, 0
  %v3461 = vsel %vm225, %v3450, 0
  %v3464 = vsel %vm225, %v3451, 0
  %v3467 = vsel %vm225, %v3452, 0
  %v3470 = vsel %vm225, %v3453, 0
  %v3473 = vsel %vm225, %v3454, 0
  %v3476 = vsel %vm225, %v3455, 0
  %v3479 = vsel %vm225, %v3456, 0
  %3481 = vmatpush.msra.mxu0 0.0
  %3482 = vmatpush.msra.mxu0 0.0
  %3483 = vmatpush.msra.mxu0 0.0
  %3484 = vmatpush.msra.mxu0 0.0
  %3485 = vmatpush.msra.mxu0 0.0
  %3486 = vmatpush.msra.mxu0 0.0
  %3487 = vmatpush.msra.mxu0 0.0
  %3488 = vmatpush.msra.mxu0 0.0
  %3489 = vmatpush.msra.mxu0 0.0
  %3490 = vmatpush.msra.mxu0 0.0
  %3491 = vmatpush.msra.mxu0 0.0
  %3492 = vmatpush.msra.mxu0 0.0
  %3493 = vmatpush.msra.mxu0 0.0
  %3494 = vmatpush.msra.mxu0 0.0
  %3495 = vmatpush.msra.mxu0 0.0
  %3496 = vmatpush.msra.mxu0 %v223
  %3497 = vmatmul.f32.gmra.mxu0 %v3458
  %v3498 = vpop.f32.mrf.mxu0
  %v3499 = vadd.f32 0.0, %v3498
  %3500 = vmatmul.f32.gmra.mxu0 %v3461
  %v3501 = vpop.f32.mrf.mxu0
  %v3502 = vadd.f32 0.0, %v3501
  %3503 = vmatmul.f32.gmra.mxu0 %v3464
  %v3504 = vpop.f32.mrf.mxu0
  %v3505 = vadd.f32 0.0, %v3504
  %3506 = vmatmul.f32.gmra.mxu0 %v3467
  %v3507 = vpop.f32.mrf.mxu0
  %v3508 = vadd.f32 0.0, %v3507
  %3509 = vmatmul.f32.gmra.mxu0 %v3470
  %v3510 = vpop.f32.mrf.mxu0
  %v3511 = vadd.f32 0.0, %v3510
  %3512 = vmatmul.f32.gmra.mxu0 %v3473
  %v3513 = vpop.f32.mrf.mxu0
  %v3514 = vadd.f32 0.0, %v3513
  %3515 = vmatmul.f32.gmra.mxu0 %v3476
  %v3516 = vpop.f32.mrf.mxu0
  %v3517 = vadd.f32 0.0, %v3516
  %3518 = vmatmul.f32.gmra.mxu0 %v3479
  %v3519 = vpop.f32.mrf.mxu0
  %v3520 = vadd.f32 0.0, %v3519
  %3521 = vdwg.mxu0
  %v3522 = vadd.f32 %v3105, %v3499
  %v3523 = vadd.f32 %v3106, %v3502
  %v3524 = vadd.f32 %v3107, %v3505
  %v3525 = vadd.f32 %v3108, %v3508
  %v3526 = vadd.f32 %v3109, %v3511
  %v3527 = vadd.f32 %v3110, %v3514
  %v3528 = vadd.f32 %v3111, %v3517
  %v3529 = vadd.f32 %v3112, %v3520
  %v3530 = vadd.f32 %v3522, %v1870
  %v3531 = vadd.f32 %v3523, %v1870
  %v3532 = vadd.f32 %v3524, %v1870
  %v3533 = vadd.f32 %v3525, %v1870
  %v3534 = vadd.f32 %v3526, %v1870
  %v3535 = vadd.f32 %v3527, %v1870
  %v3536 = vadd.f32 %v3528, %v1870
  %v3537 = vadd.f32 %v3529, %v1870
  %s3538 = scalar_lea.vmem %s8, 64
  %3539 = vst.msk [vmem:[%s3538] sm:$0xff] %vm53, %v3530
  %3540 = vst.msk [vmem:[%s3538 + $0x8] sm:$0xff] %vm53, %v3531
  %3541 = vst.msk [vmem:[%s3538 + $0x10] sm:$0xff] %vm53, %v3532
  %3542 = vst.msk [vmem:[%s3538 + $0x18] sm:$0xff] %vm53, %v3533
  %3543 = vst.msk [vmem:[%s3538 + $0x20] sm:$0xff] %vm53, %v3534
  %3544 = vst.msk [vmem:[%s3538 + $0x28] sm:$0xff] %vm53, %v3535
  %3545 = vst.msk [vmem:[%s3538 + $0x30] sm:$0xff] %vm53, %v3536
  %3546 = vst.msk [vmem:[%s3538 + $0x38] sm:$0xff] %vm53, %v3537
  // Predicated region
  $region34: #{tpu_custom_call.1} parent=0 // pred_check
    _
  $region35: #{tpu_custom_call.1} parent=0 // pred_check_branch
    %3548 = sbr.rel (0) target = $region37
  $region36: #{tpu_custom_call.1} parent=0 // pred_region
    _
  $region37: #{tpu_custom_call.1} parent=0 // pred_fallthru
    _
  // Predicated region
  $region38: #{tpu_custom_call.1} parent=0 // pred_check
    _
  $region39: #{tpu_custom_call.1} parent=0 // pred_check_branch
    %3550 = sbr.rel (0) target = $region41
  $region40: #{tpu_custom_call.1} parent=0 // pred_region
    _
  $region41: #{tpu_custom_call.1} parent=0 // pred_fallthru
    _

</llo_original>
